<compile_context>
chip_gen: v5e
topology: v5e:2x2
jax: 0.10.0
libtpu: 0.0.40
codegen_flags: <defaults>
</compile_context>

<pallas_src>
import functools

import numpy as np
import jax
import jax.numpy as jnp
from jax import lax
from jax.experimental import pallas as pl
from jax.experimental.pallas import tpu as pltpu


def _round_up8(x):
    return max(8, ((x + 7) // 8) * 8)


def _pick_block_batch(n):
    """Images per grid step: largest B in {4,3,2,1} dividing N while keeping >= 2 steps.

    Batching raises the MXU M dim to B*64 and amortizes per-step overhead; >= 2
    'parallel' steps keep both v7x TensorCores busy.  B is capped at 4 because the
    block-diagonal gather matrices (and their matmul work) grow as B^2.
    """
    for b in (4, 3, 2, 1):
        if n % b == 0 and n // b >= 2:
            return b
    return 1


def _batched_tap_selection(h_in, w_in, h_out, w_out, p_blk, m_blk, batch):
    """0/1 gather matrix T of shape (9 * batch * m_blk, batch * p_blk).

    Row  t*(batch*m_blk) + b*m_blk + (oh*w_out + ow)  has a single 1 at column
    b*p_blk + (r*w_in + c)  with  (r, c) = (2*oh + kh - 1, 2*ow + kw - 1), t = kh*3 + kw.
    So (T @ A) -- A holding `batch` images stacked along rows, p_blk rows per image,
    row-major h_in x w_in pixels -- gathers, tap-block by tap-block, the zero-padded
    im2col taps of a 3x3 / stride-2 / pad-1 conv for every (image, output pixel).
    Taps landing in the zero padding and the m_blk alignment rows stay all-zero
    (valid because the convs are bias-free).
    """
    t_mat = np.zeros((9 * batch * m_blk, batch * p_blk), dtype=np.float32)
    for kh in range(3):
        for kw in range(3):
            t = kh * 3 + kw
            for b in range(batch):
                for oh in range(h_out):
                    for ow in range(w_out):
                        r = 2 * oh + kh - 1
                        c = 2 * ow + kw - 1
                        if 0 <= r < h_in and 0 <= c < w_in:
                            row = t * (batch * m_blk) + b * m_blk + oh * w_out + ow
                            t_mat[row, b * p_blk + r * w_in + c] = 1.0
    return t_mat


def _simplenet_kernel(x_ref, w1_ref, w2_ref, w3_ref, t1_ref, t2_ref, t3_ref, o_ref,
                      *, rows1, rows2, rows3):
    f32 = jnp.float32
    cd = x_ref.dtype                       # compute dtype (bf16 by default, f32 fallback)

    def conv(act, t_ref, wf_ref, rows):
        # act:   (B*P, C)      activations of B images stacked along rows.
        # t_ref: (9*rows, B*P) 0/1 selection -> exact gather of the padded 3x3 taps.
        # wf_ref:(9*C, C)      tap-major flattened conv weights.
        taps = jnp.dot(t_ref[...], act)                              # (9*rows, C), exact
        # Lay the nine tap blocks side by side -> im2col (rows, 9*C) (minor-axis concat),
        # then a single K = 9*C = 576 MXU pass with f32 accumulation.
        col = jnp.concatenate(
            [taps[t * rows:(t + 1) * rows, :] for t in range(9)], axis=-1)
        return jnp.dot(col, wf_ref[...], preferred_element_type=f32)  # (rows, C) f32

    y1 = jnp.maximum(conv(x_ref[...], t1_ref, w1_ref, rows1), 0.0).astype(cd)
    y2 = conv(y1, t2_ref, w2_ref, rows2).astype(cd)
    y3 = conv(y2, t3_ref, w3_ref, rows3)
    o_ref[...] = y3.astype(o_ref.dtype)


def simplenet_forward(x_nchw, params, *, compute_dtype=jnp.bfloat16):
    """SimpleNet.forward: relu(conv1(x)) -> layer1[0] -> layer1[1].  NCHW in / NCHW out."""
    w1, w2, w3 = params                                   # (3, 3, C, C) HWIO each
    N, C, H, W = x_nchw.shape
    assert w1.shape == (3, 3, C, C), w1.shape
    assert H % 8 == 0 and W % 8 == 0, "three stride-2 convs assume spatial dims % 8 == 0"
    Ho1, Wo1, Ho2, Wo2, Ho3, Wo3 = H // 2, W // 2, H // 4, W // 4, H // 8, W // 8
    M1, M2, M3 = Ho1 * Wo1, Ho2 * Wo2, Ho3 * Wo3
    blk1, blk2, blk3 = _round_up8(M1), _round_up8(M2), _round_up8(M3)
    HW = H * W
    B = _pick_block_batch(N)
    steps = N // B
    rows1, rows2, rows3 = B * blk1, B * blk2, B * blk3
    cd = compute_dtype

    # The only XLA-side layout op left in the forward: NCHW -> flat NHWC rows.
    x_rows = jnp.transpose(x_nchw, (0, 2, 3, 1)).reshape(N * HW, C).astype(cd)

    # Tap-major flattened weights: row index = (kh*3 + kw)*C + cin.
    w1f = w1.reshape(9 * C, C).astype(cd)
    w2f = w2.reshape(9 * C, C).astype(cd)
    w3f = w3.reshape(9 * C, C).astype(cd)

    # Constant 0/1 gather matrices (block-diagonal over the B images of one grid step).
    t1 = jnp.asarray(_batched_tap_selection(H, W, Ho1, Wo1, HW, blk1, B), dtype=cd)
    t2 = jnp.asarray(_batched_tap_selection(Ho1, Wo1, Ho2, Wo2, blk1, blk2, B), dtype=cd)
    t3 = jnp.asarray(_batched_tap_selection(Ho2, Wo2, Ho3, Wo3, blk2, blk3, B), dtype=cd)

    kernel = functools.partial(_simplenet_kernel, rows1=rows1, rows2=rows2, rows3=rows3)

    out = pl.pallas_call(
        kernel,
        out_shape=jax.ShapeDtypeStruct((N * blk3, C), jnp.float32),
        grid_spec=pltpu.PrefetchScalarGridSpec(
            num_scalar_prefetch=0,
            grid=(steps,),
            in_specs=[
                # Input rows of the B images handled by this step.
                pl.BlockSpec((B * HW, C), lambda n: (n, 0)),
                # Weights + gather matrices: constant index_map -> fetched once, resident.
                pl.BlockSpec((9 * C, C), lambda n: (0, 0)),
                pl.BlockSpec((9 * C, C), lambda n: (0, 0)),
                pl.BlockSpec((9 * C, C), lambda n: (0, 0)),
                pl.BlockSpec((9 * rows1, B * HW), lambda n: (0, 0)),
                pl.BlockSpec((9 * rows2, B * blk1), lambda n: (0, 0)),
                pl.BlockSpec((9 * rows3, B * blk2), lambda n: (0, 0)),
            ],
            out_specs=pl.BlockSpec((rows3, C), lambda n: (n, 0)),
        ),
        compiler_params=pltpu.CompilerParams(dimension_semantics=("parallel",)),
    )(x_rows, w1f, w2f, w3f, t1, t2, t3)

    y = out.reshape(N, blk3, C)[:, :M3, :].reshape(N, Ho3, Wo3, C)
    return jnp.transpose(y, (0, 3, 1, 2))                         # NHWC -> NCHW


# ----------------------------- pure-JAX reference ---------------------------------------
def _ref_conv(x_nhwc, w_hwio):
    return lax.conv_general_dilated(
        x_nhwc, w_hwio, window_strides=(2, 2), padding=((1, 1), (1, 1)),
        dimension_numbers=("NHWC", "HWIO", "NHWC"))


def _ref_forward(x_nchw, params):
    w1, w2, w3 = params
    x = jnp.transpose(x_nchw, (0, 2, 3, 1))
    y = jnp.maximum(_ref_conv(x, w1), 0.0)
    y = _ref_conv(y, w2)
    y = _ref_conv(y, w3)
    return jnp.transpose(y, (0, 3, 1, 2))


if __name__ == "__main__":
    key = jax.random.PRNGKey(0)
    k_x, k_w1, k_w2, k_w3 = jax.random.split(key, 4)

    # Channels are fixed at 64 by the module; N=4 exercises B=2 images/step, grid=(2,).
    N, C, H, W = 4, 64, 16, 16
    x = jax.random.normal(k_x, (N, C, H, W), dtype=jnp.float32)

    # Deterministic fan-in-scaled weights, HWIO layout (3, 3, Cin, Cout).
    scale = 1.0 / jnp.sqrt(64.0 * 9.0)
    w1 = jax.random.normal(k_w1, (3, 3, 64, 64), dtype=jnp.float32) * scale
    w2 = jax.random.normal(k_w2, (3, 3, 64, 64), dtype=jnp.float32) * scale
    w3 = jax.random.normal(k_w3, (3, 3, 64, 64), dtype=jnp.float32) * scale
    params = (w1, w2, w3)

    ref = jax.block_until_ready(_ref_forward(x, params))

    # float32 compute path: tight check against the XLA reference.
    fwd_f32 = jax.jit(functools.partial(simplenet_forward, compute_dtype=jnp.float32))
    out_f32 = jax.block_until_ready(fwd_f32(x, params))
    assert out_f32.shape == (N, 64, H // 8, W // 8), out_f32.shape
    assert jnp.allclose(out_f32, ref, atol=5e-4, rtol=5e-4), "f32 kernel mismatch vs XLA reference"

    # Default bf16 compute (f32 accumulation): looser tolerance (~1e-2 expected error).
    fwd = jax.jit(simplenet_forward)
    out = jax.block_until_ready(fwd(x, params))
    assert out.shape == (N, 64, H // 8, W // 8), out.shape
    max_err = float(jnp.max(jnp.abs(out - ref)))
    assert jnp.allclose(out, ref, atol=6e-2, rtol=6e-2), \
        f"bf16 kernel mismatch vs XLA reference (max |err| = {max_err})"

    print("KERNEL_OK")
</pallas_src>

<mosaic_0001>
module attributes {stable_mosaic.version = 11 : i64} {
  func.func @_simplenet_kernel(%arg0: i32, %arg1: memref<512x64xf32, #tpu.memory_space<vmem>>, %arg2: memref<576x64xf32, #tpu.memory_space<vmem>>, %arg3: memref<576x64xf32, #tpu.memory_space<vmem>>, %arg4: memref<576x64xf32, #tpu.memory_space<vmem>>, %arg5: memref<1152x512xf32, #tpu.memory_space<vmem>>, %arg6: memref<288x128xf32, #tpu.memory_space<vmem>>, %arg7: memref<144x32xf32, #tpu.memory_space<vmem>>, %arg8: memref<16x64xf32, #tpu.memory_space<vmem>>) attributes {dimension_semantics = [#tpu.dimension_semantics<parallel>], iteration_bounds = array<i64: 2>, scalar_prefetch = 0 : i64, scratch_operands = 0 : i64, tpu.core_type = #tpu.core_type<tc>, window_params = [{transform_indices = @transform_0, window_bounds = array<i64: 512, 64>}, {pipeline_mode = #tpu.pipeline_mode<synchronous>, transform_indices = @transform_1, window_bounds = array<i64: 576, 64>}, {pipeline_mode = #tpu.pipeline_mode<synchronous>, transform_indices = @transform_2, window_bounds = array<i64: 576, 64>}, {pipeline_mode = #tpu.pipeline_mode<synchronous>, transform_indices = @transform_3, window_bounds = array<i64: 576, 64>}, {pipeline_mode = #tpu.pipeline_mode<synchronous>, transform_indices = @transform_4, window_bounds = array<i64: 1152, 512>}, {pipeline_mode = #tpu.pipeline_mode<synchronous>, transform_indices = @transform_5, window_bounds = array<i64: 288, 128>}, {pipeline_mode = #tpu.pipeline_mode<synchronous>, transform_indices = @transform_6, window_bounds = array<i64: 144, 32>}, {transform_indices = @transform_7, window_bounds = array<i64: 16, 64>}]} {
    %c0 = arith.constant 0 : index
    %c0_0 = arith.constant 0 : index
    %0 = vector.load %arg1[%c0, %c0_0] : memref<512x64xf32, #tpu.memory_space<vmem>>, vector<512x64xf32>
    %c0_1 = arith.constant 0 : index
    %c0_2 = arith.constant 0 : index
    %1 = vector.load %arg5[%c0_1, %c0_2] : memref<1152x512xf32, #tpu.memory_space<vmem>>, vector<1152x512xf32>
    %cst = arith.constant dense<0.000000e+00> : vector<1152x64xf32>
    %2 = tpu.matmul %1, %0, %cst {dimension_numbers = #tpu.dot_dimension_numbers<[1], [0], [0], [1], [0, 0, 1, 1], [], []>} : vector<1152x512xf32>, vector<512x64xf32>, vector<1152x64xf32> -> vector<1152x64xf32>
    %3 = vector.extract_strided_slice %2 {offsets = [0, 0], sizes = [128, 64], strides = [1, 1]} : vector<1152x64xf32> to vector<128x64xf32>
    %4 = vector.extract_strided_slice %2 {offsets = [128, 0], sizes = [128, 64], strides = [1, 1]} : vector<1152x64xf32> to vector<128x64xf32>
    %5 = vector.extract_strided_slice %2 {offsets = [256, 0], sizes = [128, 64], strides = [1, 1]} : vector<1152x64xf32> to vector<128x64xf32>
    %6 = vector.extract_strided_slice %2 {offsets = [384, 0], sizes = [128, 64], strides = [1, 1]} : vector<1152x64xf32> to vector<128x64xf32>
    %7 = vector.extract_strided_slice %2 {offsets = [512, 0], sizes = [128, 64], strides = [1, 1]} : vector<1152x64xf32> to vector<128x64xf32>
    %8 = vector.extract_strided_slice %2 {offsets = [640, 0], sizes = [128, 64], strides = [1, 1]} : vector<1152x64xf32> to vector<128x64xf32>
    %9 = vector.extract_strided_slice %2 {offsets = [768, 0], sizes = [128, 64], strides = [1, 1]} : vector<1152x64xf32> to vector<128x64xf32>
    %10 = vector.extract_strided_slice %2 {offsets = [896, 0], sizes = [128, 64], strides = [1, 1]} : vector<1152x64xf32> to vector<128x64xf32>
    %11 = vector.extract_strided_slice %2 {offsets = [1024, 0], sizes = [128, 64], strides = [1, 1]} : vector<1152x64xf32> to vector<128x64xf32>
    %12 = tpu.concatenate %3, %4, %5, %6, %7, %8, %9, %10, %11 in 1 : vector<128x64xf32>, vector<128x64xf32>, vector<128x64xf32>, vector<128x64xf32>, vector<128x64xf32>, vector<128x64xf32>, vector<128x64xf32>, vector<128x64xf32>, vector<128x64xf32> -> vector<128x576xf32>
    %c0_3 = arith.constant 0 : index
    %c0_4 = arith.constant 0 : index
    %13 = vector.load %arg2[%c0_3, %c0_4] : memref<576x64xf32, #tpu.memory_space<vmem>>, vector<576x64xf32>
    %cst_5 = arith.constant dense<0.000000e+00> : vector<128x64xf32>
    %14 = tpu.matmul %12, %13, %cst_5 {dimension_numbers = #tpu.dot_dimension_numbers<[1], [0], [0], [1], [0, 0, 1, 1], [], []>} : vector<128x576xf32>, vector<576x64xf32>, vector<128x64xf32> -> vector<128x64xf32>
    %cst_6 = arith.constant 0.000000e+00 : f32
    %15 = vector.broadcast %cst_6 : f32 to vector<128x64xf32>
    %16 = arith.maximumf %14, %15 : vector<128x64xf32>
    %c0_7 = arith.constant 0 : index
    %c0_8 = arith.constant 0 : index
    %17 = vector.load %arg6[%c0_7, %c0_8] : memref<288x128xf32, #tpu.memory_space<vmem>>, vector<288x128xf32>
    %cst_9 = arith.constant dense<0.000000e+00> : vector<288x64xf32>
    %18 = tpu.matmul %17, %16, %cst_9 {dimension_numbers = #tpu.dot_dimension_numbers<[1], [0], [0], [1], [0, 0, 1, 1], [], []>} : vector<288x128xf32>, vector<128x64xf32>, vector<288x64xf32> -> vector<288x64xf32>
    %19 = vector.extract_strided_slice %18 {offsets = [0, 0], sizes = [32, 64], strides = [1, 1]} : vector<288x64xf32> to vector<32x64xf32>
    %20 = vector.extract_strided_slice %18 {offsets = [32, 0], sizes = [32, 64], strides = [1, 1]} : vector<288x64xf32> to vector<32x64xf32>
    %21 = vector.extract_strided_slice %18 {offsets = [64, 0], sizes = [32, 64], strides = [1, 1]} : vector<288x64xf32> to vector<32x64xf32>
    %22 = vector.extract_strided_slice %18 {offsets = [96, 0], sizes = [32, 64], strides = [1, 1]} : vector<288x64xf32> to vector<32x64xf32>
    %23 = vector.extract_strided_slice %18 {offsets = [128, 0], sizes = [32, 64], strides = [1, 1]} : vector<288x64xf32> to vector<32x64xf32>
    %24 = vector.extract_strided_slice %18 {offsets = [160, 0], sizes = [32, 64], strides = [1, 1]} : vector<288x64xf32> to vector<32x64xf32>
    %25 = vector.extract_strided_slice %18 {offsets = [192, 0], sizes = [32, 64], strides = [1, 1]} : vector<288x64xf32> to vector<32x64xf32>
    %26 = vector.extract_strided_slice %18 {offsets = [224, 0], sizes = [32, 64], strides = [1, 1]} : vector<288x64xf32> to vector<32x64xf32>
    %27 = vector.extract_strided_slice %18 {offsets = [256, 0], sizes = [32, 64], strides = [1, 1]} : vector<288x64xf32> to vector<32x64xf32>
    %28 = tpu.concatenate %19, %20, %21, %22, %23, %24, %25, %26, %27 in 1 : vector<32x64xf32>, vector<32x64xf32>, vector<32x64xf32>, vector<32x64xf32>, vector<32x64xf32>, vector<32x64xf32>, vector<32x64xf32>, vector<32x64xf32>, vector<32x64xf32> -> vector<32x576xf32>
    %c0_10 = arith.constant 0 : index
    %c0_11 = arith.constant 0 : index
    %29 = vector.load %arg3[%c0_10, %c0_11] : memref<576x64xf32, #tpu.memory_space<vmem>>, vector<576x64xf32>
    %cst_12 = arith.constant dense<0.000000e+00> : vector<32x64xf32>
    %30 = tpu.matmul %28, %29, %cst_12 {dimension_numbers = #tpu.dot_dimension_numbers<[1], [0], [0], [1], [0, 0, 1, 1], [], []>} : vector<32x576xf32>, vector<576x64xf32>, vector<32x64xf32> -> vector<32x64xf32>
    %c0_13 = arith.constant 0 : index
    %c0_14 = arith.constant 0 : index
    %31 = vector.load %arg7[%c0_13, %c0_14] : memref<144x32xf32, #tpu.memory_space<vmem>>, vector<144x32xf32>
    %cst_15 = arith.constant dense<0.000000e+00> : vector<144x64xf32>
    %32 = tpu.matmul %31, %30, %cst_15 {dimension_numbers = #tpu.dot_dimension_numbers<[1], [0], [0], [1], [0, 0, 1, 1], [], []>} : vector<144x32xf32>, vector<32x64xf32>, vector<144x64xf32> -> vector<144x64xf32>
    %33 = vector.extract_strided_slice %32 {offsets = [0, 0], sizes = [16, 64], strides = [1, 1]} : vector<144x64xf32> to vector<16x64xf32>
    %34 = vector.extract_strided_slice %32 {offsets = [16, 0], sizes = [16, 64], strides = [1, 1]} : vector<144x64xf32> to vector<16x64xf32>
    %35 = vector.extract_strided_slice %32 {offsets = [32, 0], sizes = [16, 64], strides = [1, 1]} : vector<144x64xf32> to vector<16x64xf32>
    %36 = vector.extract_strided_slice %32 {offsets = [48, 0], sizes = [16, 64], strides = [1, 1]} : vector<144x64xf32> to vector<16x64xf32>
    %37 = vector.extract_strided_slice %32 {offsets = [64, 0], sizes = [16, 64], strides = [1, 1]} : vector<144x64xf32> to vector<16x64xf32>
    %38 = vector.extract_strided_slice %32 {offsets = [80, 0], sizes = [16, 64], strides = [1, 1]} : vector<144x64xf32> to vector<16x64xf32>
    %39 = vector.extract_strided_slice %32 {offsets = [96, 0], sizes = [16, 64], strides = [1, 1]} : vector<144x64xf32> to vector<16x64xf32>
    %40 = vector.extract_strided_slice %32 {offsets = [112, 0], sizes = [16, 64], strides = [1, 1]} : vector<144x64xf32> to vector<16x64xf32>
    %41 = vector.extract_strided_slice %32 {offsets = [128, 0], sizes = [16, 64], strides = [1, 1]} : vector<144x64xf32> to vector<16x64xf32>
    %42 = tpu.concatenate %33, %34, %35, %36, %37, %38, %39, %40, %41 in 1 : vector<16x64xf32>, vector<16x64xf32>, vector<16x64xf32>, vector<16x64xf32>, vector<16x64xf32>, vector<16x64xf32>, vector<16x64xf32>, vector<16x64xf32>, vector<16x64xf32> -> vector<16x576xf32>
    %c0_16 = arith.constant 0 : index
    %c0_17 = arith.constant 0 : index
    %43 = vector.load %arg4[%c0_16, %c0_17] : memref<576x64xf32, #tpu.memory_space<vmem>>, vector<576x64xf32>
    %cst_18 = arith.constant dense<0.000000e+00> : vector<16x64xf32>
    %44 = tpu.matmul %42, %43, %cst_18 {dimension_numbers = #tpu.dot_dimension_numbers<[1], [0], [0], [1], [0, 0, 1, 1], [], []>} : vector<16x576xf32>, vector<576x64xf32>, vector<16x64xf32> -> vector<16x64xf32>
    %c0_19 = arith.constant 0 : index
    %c0_20 = arith.constant 0 : index
    %45 = vector.load %arg8[%c0_19, %c0_20] : memref<16x64xf32, #tpu.memory_space<vmem>>, vector<16x64xf32>
    tpu.vector_store %arg8[%c0_19, %c0_20], %44 {strides = array<i32>} : memref<16x64xf32, #tpu.memory_space<vmem>>, vector<16x64xf32>,
    return
  }
  func.func @transform_0(%arg0: i32) -> (i32, i32) {
    %c0_i32 = arith.constant 0 : i32
    %c0_i32_0 = arith.constant 0 : i32
    return %arg0, %c0_i32 : i32, i32
  }
  func.func @transform_1(%arg0: i32) -> (i32, i32) {
    %c0_i32 = arith.constant 0 : i32
    %c0_i32_0 = arith.constant 0 : i32
    %c0_i32_1 = arith.constant 0 : i32
    return %c0_i32, %c0_i32_0 : i32, i32
  }
  func.func @transform_2(%arg0: i32) -> (i32, i32) {
    %c0_i32 = arith.constant 0 : i32
    %c0_i32_0 = arith.constant 0 : i32
    %c0_i32_1 = arith.constant 0 : i32
    return %c0_i32, %c0_i32_0 : i32, i32
  }
  func.func @transform_3(%arg0: i32) -> (i32, i32) {
    %c0_i32 = arith.constant 0 : i32
    %c0_i32_0 = arith.constant 0 : i32
    %c0_i32_1 = arith.constant 0 : i32
    return %c0_i32, %c0_i32_0 : i32, i32
  }
  func.func @transform_4(%arg0: i32) -> (i32, i32) {
    %c0_i32 = arith.constant 0 : i32
    %c0_i32_0 = arith.constant 0 : i32
    %c0_i32_1 = arith.constant 0 : i32
    return %c0_i32, %c0_i32_0 : i32, i32
  }
  func.func @transform_5(%arg0: i32) -> (i32, i32) {
    %c0_i32 = arith.constant 0 : i32
    %c0_i32_0 = arith.constant 0 : i32
    %c0_i32_1 = arith.constant 0 : i32
    return %c0_i32, %c0_i32_0 : i32, i32
  }
  func.func @transform_6(%arg0: i32) -> (i32, i32) {
    %c0_i32 = arith.constant 0 : i32
    %c0_i32_0 = arith.constant 0 : i32
    %c0_i32_1 = arith.constant 0 : i32
    return %c0_i32, %c0_i32_0 : i32, i32
  }
  func.func @transform_7(%arg0: i32) -> (i32, i32) {
    %c0_i32 = arith.constant 0 : i32
    %c0_i32_0 = arith.constant 0 : i32
    return %arg0, %c0_i32 : i32, i32
  }
}

</mosaic_0001>

<llo_original>
// kernel: simplenet_forward.1
$region0: #{simplenet_forward.1}
  #allocation0 [shape = 'u32[]', space=smem, size = 0x4, offset = 0x4, fixed_abs, tag = 'smem constant byte address 0x4 - core index']
  #allocation1 [shape = 'u32[72,128]{1,0:T(1,128)}', space=vmem, size = 0x9000, scoped, tag = 'internal scratch']
  %s0 = inlined_call_operand.hbm [shape: f32[1024,64], index: 0, kind: input, shape index: {}]
  %s1 = inlined_call_operand.hbm [shape: f32[576,64], index: 1, kind: input, shape index: {}]
  %s2 = inlined_call_operand.hbm [shape: f32[576,64], index: 2, kind: input, shape index: {}]
  %s3 = inlined_call_operand.hbm [shape: f32[576,64], index: 3, kind: input, shape index: {}]
  %s4 = inlined_call_operand.hbm [shape: f32[1152,512], index: 4, kind: input, shape index: {}]
  %s5 = inlined_call_operand.hbm [shape: f32[288,128], index: 5, kind: input, shape index: {}]
  %s6 = inlined_call_operand.hbm [shape: f32[144,32], index: 6, kind: input, shape index: {}]
  %s7 = inlined_call_operand.vmem [shape: f32[32,64], index: 7, kind: output, shape index: {}]
  %s8 = sld [smem:[#allocation0]]
  $region89: #{simplenet_forward.1} parent=0
    _
  %s10 = ssub.s32 1, %s8
  %s11 = scalar_select 0, %s10, %s8
  $region1: #{simplenet_forward.1} parent=0
    #allocation2 [shape = 'u8[524288]{0}', space=vmem, size = 0x80000, scoped, tag = 'input window, operand 0']
    #allocation3 [shape = 's32[2]{0}', space=sflag, size = 0x8, scoped, tag = 'scoped memory for simplenet_forward.1']
    #allocation4 [shape = 'u8[294912]{0}', space=vmem, size = 0x48000, scoped, tag = 'input window, operand 1, single buffered']
    #allocation5 [shape = 's32[1]{0}', space=sflag, size = 0x4, scoped, tag = 'scoped memory for simplenet_forward.1']
    #allocation6 [shape = 'u8[294912]{0}', space=vmem, size = 0x48000, scoped, tag = 'input window, operand 2, single buffered']
    #allocation7 [shape = 'u8[294912]{0}', space=vmem, size = 0x48000, scoped, tag = 'input window, operand 3, single buffered']
    #allocation8 [shape = 's32[1]{0}', space=sflag, size = 0x4, scoped, tag = 'scoped memory for simplenet_forward.1']
    #allocation9 [shape = 'u8[2359296]{0}', space=vmem, size = 0x240000, scoped, tag = 'input window, operand 4, single buffered']
    #allocation10 [shape = 'u8[147456]{0}', space=vmem, size = 0x24000, scoped, tag = 'input window, operand 5, single buffered']
    #allocation11 [shape = 's32[1]{0}', space=sflag, size = 0x4, scoped, tag = 'scoped memory for simplenet_forward.1']
    #allocation12 [shape = 'u8[73728]{0}', space=vmem, size = 0x12000, scoped, tag = 'input window, operand 6, single buffered']
    %12 = vsyncpa [#allocation3], 0
    %s13 = scalar_lea.sflag [#allocation3], 1
    %14 = vsyncpa %s13, 0
    %15 = vsyncpa [#allocation5], 0
    %16 = vsyncpa [#allocation8], 0
    %17 = vsyncpa [#allocation11], 0
    loop: start=0, step=1, limit=4
    $region2: #{simplenet_forward.1} parent=1 // loop_pre_header
      _
    $region3: #{simplenet_forward.1} parent=1 // loop_header
      %s19 = sphi 0, %s23
      %p20 = scmp.ge.s32.totalorder %s19, 4
      %s29 = sphi 0, %s31
      %s32 = sphi 0, %s29
      %s33 = sphi 0, %s32
      %s49 = sphi 0, %s33
      %s53 = sphi 0, %s53
      %s55 = sphi 0, %s53
      %s56 = sphi 0, %s55
      %s70 = sphi 0, %s56
      %s74 = sphi 0, %s74
      %s76 = sphi 0, %s74
      %s77 = sphi 0, %s76
      %s91 = sphi 0, %s77
      %s95 = sphi 0, %s95
      %s97 = sphi 0, %s95
      %s98 = sphi 0, %s97
      %s112 = sphi 0, %s98
      %s116 = sphi 0, %s116
      %s118 = sphi 0, %s116
      %s119 = sphi 0, %s118
      %s133 = sphi 0, %s119
      %s137 = sphi 0, %s137
      %s139 = sphi 0, %s137
      %s140 = sphi 0, %s139
      %s154 = sphi 0, %s140
      %s158 = sphi 0, %s158
      %s160 = sphi 0, %s158
      %s161 = sphi 0, %s160
      %s175 = sphi 0, %s161
      %s181 = sphi 0, %s183
      %s184 = sphi 0, %s181
      %s185 = sphi 0, %s184
      %s201 = sphi 0, %s185
    $region4: #{simplenet_forward.1} parent=1 // loop_header_branch
      %22 = sbr.rel (%p20) target = $region8
    $region5: #{simplenet_forward.1} parent=1 // loop_body
      %s24 = ssub.s32 %s19, 1
      %s25 = ssub.s32 %s19, 2
      %s26 = sadd.s32 %s19, 1
      %s27 = ssub.s32 %s19, %s26
      %p28 = scmp.eq.s32.totalorder %s27, 0
      %s30 = sadd.s32 %s29, 1
      %s31 = scalar_select %p28, %s29, %s30
      %p34 = pneg %p28
      %p35 = scmp.eq.s32.totalorder %s19, 1
      %p36 = por %p34, %p35
      %p37 = scmp.ne.s32.totalorder %s29, %s32
      %p38 = scmp.eq.s32.totalorder %s19, 0
      %p39 = por %p37, %p38
      %p40 = scmp.ne.s32.totalorder %s29, %s32
      %p41 = scmp.eq.s32.totalorder %s24, 1
      %p42 = por %p40, %p41
      %p43 = scmp.ne.s32.totalorder %s32, %s33
      %p44 = scmp.eq.s32.totalorder %s24, 0
      %p45 = por %p43, %p44
      %p46 = scmp.ne.s32.totalorder %s32, %s33
      %p47 = scmp.eq.s32.totalorder %s25, 1
      %p48 = por %p46, %p47
      %p50 = scmp.ne.s32.totalorder %s33, %s49
      %p51 = scmp.eq.s32.totalorder %s25, 0
      %p52 = por %p50, %p51
      %s54 = sadd.s32 %s53, 1
      %p57 = scmp.eq.s32.totalorder %s19, 1
      %p58 = scmp.ne.s32.totalorder %s53, %s55
      %p59 = scmp.eq.s32.totalorder %s19, 0
      %p60 = por %p58, %p59
      %p61 = scmp.ne.s32.totalorder %s53, %s55
      %p62 = scmp.eq.s32.totalorder %s24, 1
      %p63 = por %p61, %p62
      %p64 = scmp.ne.s32.totalorder %s55, %s56
      %p65 = scmp.eq.s32.totalorder %s24, 0
      %p66 = por %p64, %p65
      %p67 = scmp.ne.s32.totalorder %s55, %s56
      %p68 = scmp.eq.s32.totalorder %s25, 1
      %p69 = por %p67, %p68
      %p71 = scmp.ne.s32.totalorder %s56, %s70
      %p72 = scmp.eq.s32.totalorder %s25, 0
      %p73 = por %p71, %p72
      %s75 = sadd.s32 %s74, 1
      %p78 = scmp.eq.s32.totalorder %s19, 1
      %p79 = scmp.ne.s32.totalorder %s74, %s76
      %p80 = scmp.eq.s32.totalorder %s19, 0
      %p81 = por %p79, %p80
      %p82 = scmp.ne.s32.totalorder %s74, %s76
      %p83 = scmp.eq.s32.totalorder %s24, 1
      %p84 = por %p82, %p83
      %p85 = scmp.ne.s32.totalorder %s76, %s77
      %p86 = scmp.eq.s32.totalorder %s24, 0
      %p87 = por %p85, %p86
      %p88 = scmp.ne.s32.totalorder %s76, %s77
      %p89 = scmp.eq.s32.totalorder %s25, 1
      %p90 = por %p88, %p89
      %p92 = scmp.ne.s32.totalorder %s77, %s91
      %p93 = scmp.eq.s32.totalorder %s25, 0
      %p94 = por %p92, %p93
      %s96 = sadd.s32 %s95, 1
      %p99 = scmp.eq.s32.totalorder %s19, 1
      %p100 = scmp.ne.s32.totalorder %s95, %s97
      %p101 = scmp.eq.s32.totalorder %s19, 0
      %p102 = por %p100, %p101
      %p103 = scmp.ne.s32.totalorder %s95, %s97
      %p104 = scmp.eq.s32.totalorder %s24, 1
      %p105 = por %p103, %p104
      %p106 = scmp.ne.s32.totalorder %s97, %s98
      %p107 = scmp.eq.s32.totalorder %s24, 0
      %p108 = por %p106, %p107
      %p109 = scmp.ne.s32.totalorder %s97, %s98
      %p110 = scmp.eq.s32.totalorder %s25, 1
      %p111 = por %p109, %p110
      %p113 = scmp.ne.s32.totalorder %s98, %s112
      %p114 = scmp.eq.s32.totalorder %s25, 0
      %p115 = por %p113, %p114
      %s117 = sadd.s32 %s116, 1
      %p120 = scmp.eq.s32.totalorder %s19, 1
      %p121 = scmp.ne.s32.totalorder %s116, %s118
      %p122 = scmp.eq.s32.totalorder %s19, 0
      %p123 = por %p121, %p122
      %p124 = scmp.ne.s32.totalorder %s116, %s118
      %p125 = scmp.eq.s32.totalorder %s24, 1
      %p126 = por %p124, %p125
      %p127 = scmp.ne.s32.totalorder %s118, %s119
      %p128 = scmp.eq.s32.totalorder %s24, 0
      %p129 = por %p127, %p128
      %p130 = scmp.ne.s32.totalorder %s118, %s119
      %p131 = scmp.eq.s32.totalorder %s25, 1
      %p132 = por %p130, %p131
      %p134 = scmp.ne.s32.totalorder %s119, %s133
      %p135 = scmp.eq.s32.totalorder %s25, 0
      %p136 = por %p134, %p135
      %s138 = sadd.s32 %s137, 1
      %p141 = scmp.eq.s32.totalorder %s19, 1
      %p142 = scmp.ne.s32.totalorder %s137, %s139
      %p143 = scmp.eq.s32.totalorder %s19, 0
      %p144 = por %p142, %p143
      %p145 = scmp.ne.s32.totalorder %s137, %s139
      %p146 = scmp.eq.s32.totalorder %s24, 1
      %p147 = por %p145, %p146
      %p148 = scmp.ne.s32.totalorder %s139, %s140
      %p149 = scmp.eq.s32.totalorder %s24, 0
      %p150 = por %p148, %p149
      %p151 = scmp.ne.s32.totalorder %s139, %s140
      %p152 = scmp.eq.s32.totalorder %s25, 1
      %p153 = por %p151, %p152
      %p155 = scmp.ne.s32.totalorder %s140, %s154
      %p156 = scmp.eq.s32.totalorder %s25, 0
      %p157 = por %p155, %p156
      %s159 = sadd.s32 %s158, 1
      %p162 = scmp.eq.s32.totalorder %s19, 1
      %p163 = scmp.ne.s32.totalorder %s158, %s160
      %p164 = scmp.eq.s32.totalorder %s19, 0
      %p165 = por %p163, %p164
      %p166 = scmp.ne.s32.totalorder %s158, %s160
      %p167 = scmp.eq.s32.totalorder %s24, 1
      %p168 = por %p166, %p167
      %p169 = scmp.ne.s32.totalorder %s160, %s161
      %p170 = scmp.eq.s32.totalorder %s24, 0
      %p171 = por %p169, %p170
      %p172 = scmp.ne.s32.totalorder %s160, %s161
      %p173 = scmp.eq.s32.totalorder %s25, 1
      %p174 = por %p172, %p173
      %p176 = scmp.ne.s32.totalorder %s161, %s175
      %p177 = scmp.eq.s32.totalorder %s25, 0
      %p178 = por %p176, %p177
      %s179 = ssub.s32 %s19, %s26
      %p180 = scmp.eq.s32.totalorder %s179, 0
      %s182 = sadd.s32 %s181, 1
      %s183 = scalar_select %p180, %s181, %s182
      %p186 = pneg %p180
      %p187 = scmp.eq.s32.totalorder %s19, 1
      %p188 = por %p186, %p187
      %p189 = scmp.ne.s32.totalorder %s181, %s184
      %p190 = scmp.eq.s32.totalorder %s19, 0
      %p191 = por %p189, %p190
      %p192 = scmp.ne.s32.totalorder %s181, %s184
      %p193 = scmp.eq.s32.totalorder %s24, 1
      %p194 = por %p192, %p193
      %p195 = scmp.ne.s32.totalorder %s184, %s185
      %p196 = scmp.eq.s32.totalorder %s24, 0
      %p197 = por %p195, %p196
      %p198 = scmp.ne.s32.totalorder %s184, %s185
      %p199 = scmp.eq.s32.totalorder %s25, 1
      %p200 = por %p198, %p199
      %p202 = scmp.ne.s32.totalorder %s185, %s201
      %p203 = scmp.eq.s32.totalorder %s25, 0
      %p204 = por %p202, %p203
      %p205 = scmp.le.s32.totalorder 1, %s19
      %p206 = scmp.lt.s32.totalorder %s19, 3
      %p207 = pnand %p205, %p206
      %p208 = pneg %p207
      // Predicated region
      $region9: #{simplenet_forward.1} parent=5 // pred_check
        _
      $region10: #{simplenet_forward.1} parent=5 // pred_check_branch
        %210 = sbr.rel (%p207) target = $region12
      $region11: #{simplenet_forward.1} parent=5 // pred_region
        %s211 = ssub.s32 %s19, 1
        // Predicated region
        $region13: #{simplenet_forward.1} parent=11 // pred_check
          %p212 = pneg %p66
        $region14: #{simplenet_forward.1} parent=11 // pred_check_branch
          %214 = sbr.rel (%p212) target = $region16
        $region15: #{simplenet_forward.1} parent=11 // pred_region
          %216 = vsyncadd [#allocation5], 0
          %s217 = sshll.u32 %s1, 4
          %s218 = int_to_ptr.hbm [resolvable:$true] %s217
          %s219 = sshll.u32 [#allocation4], 4
          %s220 = int_to_ptr.vmem [resolvable:$true] %s219
          %225 = dma.hbm_to_vmem [thread:$0]  %s218, 9216, %s220, [#allocation5], 128, 128, 8
        $region16: #{simplenet_forward.1} parent=11 // pred_fallthru
          _
        // Predicated region
        $region17: #{simplenet_forward.1} parent=11 // pred_check
          %p226 = pneg %p87
        $region18: #{simplenet_forward.1} parent=11 // pred_check_branch
          %228 = sbr.rel (%p226) target = $region20
        $region19: #{simplenet_forward.1} parent=11 // pred_region
          %230 = vsyncadd [#allocation5], 0
          %s231 = sshll.u32 %s2, 4
          %s232 = int_to_ptr.hbm [resolvable:$true] %s231
          %s233 = sshll.u32 [#allocation6], 4
          %s234 = int_to_ptr.vmem [resolvable:$true] %s233
          %239 = dma.hbm_to_vmem [thread:$0]  %s232, 9216, %s234, [#allocation5], 128, 128, 8
        $region20: #{simplenet_forward.1} parent=11 // pred_fallthru
          _
        // Predicated region
        $region21: #{simplenet_forward.1} parent=11 // pred_check
          %p240 = pneg %p108
        $region22: #{simplenet_forward.1} parent=11 // pred_check_branch
          %242 = sbr.rel (%p240) target = $region24
        $region23: #{simplenet_forward.1} parent=11 // pred_region
          %244 = vsyncadd [#allocation8], 0
          %s245 = sshll.u32 %s3, 4
          %s246 = int_to_ptr.hbm [resolvable:$true] %s245
          %s247 = sshll.u32 [#allocation7], 4
          %s248 = int_to_ptr.vmem [resolvable:$true] %s247
          %253 = dma.hbm_to_vmem [thread:$0]  %s246, 9216, %s248, [#allocation8], 128, 128, 8
        $region24: #{simplenet_forward.1} parent=11 // pred_fallthru
          _
        // Predicated region
        $region25: #{simplenet_forward.1} parent=11 // pred_check
          %p254 = pneg %p129
        $region26: #{simplenet_forward.1} parent=11 // pred_check_branch
          %256 = sbr.rel (%p254) target = $region28
        $region27: #{simplenet_forward.1} parent=11 // pred_region
          %258 = vsyncadd [#allocation8], 0
          %s259 = sshll.u32 %s4, 4
          %s260 = int_to_ptr.hbm [resolvable:$true] %s259
          %s261 = sshll.u32 [#allocation9], 4
          %s262 = int_to_ptr.vmem [resolvable:$true] %s261
          %267 = dma.hbm_to_vmem [thread:$0]  %s260, 73728, %s262, [#allocation8], 512, 512, 32
        $region28: #{simplenet_forward.1} parent=11 // pred_fallthru
          _
        // Predicated region
        $region29: #{simplenet_forward.1} parent=11 // pred_check
          %p268 = pneg %p150
        $region30: #{simplenet_forward.1} parent=11 // pred_check_branch
          %270 = sbr.rel (%p268) target = $region32
        $region31: #{simplenet_forward.1} parent=11 // pred_region
          %272 = vsyncadd [#allocation11], 0
          %s273 = sshll.u32 %s5, 4
          %s274 = int_to_ptr.hbm [resolvable:$true] %s273
          %s275 = sshll.u32 [#allocation10], 4
          %s276 = int_to_ptr.vmem [resolvable:$true] %s275
          %281 = dma.hbm_to_vmem [thread:$0]  %s274, 4608, %s276, [#allocation11], 128, 128, 8
        $region32: #{simplenet_forward.1} parent=11 // pred_fallthru
          _
        // Predicated region
        $region33: #{simplenet_forward.1} parent=11 // pred_check
          %p282 = pneg %p171
        $region34: #{simplenet_forward.1} parent=11 // pred_check_branch
          %284 = sbr.rel (%p282) target = $region36
        $region35: #{simplenet_forward.1} parent=11 // pred_region
          %286 = vsyncadd [#allocation11], 0
          %s287 = sshll.u32 %s6, 4
          %s288 = int_to_ptr.hbm [resolvable:$true] %s287
          %s289 = sshll.u32 [#allocation12], 4
          %s290 = int_to_ptr.vmem [resolvable:$true] %s289
          %295 = dma.hbm_to_vmem [thread:$0]  %s288, 2304, %s290, [#allocation11], 128, 128, 8
        $region36: #{simplenet_forward.1} parent=11 // pred_fallthru
          _
      $region12: #{simplenet_forward.1} parent=5 // pred_fallthru
        _
      %p296 = scmp.lt.s32.totalorder %s19, 2
      // Predicated region
      $region37: #{simplenet_forward.1} parent=5 // pred_check
        %p297 = pneg %p296
      $region38: #{simplenet_forward.1} parent=5 // pred_check_branch
        %299 = sbr.rel (%p297) target = $region40
      $region39: #{simplenet_forward.1} parent=5 // pred_region
        // Predicated region
        $region41: #{simplenet_forward.1} parent=39 // pred_check
          %p300 = pneg %p39
        $region42: #{simplenet_forward.1} parent=39 // pred_check_branch
          %302 = sbr.rel (%p300) target = $region44
        $region43: #{simplenet_forward.1} parent=39 // pred_region
          %s303 = sand.u32 %s29, 1
          %s304 = scalar_lea.sflag [#allocation3], %s303
          %s305 = sand.u32 %s29, 1
          %s306 = smul.addr %s305, 512
          %s307 = scalar_lea.vmem [#allocation2], %s306
          %s308 = smul.u32 64, %s19
          %310 = vsyncadd %s304, 0
          %s311 = smul.addr %s308, 8
          %s312 = scalar_lea.hbm %s0, %s311
          %s313 = sshll.u32 %s312, 4
          %s314 = int_to_ptr.hbm [resolvable:$true] %s313
          %s315 = sshll.u32 %s307, 4
          %s316 = int_to_ptr.vmem [resolvable:$true] %s315
          %321 = dma.hbm_to_vmem [thread:$0]  %s314, 8192, %s316, %s304, 128, 128, 8
        $region44: #{simplenet_forward.1} parent=39 // pred_fallthru
          _
      $region40: #{simplenet_forward.1} parent=5 // pred_fallthru
        _
      %p322 = scmp.le.s32.totalorder 1, %s19
      %p323 = scmp.lt.s32.totalorder %s19, 3
      %p324 = pnand %p322, %p323
      %p325 = pneg %p324
      // Predicated region
      $region45: #{simplenet_forward.1} parent=5 // pred_check
        _
      $region46: #{simplenet_forward.1} parent=5 // pred_check_branch
        %327 = sbr.rel (%p324) target = $region48
      $region47: #{simplenet_forward.1} parent=5 // pred_region
        %s328 = ssub.s32 %s19, 1
        %s329 = sand.u32 %s32, 1
        %s330 = scalar_lea.sflag [#allocation3], %s329
        %s331 = sand.u32 %s32, 1
        %s332 = smul.addr %s331, 512
        %s333 = scalar_lea.vmem [#allocation2], %s332
        // Predicated region
        $region49: #{simplenet_forward.1} parent=47 // pred_check
          %p334 = pneg %p45
        $region50: #{simplenet_forward.1} parent=47 // pred_check_branch
          %336 = sbr.rel (%p334) target = $region52
        $region51: #{simplenet_forward.1} parent=47 // pred_region
          %338 = dma.done %s330, 8192
        $region52: #{simplenet_forward.1} parent=47 // pred_fallthru
          _
        // Predicated region
        $region53: #{simplenet_forward.1} parent=47 // pred_check
          %p339 = pneg %p66
        $region54: #{simplenet_forward.1} parent=47 // pred_check_branch
          %341 = sbr.rel (%p339) target = $region56
        $region55: #{simplenet_forward.1} parent=47 // pred_region
          %343 = dma.done [#allocation5], 9216
        $region56: #{simplenet_forward.1} parent=47 // pred_fallthru
          _
        // Predicated region
        $region57: #{simplenet_forward.1} parent=47 // pred_check
          %p344 = pneg %p87
        $region58: #{simplenet_forward.1} parent=47 // pred_check_branch
          %346 = sbr.rel (%p344) target = $region60
        $region59: #{simplenet_forward.1} parent=47 // pred_region
          %348 = dma.done [#allocation5], 9216
        $region60: #{simplenet_forward.1} parent=47 // pred_fallthru
          _
        // Predicated region
        $region61: #{simplenet_forward.1} parent=47 // pred_check
          %p349 = pneg %p108
        $region62: #{simplenet_forward.1} parent=47 // pred_check_branch
          %351 = sbr.rel (%p349) target = $region64
        $region63: #{simplenet_forward.1} parent=47 // pred_region
          %353 = dma.done [#allocation8], 9216
        $region64: #{simplenet_forward.1} parent=47 // pred_fallthru
          _
        // Predicated region
        $region65: #{simplenet_forward.1} parent=47 // pred_check
          %p354 = pneg %p129
        $region66: #{simplenet_forward.1} parent=47 // pred_check_branch
          %356 = sbr.rel (%p354) target = $region68
        $region67: #{simplenet_forward.1} parent=47 // pred_region
          %358 = dma.done [#allocation8], 73728
        $region68: #{simplenet_forward.1} parent=47 // pred_fallthru
          _
        // Predicated region
        $region69: #{simplenet_forward.1} parent=47 // pred_check
          %p359 = pneg %p150
        $region70: #{simplenet_forward.1} parent=47 // pred_check_branch
          %361 = sbr.rel (%p359) target = $region72
        $region71: #{simplenet_forward.1} parent=47 // pred_region
          %363 = dma.done [#allocation11], 4608
        $region72: #{simplenet_forward.1} parent=47 // pred_fallthru
          _
        // Predicated region
        $region73: #{simplenet_forward.1} parent=47 // pred_check
          %p364 = pneg %p171
        $region74: #{simplenet_forward.1} parent=47 // pred_check_branch
          %366 = sbr.rel (%p364) target = $region76
        $region75: #{simplenet_forward.1} parent=47 // pred_region
          %368 = dma.done [#allocation11], 2304
        $region76: #{simplenet_forward.1} parent=47 // pred_fallthru
          _
        %s369 = sand.u32 %s32, 1
        %s370 = scalar_lea.sflag [#allocation3], %s369
        %s371 = sand.u32 %s32, 1
        %s372 = smul.addr %s371, 512
        %s373 = scalar_lea.vmem [#allocation2], %s372
        %p374 = pneg %p45
        %p375 = pneg %p42
        %p376 = pneg %p66
        %p377 = pneg %p63
        %p378 = pneg %p87
        %p379 = pneg %p84
        %p380 = pneg %p108
        %p381 = pneg %p105
        %p382 = pneg %p129
        %p383 = pneg %p126
        %p384 = pneg %p150
        %p385 = pneg %p147
        %p386 = pneg %p171
        %p387 = pneg %p168
        %p388 = pneg %p197
        %p389 = pneg %p194
        %s390 = smul.u32 2, %s24
        %p391 = scmp.lt.s32.totalorder %s390, 3
        %s392 = scalar_select %p391, %s390, 3
        %s393 = smul.addr %s392, 8
        %s394 = scalar_lea.vmem %s7, %s393
        %s395 = smul.u32 64, %s24
        %s396 = smul.u32 2, %s24
        %p397 = scmp.lt.s32.totalorder %s396, 3
        %s398 = scalar_select %p397, %s396, 3
        %s399 = smul.addr %s398, 8
        %s400 = scalar_lea.vmem %s7, %s399
        %s401 = smul.u32 2, %s24
        %v402 = vld [vmem:[%s333] sm:$0xff]
        %v403 = vld [vmem:[%s333 + $0x8] sm:$0xff]
        %v404 = vld [vmem:[%s333 + $0x10] sm:$0xff]
        %v405 = vld [vmem:[%s333 + $0x18] sm:$0xff]
        %v406 = vld [vmem:[%s333 + $0x20] sm:$0xff]
        %v407 = vld [vmem:[%s333 + $0x28] sm:$0xff]
        %v408 = vld [vmem:[%s333 + $0x30] sm:$0xff]
        %v409 = vld [vmem:[%s333 + $0x38] sm:$0xff]
        %v410 = vld [vmem:[%s333 + $0x40] sm:$0xff]
        %v411 = vld [vmem:[%s333 + $0x48] sm:$0xff]
        %v412 = vld [vmem:[%s333 + $0x50] sm:$0xff]
        %v413 = vld [vmem:[%s333 + $0x58] sm:$0xff]
        %v414 = vld [vmem:[%s333 + $0x60] sm:$0xff]
        %v415 = vld [vmem:[%s333 + $0x68] sm:$0xff]
        %v416 = vld [vmem:[%s333 + $0x70] sm:$0xff]
        %v417 = vld [vmem:[%s333 + $0x78] sm:$0xff]
        %v418 = vld [vmem:[%s333 + $0x80] sm:$0xff]
        %v419 = vld [vmem:[%s333 + $0x88] sm:$0xff]
        %v420 = vld [vmem:[%s333 + $0x90] sm:$0xff]
        %v421 = vld [vmem:[%s333 + $0x98] sm:$0xff]
        %v422 = vld [vmem:[%s333 + $0xa0] sm:$0xff]
        %v423 = vld [vmem:[%s333 + $0xa8] sm:$0xff]
        %v424 = vld [vmem:[%s333 + $0xb0] sm:$0xff]
        %v425 = vld [vmem:[%s333 + $0xb8] sm:$0xff]
        %v426 = vld [vmem:[%s333 + $0xc0] sm:$0xff]
        %v427 = vld [vmem:[%s333 + $0xc8] sm:$0xff]
        %v428 = vld [vmem:[%s333 + $0xd0] sm:$0xff]
        %v429 = vld [vmem:[%s333 + $0xd8] sm:$0xff]
        %v430 = vld [vmem:[%s333 + $0xe0] sm:$0xff]
        %v431 = vld [vmem:[%s333 + $0xe8] sm:$0xff]
        %v432 = vld [vmem:[%s333 + $0xf0] sm:$0xff]
        %v433 = vld [vmem:[%s333 + $0xf8] sm:$0xff]
        %v434 = vld [vmem:[%s333 + $0x100] sm:$0xff]
        %v435 = vld [vmem:[%s333 + $0x108] sm:$0xff]
        %v436 = vld [vmem:[%s333 + $0x110] sm:$0xff]
        %v437 = vld [vmem:[%s333 + $0x118] sm:$0xff]
        %v438 = vld [vmem:[%s333 + $0x120] sm:$0xff]
        %v439 = vld [vmem:[%s333 + $0x128] sm:$0xff]
        %v440 = vld [vmem:[%s333 + $0x130] sm:$0xff]
        %v441 = vld [vmem:[%s333 + $0x138] sm:$0xff]
        %v442 = vld [vmem:[%s333 + $0x140] sm:$0xff]
        %v443 = vld [vmem:[%s333 + $0x148] sm:$0xff]
        %v444 = vld [vmem:[%s333 + $0x150] sm:$0xff]
        %v445 = vld [vmem:[%s333 + $0x158] sm:$0xff]
        %v446 = vld [vmem:[%s333 + $0x160] sm:$0xff]
        %v447 = vld [vmem:[%s333 + $0x168] sm:$0xff]
        %v448 = vld [vmem:[%s333 + $0x170] sm:$0xff]
        %v449 = vld [vmem:[%s333 + $0x178] sm:$0xff]
        %v450 = vld [vmem:[%s333 + $0x180] sm:$0xff]
        %v451 = vld [vmem:[%s333 + $0x188] sm:$0xff]
        %v452 = vld [vmem:[%s333 + $0x190] sm:$0xff]
        %v453 = vld [vmem:[%s333 + $0x198] sm:$0xff]
        %v454 = vld [vmem:[%s333 + $0x1a0] sm:$0xff]
        %v455 = vld [vmem:[%s333 + $0x1a8] sm:$0xff]
        %v456 = vld [vmem:[%s333 + $0x1b0] sm:$0xff]
        %v457 = vld [vmem:[%s333 + $0x1b8] sm:$0xff]
        %v458 = vld [vmem:[%s333 + $0x1c0] sm:$0xff]
        %v459 = vld [vmem:[%s333 + $0x1c8] sm:$0xff]
        %v460 = vld [vmem:[%s333 + $0x1d0] sm:$0xff]
        %v461 = vld [vmem:[%s333 + $0x1d8] sm:$0xff]
        %v462 = vld [vmem:[%s333 + $0x1e0] sm:$0xff]
        %v463 = vld [vmem:[%s333 + $0x1e8] sm:$0xff]
        %v464 = vld [vmem:[%s333 + $0x1f0] sm:$0xff]
        %v465 = vld [vmem:[%s333 + $0x1f8] sm:$0xff]
        %v466 = vld [vmem:[#allocation9] sm:$0xff]
        %v467 = vld [vmem:[#allocation9 + $0x8] sm:$0xff]
        %v468 = vld [vmem:[#allocation9 + $0x10] sm:$0xff]
        %v469 = vld [vmem:[#allocation9 + $0x18] sm:$0xff]
        %v470 = vld [vmem:[#allocation9 + $0x20] sm:$0xff]
        %v471 = vld [vmem:[#allocation9 + $0x28] sm:$0xff]
        %v472 = vld [vmem:[#allocation9 + $0x30] sm:$0xff]
        %v473 = vld [vmem:[#allocation9 + $0x38] sm:$0xff]
        %v474 = vld [vmem:[#allocation9 + $0x40] sm:$0xff]
        %v475 = vld [vmem:[#allocation9 + $0x48] sm:$0xff]
        %v476 = vld [vmem:[#allocation9 + $0x50] sm:$0xff]
        %v477 = vld [vmem:[#allocation9 + $0x58] sm:$0xff]
        %v478 = vld [vmem:[#allocation9 + $0x60] sm:$0xff]
        %v479 = vld [vmem:[#allocation9 + $0x68] sm:$0xff]
        %v480 = vld [vmem:[#allocation9 + $0x70] sm:$0xff]
        %v481 = vld [vmem:[#allocation9 + $0x78] sm:$0xff]
        %v482 = vld [vmem:[#allocation9 + $0x80] sm:$0xff]
        %v483 = vld [vmem:[#allocation9 + $0x88] sm:$0xff]
        %v484 = vld [vmem:[#allocation9 + $0x90] sm:$0xff]
        %v485 = vld [vmem:[#allocation9 + $0x98] sm:$0xff]
        %v486 = vld [vmem:[#allocation9 + $0xa0] sm:$0xff]
        %v487 = vld [vmem:[#allocation9 + $0xa8] sm:$0xff]
        %v488 = vld [vmem:[#allocation9 + $0xb0] sm:$0xff]
        %v489 = vld [vmem:[#allocation9 + $0xb8] sm:$0xff]
        %v490 = vld [vmem:[#allocation9 + $0xc0] sm:$0xff]
        %v491 = vld [vmem:[#allocation9 + $0xc8] sm:$0xff]
        %v492 = vld [vmem:[#allocation9 + $0xd0] sm:$0xff]
        %v493 = vld [vmem:[#allocation9 + $0xd8] sm:$0xff]
        %v494 = vld [vmem:[#allocation9 + $0xe0] sm:$0xff]
        %v495 = vld [vmem:[#allocation9 + $0xe8] sm:$0xff]
        %v496 = vld [vmem:[#allocation9 + $0xf0] sm:$0xff]
        %v497 = vld [vmem:[#allocation9 + $0xf8] sm:$0xff]
        %v498 = vld [vmem:[#allocation9 + $0x100] sm:$0xff]
        %v499 = vld [vmem:[#allocation9 + $0x108] sm:$0xff]
        %v500 = vld [vmem:[#allocation9 + $0x110] sm:$0xff]
        %v501 = vld [vmem:[#allocation9 + $0x118] sm:$0xff]
        %v502 = vld [vmem:[#allocation9 + $0x120] sm:$0xff]
        %v503 = vld [vmem:[#allocation9 + $0x128] sm:$0xff]
        %v504 = vld [vmem:[#allocation9 + $0x130] sm:$0xff]
        %v505 = vld [vmem:[#allocation9 + $0x138] sm:$0xff]
        %v506 = vld [vmem:[#allocation9 + $0x140] sm:$0xff]
        %v507 = vld [vmem:[#allocation9 + $0x148] sm:$0xff]
        %v508 = vld [vmem:[#allocation9 + $0x150] sm:$0xff]
        %v509 = vld [vmem:[#allocation9 + $0x158] sm:$0xff]
        %v510 = vld [vmem:[#allocation9 + $0x160] sm:$0xff]
        %v511 = vld [vmem:[#allocation9 + $0x168] sm:$0xff]
        %v512 = vld [vmem:[#allocation9 + $0x170] sm:$0xff]
        %v513 = vld [vmem:[#allocation9 + $0x178] sm:$0xff]
        %v514 = vld [vmem:[#allocation9 + $0x180] sm:$0xff]
        %v515 = vld [vmem:[#allocation9 + $0x188] sm:$0xff]
        %v516 = vld [vmem:[#allocation9 + $0x190] sm:$0xff]
        %v517 = vld [vmem:[#allocation9 + $0x198] sm:$0xff]
        %v518 = vld [vmem:[#allocation9 + $0x1a0] sm:$0xff]
        %v519 = vld [vmem:[#allocation9 + $0x1a8] sm:$0xff]
        %v520 = vld [vmem:[#allocation9 + $0x1b0] sm:$0xff]
        %v521 = vld [vmem:[#allocation9 + $0x1b8] sm:$0xff]
        %v522 = vld [vmem:[#allocation9 + $0x1c0] sm:$0xff]
        %v523 = vld [vmem:[#allocation9 + $0x1c8] sm:$0xff]
        %v524 = vld [vmem:[#allocation9 + $0x1d0] sm:$0xff]
        %v525 = vld [vmem:[#allocation9 + $0x1d8] sm:$0xff]
        %v526 = vld [vmem:[#allocation9 + $0x1e0] sm:$0xff]
        %v527 = vld [vmem:[#allocation9 + $0x1e8] sm:$0xff]
        %v528 = vld [vmem:[#allocation9 + $0x1f0] sm:$0xff]
        %v529 = vld [vmem:[#allocation9 + $0x1f8] sm:$0xff]
        %v530 = vld [vmem:[#allocation9 + $0x200] sm:$0xff]
        %v531 = vld [vmem:[#allocation9 + $0x208] sm:$0xff]
        %v532 = vld [vmem:[#allocation9 + $0x210] sm:$0xff]
        %v533 = vld [vmem:[#allocation9 + $0x218] sm:$0xff]
        %v534 = vld [vmem:[#allocation9 + $0x220] sm:$0xff]
        %v535 = vld [vmem:[#allocation9 + $0x228] sm:$0xff]
        %v536 = vld [vmem:[#allocation9 + $0x230] sm:$0xff]
        %v537 = vld [vmem:[#allocation9 + $0x238] sm:$0xff]
        %v538 = vld [vmem:[#allocation9 + $0x240] sm:$0xff]
        %v539 = vld [vmem:[#allocation9 + $0x248] sm:$0xff]
        %v540 = vld [vmem:[#allocation9 + $0x250] sm:$0xff]
        %v541 = vld [vmem:[#allocation9 + $0x258] sm:$0xff]
        %v542 = vld [vmem:[#allocation9 + $0x260] sm:$0xff]
        %v543 = vld [vmem:[#allocation9 + $0x268] sm:$0xff]
        %v544 = vld [vmem:[#allocation9 + $0x270] sm:$0xff]
        %v545 = vld [vmem:[#allocation9 + $0x278] sm:$0xff]
        %v546 = vld [vmem:[#allocation9 + $0x280] sm:$0xff]
        %v547 = vld [vmem:[#allocation9 + $0x288] sm:$0xff]
        %v548 = vld [vmem:[#allocation9 + $0x290] sm:$0xff]
        %v549 = vld [vmem:[#allocation9 + $0x298] sm:$0xff]
        %v550 = vld [vmem:[#allocation9 + $0x2a0] sm:$0xff]
        %v551 = vld [vmem:[#allocation9 + $0x2a8] sm:$0xff]
        %v552 = vld [vmem:[#allocation9 + $0x2b0] sm:$0xff]
        %v553 = vld [vmem:[#allocation9 + $0x2b8] sm:$0xff]
        %v554 = vld [vmem:[#allocation9 + $0x2c0] sm:$0xff]
        %v555 = vld [vmem:[#allocation9 + $0x2c8] sm:$0xff]
        %v556 = vld [vmem:[#allocation9 + $0x2d0] sm:$0xff]
        %v557 = vld [vmem:[#allocation9 + $0x2d8] sm:$0xff]
        %v558 = vld [vmem:[#allocation9 + $0x2e0] sm:$0xff]
        %v559 = vld [vmem:[#allocation9 + $0x2e8] sm:$0xff]
        %v560 = vld [vmem:[#allocation9 + $0x2f0] sm:$0xff]
        %v561 = vld [vmem:[#allocation9 + $0x2f8] sm:$0xff]
        %v562 = vld [vmem:[#allocation9 + $0x300] sm:$0xff]
        %v563 = vld [vmem:[#allocation9 + $0x308] sm:$0xff]
        %v564 = vld [vmem:[#allocation9 + $0x310] sm:$0xff]
        %v565 = vld [vmem:[#allocation9 + $0x318] sm:$0xff]
        %v566 = vld [vmem:[#allocation9 + $0x320] sm:$0xff]
        %v567 = vld [vmem:[#allocation9 + $0x328] sm:$0xff]
        %v568 = vld [vmem:[#allocation9 + $0x330] sm:$0xff]
        %v569 = vld [vmem:[#allocation9 + $0x338] sm:$0xff]
        %v570 = vld [vmem:[#allocation9 + $0x340] sm:$0xff]
        %v571 = vld [vmem:[#allocation9 + $0x348] sm:$0xff]
        %v572 = vld [vmem:[#allocation9 + $0x350] sm:$0xff]
        %v573 = vld [vmem:[#allocation9 + $0x358] sm:$0xff]
        %v574 = vld [vmem:[#allocation9 + $0x360] sm:$0xff]
        %v575 = vld [vmem:[#allocation9 + $0x368] sm:$0xff]
        %v576 = vld [vmem:[#allocation9 + $0x370] sm:$0xff]
        %v577 = vld [vmem:[#allocation9 + $0x378] sm:$0xff]
        %v578 = vld [vmem:[#allocation9 + $0x380] sm:$0xff]
        %v579 = vld [vmem:[#allocation9 + $0x388] sm:$0xff]
        %v580 = vld [vmem:[#allocation9 + $0x390] sm:$0xff]
        %v581 = vld [vmem:[#allocation9 + $0x398] sm:$0xff]
        %v582 = vld [vmem:[#allocation9 + $0x3a0] sm:$0xff]
        %v583 = vld [vmem:[#allocation9 + $0x3a8] sm:$0xff]
        %v584 = vld [vmem:[#allocation9 + $0x3b0] sm:$0xff]
        %v585 = vld [vmem:[#allocation9 + $0x3b8] sm:$0xff]
        %v586 = vld [vmem:[#allocation9 + $0x3c0] sm:$0xff]
        %v587 = vld [vmem:[#allocation9 + $0x3c8] sm:$0xff]
        %v588 = vld [vmem:[#allocation9 + $0x3d0] sm:$0xff]
        %v589 = vld [vmem:[#allocation9 + $0x3d8] sm:$0xff]
        %v590 = vld [vmem:[#allocation9 + $0x3e0] sm:$0xff]
        %v591 = vld [vmem:[#allocation9 + $0x3e8] sm:$0xff]
        %v592 = vld [vmem:[#allocation9 + $0x3f0] sm:$0xff]
        %v593 = vld [vmem:[#allocation9 + $0x3f8] sm:$0xff]
        %v594 = vld [vmem:[#allocation9 + $0x400] sm:$0xff]
        %v595 = vld [vmem:[#allocation9 + $0x408] sm:$0xff]
        %v596 = vld [vmem:[#allocation9 + $0x410] sm:$0xff]
        %v597 = vld [vmem:[#allocation9 + $0x418] sm:$0xff]
        %v598 = vld [vmem:[#allocation9 + $0x420] sm:$0xff]
        %v599 = vld [vmem:[#allocation9 + $0x428] sm:$0xff]
        %v600 = vld [vmem:[#allocation9 + $0x430] sm:$0xff]
        %v601 = vld [vmem:[#allocation9 + $0x438] sm:$0xff]
        %v602 = vld [vmem:[#allocation9 + $0x440] sm:$0xff]
        %v603 = vld [vmem:[#allocation9 + $0x448] sm:$0xff]
        %v604 = vld [vmem:[#allocation9 + $0x450] sm:$0xff]
        %v605 = vld [vmem:[#allocation9 + $0x458] sm:$0xff]
        %v606 = vld [vmem:[#allocation9 + $0x460] sm:$0xff]
        %v607 = vld [vmem:[#allocation9 + $0x468] sm:$0xff]
        %v608 = vld [vmem:[#allocation9 + $0x470] sm:$0xff]
        %v609 = vld [vmem:[#allocation9 + $0x478] sm:$0xff]
        %v610 = vld [vmem:[#allocation9 + $0x480] sm:$0xff]
        %v611 = vld [vmem:[#allocation9 + $0x488] sm:$0xff]
        %v612 = vld [vmem:[#allocation9 + $0x490] sm:$0xff]
        %v613 = vld [vmem:[#allocation9 + $0x498] sm:$0xff]
        %v614 = vld [vmem:[#allocation9 + $0x4a0] sm:$0xff]
        %v615 = vld [vmem:[#allocation9 + $0x4a8] sm:$0xff]
        %v616 = vld [vmem:[#allocation9 + $0x4b0] sm:$0xff]
        %v617 = vld [vmem:[#allocation9 + $0x4b8] sm:$0xff]
        %v618 = vld [vmem:[#allocation9 + $0x4c0] sm:$0xff]
        %v619 = vld [vmem:[#allocation9 + $0x4c8] sm:$0xff]
        %v620 = vld [vmem:[#allocation9 + $0x4d0] sm:$0xff]
        %v621 = vld [vmem:[#allocation9 + $0x4d8] sm:$0xff]
        %v622 = vld [vmem:[#allocation9 + $0x4e0] sm:$0xff]
        %v623 = vld [vmem:[#allocation9 + $0x4e8] sm:$0xff]
        %v624 = vld [vmem:[#allocation9 + $0x4f0] sm:$0xff]
        %v625 = vld [vmem:[#allocation9 + $0x4f8] sm:$0xff]
        %v626 = vld [vmem:[#allocation9 + $0x500] sm:$0xff]
        %v627 = vld [vmem:[#allocation9 + $0x508] sm:$0xff]
        %v628 = vld [vmem:[#allocation9 + $0x510] sm:$0xff]
        %v629 = vld [vmem:[#allocation9 + $0x518] sm:$0xff]
        %v630 = vld [vmem:[#allocation9 + $0x520] sm:$0xff]
        %v631 = vld [vmem:[#allocation9 + $0x528] sm:$0xff]
        %v632 = vld [vmem:[#allocation9 + $0x530] sm:$0xff]
        %v633 = vld [vmem:[#allocation9 + $0x538] sm:$0xff]
        %v634 = vld [vmem:[#allocation9 + $0x540] sm:$0xff]
        %v635 = vld [vmem:[#allocation9 + $0x548] sm:$0xff]
        %v636 = vld [vmem:[#allocation9 + $0x550] sm:$0xff]
        %v637 = vld [vmem:[#allocation9 + $0x558] sm:$0xff]
        %v638 = vld [vmem:[#allocation9 + $0x560] sm:$0xff]
        %v639 = vld [vmem:[#allocation9 + $0x568] sm:$0xff]
        %v640 = vld [vmem:[#allocation9 + $0x570] sm:$0xff]
        %v641 = vld [vmem:[#allocation9 + $0x578] sm:$0xff]
        %v642 = vld [vmem:[#allocation9 + $0x580] sm:$0xff]
        %v643 = vld [vmem:[#allocation9 + $0x588] sm:$0xff]
        %v644 = vld [vmem:[#allocation9 + $0x590] sm:$0xff]
        %v645 = vld [vmem:[#allocation9 + $0x598] sm:$0xff]
        %v646 = vld [vmem:[#allocation9 + $0x5a0] sm:$0xff]
        %v647 = vld [vmem:[#allocation9 + $0x5a8] sm:$0xff]
        %v648 = vld [vmem:[#allocation9 + $0x5b0] sm:$0xff]
        %v649 = vld [vmem:[#allocation9 + $0x5b8] sm:$0xff]
        %v650 = vld [vmem:[#allocation9 + $0x5c0] sm:$0xff]
        %v651 = vld [vmem:[#allocation9 + $0x5c8] sm:$0xff]
        %v652 = vld [vmem:[#allocation9 + $0x5d0] sm:$0xff]
        %v653 = vld [vmem:[#allocation9 + $0x5d8] sm:$0xff]
        %v654 = vld [vmem:[#allocation9 + $0x5e0] sm:$0xff]
        %v655 = vld [vmem:[#allocation9 + $0x5e8] sm:$0xff]
        %v656 = vld [vmem:[#allocation9 + $0x5f0] sm:$0xff]
        %v657 = vld [vmem:[#allocation9 + $0x5f8] sm:$0xff]
        %v658 = vld [vmem:[#allocation9 + $0x600] sm:$0xff]
        %v659 = vld [vmem:[#allocation9 + $0x608] sm:$0xff]
        %v660 = vld [vmem:[#allocation9 + $0x610] sm:$0xff]
        %v661 = vld [vmem:[#allocation9 + $0x618] sm:$0xff]
        %v662 = vld [vmem:[#allocation9 + $0x620] sm:$0xff]
        %v663 = vld [vmem:[#allocation9 + $0x628] sm:$0xff]
        %v664 = vld [vmem:[#allocation9 + $0x630] sm:$0xff]
        %v665 = vld [vmem:[#allocation9 + $0x638] sm:$0xff]
        %v666 = vld [vmem:[#allocation9 + $0x640] sm:$0xff]
        %v667 = vld [vmem:[#allocation9 + $0x648] sm:$0xff]
        %v668 = vld [vmem:[#allocation9 + $0x650] sm:$0xff]
        %v669 = vld [vmem:[#allocation9 + $0x658] sm:$0xff]
        %v670 = vld [vmem:[#allocation9 + $0x660] sm:$0xff]
        %v671 = vld [vmem:[#allocation9 + $0x668] sm:$0xff]
        %v672 = vld [vmem:[#allocation9 + $0x670] sm:$0xff]
        %v673 = vld [vmem:[#allocation9 + $0x678] sm:$0xff]
        %v674 = vld [vmem:[#allocation9 + $0x680] sm:$0xff]
        %v675 = vld [vmem:[#allocation9 + $0x688] sm:$0xff]
        %v676 = vld [vmem:[#allocation9 + $0x690] sm:$0xff]
        %v677 = vld [vmem:[#allocation9 + $0x698] sm:$0xff]
        %v678 = vld [vmem:[#allocation9 + $0x6a0] sm:$0xff]
        %v679 = vld [vmem:[#allocation9 + $0x6a8] sm:$0xff]
        %v680 = vld [vmem:[#allocation9 + $0x6b0] sm:$0xff]
        %v681 = vld [vmem:[#allocation9 + $0x6b8] sm:$0xff]
        %v682 = vld [vmem:[#allocation9 + $0x6c0] sm:$0xff]
        %v683 = vld [vmem:[#allocation9 + $0x6c8] sm:$0xff]
        %v684 = vld [vmem:[#allocation9 + $0x6d0] sm:$0xff]
        %v685 = vld [vmem:[#allocation9 + $0x6d8] sm:$0xff]
        %v686 = vld [vmem:[#allocation9 + $0x6e0] sm:$0xff]
        %v687 = vld [vmem:[#allocation9 + $0x6e8] sm:$0xff]
        %v688 = vld [vmem:[#allocation9 + $0x6f0] sm:$0xff]
        %v689 = vld [vmem:[#allocation9 + $0x6f8] sm:$0xff]
        %v690 = vld [vmem:[#allocation9 + $0x700] sm:$0xff]
        %v691 = vld [vmem:[#allocation9 + $0x708] sm:$0xff]
        %v692 = vld [vmem:[#allocation9 + $0x710] sm:$0xff]
        %v693 = vld [vmem:[#allocation9 + $0x718] sm:$0xff]
        %v694 = vld [vmem:[#allocation9 + $0x720] sm:$0xff]
        %v695 = vld [vmem:[#allocation9 + $0x728] sm:$0xff]
        %v696 = vld [vmem:[#allocation9 + $0x730] sm:$0xff]
        %v697 = vld [vmem:[#allocation9 + $0x738] sm:$0xff]
        %v698 = vld [vmem:[#allocation9 + $0x740] sm:$0xff]
        %v699 = vld [vmem:[#allocation9 + $0x748] sm:$0xff]
        %v700 = vld [vmem:[#allocation9 + $0x750] sm:$0xff]
        %v701 = vld [vmem:[#allocation9 + $0x758] sm:$0xff]
        %v702 = vld [vmem:[#allocation9 + $0x760] sm:$0xff]
        %v703 = vld [vmem:[#allocation9 + $0x768] sm:$0xff]
        %v704 = vld [vmem:[#allocation9 + $0x770] sm:$0xff]
        %v705 = vld [vmem:[#allocation9 + $0x778] sm:$0xff]
        %v706 = vld [vmem:[#allocation9 + $0x780] sm:$0xff]
        %v707 = vld [vmem:[#allocation9 + $0x788] sm:$0xff]
        %v708 = vld [vmem:[#allocation9 + $0x790] sm:$0xff]
        %v709 = vld [vmem:[#allocation9 + $0x798] sm:$0xff]
        %v710 = vld [vmem:[#allocation9 + $0x7a0] sm:$0xff]
        %v711 = vld [vmem:[#allocation9 + $0x7a8] sm:$0xff]
        %v712 = vld [vmem:[#allocation9 + $0x7b0] sm:$0xff]
        %v713 = vld [vmem:[#allocation9 + $0x7b8] sm:$0xff]
        %v714 = vld [vmem:[#allocation9 + $0x7c0] sm:$0xff]
        %v715 = vld [vmem:[#allocation9 + $0x7c8] sm:$0xff]
        %v716 = vld [vmem:[#allocation9 + $0x7d0] sm:$0xff]
        %v717 = vld [vmem:[#allocation9 + $0x7d8] sm:$0xff]
        %v718 = vld [vmem:[#allocation9 + $0x7e0] sm:$0xff]
        %v719 = vld [vmem:[#allocation9 + $0x7e8] sm:$0xff]
        %v720 = vld [vmem:[#allocation9 + $0x7f0] sm:$0xff]
        %v721 = vld [vmem:[#allocation9 + $0x7f8] sm:$0xff]
        %v722 = vld [vmem:[#allocation9 + $0x800] sm:$0xff]
        %v723 = vld [vmem:[#allocation9 + $0x808] sm:$0xff]
        %v724 = vld [vmem:[#allocation9 + $0x810] sm:$0xff]
        %v725 = vld [vmem:[#allocation9 + $0x818] sm:$0xff]
        %v726 = vld [vmem:[#allocation9 + $0x820] sm:$0xff]
        %v727 = vld [vmem:[#allocation9 + $0x828] sm:$0xff]
        %v728 = vld [vmem:[#allocation9 + $0x830] sm:$0xff]
        %v729 = vld [vmem:[#allocation9 + $0x838] sm:$0xff]
        %v730 = vld [vmem:[#allocation9 + $0x840] sm:$0xff]
        %v731 = vld [vmem:[#allocation9 + $0x848] sm:$0xff]
        %v732 = vld [vmem:[#allocation9 + $0x850] sm:$0xff]
        %v733 = vld [vmem:[#allocation9 + $0x858] sm:$0xff]
        %v734 = vld [vmem:[#allocation9 + $0x860] sm:$0xff]
        %v735 = vld [vmem:[#allocation9 + $0x868] sm:$0xff]
        %v736 = vld [vmem:[#allocation9 + $0x870] sm:$0xff]
        %v737 = vld [vmem:[#allocation9 + $0x878] sm:$0xff]
        %v738 = vld [vmem:[#allocation9 + $0x880] sm:$0xff]
        %v739 = vld [vmem:[#allocation9 + $0x888] sm:$0xff]
        %v740 = vld [vmem:[#allocation9 + $0x890] sm:$0xff]
        %v741 = vld [vmem:[#allocation9 + $0x898] sm:$0xff]
        %v742 = vld [vmem:[#allocation9 + $0x8a0] sm:$0xff]
        %v743 = vld [vmem:[#allocation9 + $0x8a8] sm:$0xff]
        %v744 = vld [vmem:[#allocation9 + $0x8b0] sm:$0xff]
        %v745 = vld [vmem:[#allocation9 + $0x8b8] sm:$0xff]
        %v746 = vld [vmem:[#allocation9 + $0x8c0] sm:$0xff]
        %v747 = vld [vmem:[#allocation9 + $0x8c8] sm:$0xff]
        %v748 = vld [vmem:[#allocation9 + $0x8d0] sm:$0xff]
        %v749 = vld [vmem:[#allocation9 + $0x8d8] sm:$0xff]
        %v750 = vld [vmem:[#allocation9 + $0x8e0] sm:$0xff]
        %v751 = vld [vmem:[#allocation9 + $0x8e8] sm:$0xff]
        %v752 = vld [vmem:[#allocation9 + $0x8f0] sm:$0xff]
        %v753 = vld [vmem:[#allocation9 + $0x8f8] sm:$0xff]
        %v754 = vld [vmem:[#allocation9 + $0x900] sm:$0xff]
        %v755 = vld [vmem:[#allocation9 + $0x908] sm:$0xff]
        %v756 = vld [vmem:[#allocation9 + $0x910] sm:$0xff]
        %v757 = vld [vmem:[#allocation9 + $0x918] sm:$0xff]
        %v758 = vld [vmem:[#allocation9 + $0x920] sm:$0xff]
        %v759 = vld [vmem:[#allocation9 + $0x928] sm:$0xff]
        %v760 = vld [vmem:[#allocation9 + $0x930] sm:$0xff]
        %v761 = vld [vmem:[#allocation9 + $0x938] sm:$0xff]
        %v762 = vld [vmem:[#allocation9 + $0x940] sm:$0xff]
        %v763 = vld [vmem:[#allocation9 + $0x948] sm:$0xff]
        %v764 = vld [vmem:[#allocation9 + $0x950] sm:$0xff]
        %v765 = vld [vmem:[#allocation9 + $0x958] sm:$0xff]
        %v766 = vld [vmem:[#allocation9 + $0x960] sm:$0xff]
        %v767 = vld [vmem:[#allocation9 + $0x968] sm:$0xff]
        %v768 = vld [vmem:[#allocation9 + $0x970] sm:$0xff]
        %v769 = vld [vmem:[#allocation9 + $0x978] sm:$0xff]
        %v770 = vld [vmem:[#allocation9 + $0x980] sm:$0xff]
        %v771 = vld [vmem:[#allocation9 + $0x988] sm:$0xff]
        %v772 = vld [vmem:[#allocation9 + $0x990] sm:$0xff]
        %v773 = vld [vmem:[#allocation9 + $0x998] sm:$0xff]
        %v774 = vld [vmem:[#allocation9 + $0x9a0] sm:$0xff]
        %v775 = vld [vmem:[#allocation9 + $0x9a8] sm:$0xff]
        %v776 = vld [vmem:[#allocation9 + $0x9b0] sm:$0xff]
        %v777 = vld [vmem:[#allocation9 + $0x9b8] sm:$0xff]
        %v778 = vld [vmem:[#allocation9 + $0x9c0] sm:$0xff]
        %v779 = vld [vmem:[#allocation9 + $0x9c8] sm:$0xff]
        %v780 = vld [vmem:[#allocation9 + $0x9d0] sm:$0xff]
        %v781 = vld [vmem:[#allocation9 + $0x9d8] sm:$0xff]
        %v782 = vld [vmem:[#allocation9 + $0x9e0] sm:$0xff]
        %v783 = vld [vmem:[#allocation9 + $0x9e8] sm:$0xff]
        %v784 = vld [vmem:[#allocation9 + $0x9f0] sm:$0xff]
        %v785 = vld [vmem:[#allocation9 + $0x9f8] sm:$0xff]
        %v786 = vld [vmem:[#allocation9 + $0xa00] sm:$0xff]
        %v787 = vld [vmem:[#allocation9 + $0xa08] sm:$0xff]
        %v788 = vld [vmem:[#allocation9 + $0xa10] sm:$0xff]
        %v789 = vld [vmem:[#allocation9 + $0xa18] sm:$0xff]
        %v790 = vld [vmem:[#allocation9 + $0xa20] sm:$0xff]
        %v791 = vld [vmem:[#allocation9 + $0xa28] sm:$0xff]
        %v792 = vld [vmem:[#allocation9 + $0xa30] sm:$0xff]
        %v793 = vld [vmem:[#allocation9 + $0xa38] sm:$0xff]
        %v794 = vld [vmem:[#allocation9 + $0xa40] sm:$0xff]
        %v795 = vld [vmem:[#allocation9 + $0xa48] sm:$0xff]
        %v796 = vld [vmem:[#allocation9 + $0xa50] sm:$0xff]
        %v797 = vld [vmem:[#allocation9 + $0xa58] sm:$0xff]
        %v798 = vld [vmem:[#allocation9 + $0xa60] sm:$0xff]
        %v799 = vld [vmem:[#allocation9 + $0xa68] sm:$0xff]
        %v800 = vld [vmem:[#allocation9 + $0xa70] sm:$0xff]
        %v801 = vld [vmem:[#allocation9 + $0xa78] sm:$0xff]
        %v802 = vld [vmem:[#allocation9 + $0xa80] sm:$0xff]
        %v803 = vld [vmem:[#allocation9 + $0xa88] sm:$0xff]
        %v804 = vld [vmem:[#allocation9 + $0xa90] sm:$0xff]
        %v805 = vld [vmem:[#allocation9 + $0xa98] sm:$0xff]
        %v806 = vld [vmem:[#allocation9 + $0xaa0] sm:$0xff]
        %v807 = vld [vmem:[#allocation9 + $0xaa8] sm:$0xff]
        %v808 = vld [vmem:[#allocation9 + $0xab0] sm:$0xff]
        %v809 = vld [vmem:[#allocation9 + $0xab8] sm:$0xff]
        %v810 = vld [vmem:[#allocation9 + $0xac0] sm:$0xff]
        %v811 = vld [vmem:[#allocation9 + $0xac8] sm:$0xff]
        %v812 = vld [vmem:[#allocation9 + $0xad0] sm:$0xff]
        %v813 = vld [vmem:[#allocation9 + $0xad8] sm:$0xff]
        %v814 = vld [vmem:[#allocation9 + $0xae0] sm:$0xff]
        %v815 = vld [vmem:[#allocation9 + $0xae8] sm:$0xff]
        %v816 = vld [vmem:[#allocation9 + $0xaf0] sm:$0xff]
        %v817 = vld [vmem:[#allocation9 + $0xaf8] sm:$0xff]
        %v818 = vld [vmem:[#allocation9 + $0xb00] sm:$0xff]
        %v819 = vld [vmem:[#allocation9 + $0xb08] sm:$0xff]
        %v820 = vld [vmem:[#allocation9 + $0xb10] sm:$0xff]
        %v821 = vld [vmem:[#allocation9 + $0xb18] sm:$0xff]
        %v822 = vld [vmem:[#allocation9 + $0xb20] sm:$0xff]
        %v823 = vld [vmem:[#allocation9 + $0xb28] sm:$0xff]
        %v824 = vld [vmem:[#allocation9 + $0xb30] sm:$0xff]
        %v825 = vld [vmem:[#allocation9 + $0xb38] sm:$0xff]
        %v826 = vld [vmem:[#allocation9 + $0xb40] sm:$0xff]
        %v827 = vld [vmem:[#allocation9 + $0xb48] sm:$0xff]
        %v828 = vld [vmem:[#allocation9 + $0xb50] sm:$0xff]
        %v829 = vld [vmem:[#allocation9 + $0xb58] sm:$0xff]
        %v830 = vld [vmem:[#allocation9 + $0xb60] sm:$0xff]
        %v831 = vld [vmem:[#allocation9 + $0xb68] sm:$0xff]
        %v832 = vld [vmem:[#allocation9 + $0xb70] sm:$0xff]
        %v833 = vld [vmem:[#allocation9 + $0xb78] sm:$0xff]
        %v834 = vld [vmem:[#allocation9 + $0xb80] sm:$0xff]
        %v835 = vld [vmem:[#allocation9 + $0xb88] sm:$0xff]
        %v836 = vld [vmem:[#allocation9 + $0xb90] sm:$0xff]
        %v837 = vld [vmem:[#allocation9 + $0xb98] sm:$0xff]
        %v838 = vld [vmem:[#allocation9 + $0xba0] sm:$0xff]
        %v839 = vld [vmem:[#allocation9 + $0xba8] sm:$0xff]
        %v840 = vld [vmem:[#allocation9 + $0xbb0] sm:$0xff]
        %v841 = vld [vmem:[#allocation9 + $0xbb8] sm:$0xff]
        %v842 = vld [vmem:[#allocation9 + $0xbc0] sm:$0xff]
        %v843 = vld [vmem:[#allocation9 + $0xbc8] sm:$0xff]
        %v844 = vld [vmem:[#allocation9 + $0xbd0] sm:$0xff]
        %v845 = vld [vmem:[#allocation9 + $0xbd8] sm:$0xff]
        %v846 = vld [vmem:[#allocation9 + $0xbe0] sm:$0xff]
        %v847 = vld [vmem:[#allocation9 + $0xbe8] sm:$0xff]
        %v848 = vld [vmem:[#allocation9 + $0xbf0] sm:$0xff]
        %v849 = vld [vmem:[#allocation9 + $0xbf8] sm:$0xff]
        %v850 = vld [vmem:[#allocation9 + $0xc00] sm:$0xff]
        %v851 = vld [vmem:[#allocation9 + $0xc08] sm:$0xff]
        %v852 = vld [vmem:[#allocation9 + $0xc10] sm:$0xff]
        %v853 = vld [vmem:[#allocation9 + $0xc18] sm:$0xff]
        %v854 = vld [vmem:[#allocation9 + $0xc20] sm:$0xff]
        %v855 = vld [vmem:[#allocation9 + $0xc28] sm:$0xff]
        %v856 = vld [vmem:[#allocation9 + $0xc30] sm:$0xff]
        %v857 = vld [vmem:[#allocation9 + $0xc38] sm:$0xff]
        %v858 = vld [vmem:[#allocation9 + $0xc40] sm:$0xff]
        %v859 = vld [vmem:[#allocation9 + $0xc48] sm:$0xff]
        %v860 = vld [vmem:[#allocation9 + $0xc50] sm:$0xff]
        %v861 = vld [vmem:[#allocation9 + $0xc58] sm:$0xff]
        %v862 = vld [vmem:[#allocation9 + $0xc60] sm:$0xff]
        %v863 = vld [vmem:[#allocation9 + $0xc68] sm:$0xff]
        %v864 = vld [vmem:[#allocation9 + $0xc70] sm:$0xff]
        %v865 = vld [vmem:[#allocation9 + $0xc78] sm:$0xff]
        %v866 = vld [vmem:[#allocation9 + $0xc80] sm:$0xff]
        %v867 = vld [vmem:[#allocation9 + $0xc88] sm:$0xff]
        %v868 = vld [vmem:[#allocation9 + $0xc90] sm:$0xff]
        %v869 = vld [vmem:[#allocation9 + $0xc98] sm:$0xff]
        %v870 = vld [vmem:[#allocation9 + $0xca0] sm:$0xff]
        %v871 = vld [vmem:[#allocation9 + $0xca8] sm:$0xff]
        %v872 = vld [vmem:[#allocation9 + $0xcb0] sm:$0xff]
        %v873 = vld [vmem:[#allocation9 + $0xcb8] sm:$0xff]
        %v874 = vld [vmem:[#allocation9 + $0xcc0] sm:$0xff]
        %v875 = vld [vmem:[#allocation9 + $0xcc8] sm:$0xff]
        %v876 = vld [vmem:[#allocation9 + $0xcd0] sm:$0xff]
        %v877 = vld [vmem:[#allocation9 + $0xcd8] sm:$0xff]
        %v878 = vld [vmem:[#allocation9 + $0xce0] sm:$0xff]
        %v879 = vld [vmem:[#allocation9 + $0xce8] sm:$0xff]
        %v880 = vld [vmem:[#allocation9 + $0xcf0] sm:$0xff]
        %v881 = vld [vmem:[#allocation9 + $0xcf8] sm:$0xff]
        %v882 = vld [vmem:[#allocation9 + $0xd00] sm:$0xff]
        %v883 = vld [vmem:[#allocation9 + $0xd08] sm:$0xff]
        %v884 = vld [vmem:[#allocation9 + $0xd10] sm:$0xff]
        %v885 = vld [vmem:[#allocation9 + $0xd18] sm:$0xff]
        %v886 = vld [vmem:[#allocation9 + $0xd20] sm:$0xff]
        %v887 = vld [vmem:[#allocation9 + $0xd28] sm:$0xff]
        %v888 = vld [vmem:[#allocation9 + $0xd30] sm:$0xff]
        %v889 = vld [vmem:[#allocation9 + $0xd38] sm:$0xff]
        %v890 = vld [vmem:[#allocation9 + $0xd40] sm:$0xff]
        %v891 = vld [vmem:[#allocation9 + $0xd48] sm:$0xff]
        %v892 = vld [vmem:[#allocation9 + $0xd50] sm:$0xff]
        %v893 = vld [vmem:[#allocation9 + $0xd58] sm:$0xff]
        %v894 = vld [vmem:[#allocation9 + $0xd60] sm:$0xff]
        %v895 = vld [vmem:[#allocation9 + $0xd68] sm:$0xff]
        %v896 = vld [vmem:[#allocation9 + $0xd70] sm:$0xff]
        %v897 = vld [vmem:[#allocation9 + $0xd78] sm:$0xff]
        %v898 = vld [vmem:[#allocation9 + $0xd80] sm:$0xff]
        %v899 = vld [vmem:[#allocation9 + $0xd88] sm:$0xff]
        %v900 = vld [vmem:[#allocation9 + $0xd90] sm:$0xff]
        %v901 = vld [vmem:[#allocation9 + $0xd98] sm:$0xff]
        %v902 = vld [vmem:[#allocation9 + $0xda0] sm:$0xff]
        %v903 = vld [vmem:[#allocation9 + $0xda8] sm:$0xff]
        %v904 = vld [vmem:[#allocation9 + $0xdb0] sm:$0xff]
        %v905 = vld [vmem:[#allocation9 + $0xdb8] sm:$0xff]
        %v906 = vld [vmem:[#allocation9 + $0xdc0] sm:$0xff]
        %v907 = vld [vmem:[#allocation9 + $0xdc8] sm:$0xff]
        %v908 = vld [vmem:[#allocation9 + $0xdd0] sm:$0xff]
        %v909 = vld [vmem:[#allocation9 + $0xdd8] sm:$0xff]
        %v910 = vld [vmem:[#allocation9 + $0xde0] sm:$0xff]
        %v911 = vld [vmem:[#allocation9 + $0xde8] sm:$0xff]
        %v912 = vld [vmem:[#allocation9 + $0xdf0] sm:$0xff]
        %v913 = vld [vmem:[#allocation9 + $0xdf8] sm:$0xff]
        %v914 = vld [vmem:[#allocation9 + $0xe00] sm:$0xff]
        %v915 = vld [vmem:[#allocation9 + $0xe08] sm:$0xff]
        %v916 = vld [vmem:[#allocation9 + $0xe10] sm:$0xff]
        %v917 = vld [vmem:[#allocation9 + $0xe18] sm:$0xff]
        %v918 = vld [vmem:[#allocation9 + $0xe20] sm:$0xff]
        %v919 = vld [vmem:[#allocation9 + $0xe28] sm:$0xff]
        %v920 = vld [vmem:[#allocation9 + $0xe30] sm:$0xff]
        %v921 = vld [vmem:[#allocation9 + $0xe38] sm:$0xff]
        %v922 = vld [vmem:[#allocation9 + $0xe40] sm:$0xff]
        %v923 = vld [vmem:[#allocation9 + $0xe48] sm:$0xff]
        %v924 = vld [vmem:[#allocation9 + $0xe50] sm:$0xff]
        %v925 = vld [vmem:[#allocation9 + $0xe58] sm:$0xff]
        %v926 = vld [vmem:[#allocation9 + $0xe60] sm:$0xff]
        %v927 = vld [vmem:[#allocation9 + $0xe68] sm:$0xff]
        %v928 = vld [vmem:[#allocation9 + $0xe70] sm:$0xff]
        %v929 = vld [vmem:[#allocation9 + $0xe78] sm:$0xff]
        %v930 = vld [vmem:[#allocation9 + $0xe80] sm:$0xff]
        %v931 = vld [vmem:[#allocation9 + $0xe88] sm:$0xff]
        %v932 = vld [vmem:[#allocation9 + $0xe90] sm:$0xff]
        %v933 = vld [vmem:[#allocation9 + $0xe98] sm:$0xff]
        %v934 = vld [vmem:[#allocation9 + $0xea0] sm:$0xff]
        %v935 = vld [vmem:[#allocation9 + $0xea8] sm:$0xff]
        %v936 = vld [vmem:[#allocation9 + $0xeb0] sm:$0xff]
        %v937 = vld [vmem:[#allocation9 + $0xeb8] sm:$0xff]
        %v938 = vld [vmem:[#allocation9 + $0xec0] sm:$0xff]
        %v939 = vld [vmem:[#allocation9 + $0xec8] sm:$0xff]
        %v940 = vld [vmem:[#allocation9 + $0xed0] sm:$0xff]
        %v941 = vld [vmem:[#allocation9 + $0xed8] sm:$0xff]
        %v942 = vld [vmem:[#allocation9 + $0xee0] sm:$0xff]
        %v943 = vld [vmem:[#allocation9 + $0xee8] sm:$0xff]
        %v944 = vld [vmem:[#allocation9 + $0xef0] sm:$0xff]
        %v945 = vld [vmem:[#allocation9 + $0xef8] sm:$0xff]
        %v946 = vld [vmem:[#allocation9 + $0xf00] sm:$0xff]
        %v947 = vld [vmem:[#allocation9 + $0xf08] sm:$0xff]
        %v948 = vld [vmem:[#allocation9 + $0xf10] sm:$0xff]
        %v949 = vld [vmem:[#allocation9 + $0xf18] sm:$0xff]
        %v950 = vld [vmem:[#allocation9 + $0xf20] sm:$0xff]
        %v951 = vld [vmem:[#allocation9 + $0xf28] sm:$0xff]
        %v952 = vld [vmem:[#allocation9 + $0xf30] sm:$0xff]
        %v953 = vld [vmem:[#allocation9 + $0xf38] sm:$0xff]
        %v954 = vld [vmem:[#allocation9 + $0xf40] sm:$0xff]
        %v955 = vld [vmem:[#allocation9 + $0xf48] sm:$0xff]
        %v956 = vld [vmem:[#allocation9 + $0xf50] sm:$0xff]
        %v957 = vld [vmem:[#allocation9 + $0xf58] sm:$0xff]
        %v958 = vld [vmem:[#allocation9 + $0xf60] sm:$0xff]
        %v959 = vld [vmem:[#allocation9 + $0xf68] sm:$0xff]
        %v960 = vld [vmem:[#allocation9 + $0xf70] sm:$0xff]
        %v961 = vld [vmem:[#allocation9 + $0xf78] sm:$0xff]
        %v962 = vld [vmem:[#allocation9 + $0xf80] sm:$0xff]
        %v963 = vld [vmem:[#allocation9 + $0xf88] sm:$0xff]
        %v964 = vld [vmem:[#allocation9 + $0xf90] sm:$0xff]
        %v965 = vld [vmem:[#allocation9 + $0xf98] sm:$0xff]
        %v966 = vld [vmem:[#allocation9 + $0xfa0] sm:$0xff]
        %v967 = vld [vmem:[#allocation9 + $0xfa8] sm:$0xff]
        %v968 = vld [vmem:[#allocation9 + $0xfb0] sm:$0xff]
        %v969 = vld [vmem:[#allocation9 + $0xfb8] sm:$0xff]
        %v970 = vld [vmem:[#allocation9 + $0xfc0] sm:$0xff]
        %v971 = vld [vmem:[#allocation9 + $0xfc8] sm:$0xff]
        %v972 = vld [vmem:[#allocation9 + $0xfd0] sm:$0xff]
        %v973 = vld [vmem:[#allocation9 + $0xfd8] sm:$0xff]
        %v974 = vld [vmem:[#allocation9 + $0xfe0] sm:$0xff]
        %v975 = vld [vmem:[#allocation9 + $0xfe8] sm:$0xff]
        %v976 = vld [vmem:[#allocation9 + $0xff0] sm:$0xff]
        %v977 = vld [vmem:[#allocation9 + $0xff8] sm:$0xff]
        %v978 = vld [vmem:[#allocation9 + $0x1000] sm:$0xff]
        %v979 = vld [vmem:[#allocation9 + $0x1008] sm:$0xff]
        %v980 = vld [vmem:[#allocation9 + $0x1010] sm:$0xff]
        %v981 = vld [vmem:[#allocation9 + $0x1018] sm:$0xff]
        %v982 = vld [vmem:[#allocation9 + $0x1020] sm:$0xff]
        %v983 = vld [vmem:[#allocation9 + $0x1028] sm:$0xff]
        %v984 = vld [vmem:[#allocation9 + $0x1030] sm:$0xff]
        %v985 = vld [vmem:[#allocation9 + $0x1038] sm:$0xff]
        %v986 = vld [vmem:[#allocation9 + $0x1040] sm:$0xff]
        %v987 = vld [vmem:[#allocation9 + $0x1048] sm:$0xff]
        %v988 = vld [vmem:[#allocation9 + $0x1050] sm:$0xff]
        %v989 = vld [vmem:[#allocation9 + $0x1058] sm:$0xff]
        %v990 = vld [vmem:[#allocation9 + $0x1060] sm:$0xff]
        %v991 = vld [vmem:[#allocation9 + $0x1068] sm:$0xff]
        %v992 = vld [vmem:[#allocation9 + $0x1070] sm:$0xff]
        %v993 = vld [vmem:[#allocation9 + $0x1078] sm:$0xff]
        %v994 = vld [vmem:[#allocation9 + $0x1080] sm:$0xff]
        %v995 = vld [vmem:[#allocation9 + $0x1088] sm:$0xff]
        %v996 = vld [vmem:[#allocation9 + $0x1090] sm:$0xff]
        %v997 = vld [vmem:[#allocation9 + $0x1098] sm:$0xff]
        %v998 = vld [vmem:[#allocation9 + $0x10a0] sm:$0xff]
        %v999 = vld [vmem:[#allocation9 + $0x10a8] sm:$0xff]
        %v1000 = vld [vmem:[#allocation9 + $0x10b0] sm:$0xff]
        %v1001 = vld [vmem:[#allocation9 + $0x10b8] sm:$0xff]
        %v1002 = vld [vmem:[#allocation9 + $0x10c0] sm:$0xff]
        %v1003 = vld [vmem:[#allocation9 + $0x10c8] sm:$0xff]
        %v1004 = vld [vmem:[#allocation9 + $0x10d0] sm:$0xff]
        %v1005 = vld [vmem:[#allocation9 + $0x10d8] sm:$0xff]
        %v1006 = vld [vmem:[#allocation9 + $0x10e0] sm:$0xff]
        %v1007 = vld [vmem:[#allocation9 + $0x10e8] sm:$0xff]
        %v1008 = vld [vmem:[#allocation9 + $0x10f0] sm:$0xff]
        %v1009 = vld [vmem:[#allocation9 + $0x10f8] sm:$0xff]
        %v1010 = vld [vmem:[#allocation9 + $0x1100] sm:$0xff]
        %v1011 = vld [vmem:[#allocation9 + $0x1108] sm:$0xff]
        %v1012 = vld [vmem:[#allocation9 + $0x1110] sm:$0xff]
        %v1013 = vld [vmem:[#allocation9 + $0x1118] sm:$0xff]
        %v1014 = vld [vmem:[#allocation9 + $0x1120] sm:$0xff]
        %v1015 = vld [vmem:[#allocation9 + $0x1128] sm:$0xff]
        %v1016 = vld [vmem:[#allocation9 + $0x1130] sm:$0xff]
        %v1017 = vld [vmem:[#allocation9 + $0x1138] sm:$0xff]
        %v1018 = vld [vmem:[#allocation9 + $0x1140] sm:$0xff]
        %v1019 = vld [vmem:[#allocation9 + $0x1148] sm:$0xff]
        %v1020 = vld [vmem:[#allocation9 + $0x1150] sm:$0xff]
        %v1021 = vld [vmem:[#allocation9 + $0x1158] sm:$0xff]
        %v1022 = vld [vmem:[#allocation9 + $0x1160] sm:$0xff]
        %v1023 = vld [vmem:[#allocation9 + $0x1168] sm:$0xff]
        %v1024 = vld [vmem:[#allocation9 + $0x1170] sm:$0xff]
        %v1025 = vld [vmem:[#allocation9 + $0x1178] sm:$0xff]
        %v1026 = vld [vmem:[#allocation9 + $0x1180] sm:$0xff]
        %v1027 = vld [vmem:[#allocation9 + $0x1188] sm:$0xff]
        %v1028 = vld [vmem:[#allocation9 + $0x1190] sm:$0xff]
        %v1029 = vld [vmem:[#allocation9 + $0x1198] sm:$0xff]
        %v1030 = vld [vmem:[#allocation9 + $0x11a0] sm:$0xff]
        %v1031 = vld [vmem:[#allocation9 + $0x11a8] sm:$0xff]
        %v1032 = vld [vmem:[#allocation9 + $0x11b0] sm:$0xff]
        %v1033 = vld [vmem:[#allocation9 + $0x11b8] sm:$0xff]
        %v1034 = vld [vmem:[#allocation9 + $0x11c0] sm:$0xff]
        %v1035 = vld [vmem:[#allocation9 + $0x11c8] sm:$0xff]
        %v1036 = vld [vmem:[#allocation9 + $0x11d0] sm:$0xff]
        %v1037 = vld [vmem:[#allocation9 + $0x11d8] sm:$0xff]
        %v1038 = vld [vmem:[#allocation9 + $0x11e0] sm:$0xff]
        %v1039 = vld [vmem:[#allocation9 + $0x11e8] sm:$0xff]
        %v1040 = vld [vmem:[#allocation9 + $0x11f0] sm:$0xff]
        %v1041 = vld [vmem:[#allocation9 + $0x11f8] sm:$0xff]
        %1042 = vmatpush.msra.mxu0 %v417
        %1043 = vmatpush.msra.mxu0 %v416
        %1044 = vmatpush.msra.mxu0 %v415
        %1045 = vmatpush.msra.mxu0 %v414
        %1046 = vmatpush.msra.mxu0 %v413
        %1047 = vmatpush.msra.mxu0 %v412
        %1048 = vmatpush.msra.mxu0 %v411
        %1049 = vmatpush.msra.mxu0 %v410
        %1050 = vmatpush.msra.mxu0 %v409
        %1051 = vmatpush.msra.mxu0 %v408
        %1052 = vmatpush.msra.mxu0 %v407
        %1053 = vmatpush.msra.mxu0 %v406
        %1054 = vmatpush.msra.mxu0 %v405
        %1055 = vmatpush.msra.mxu0 %v404
        %1056 = vmatpush.msra.mxu0 %v403
        %1057 = vmatpush.msra.mxu0 %v402
        %1058 = vmatmul.f32.gmra.mxu0 %v466
        %v1059 = vpop.f32.mrf.mxu0
        %v1060 = vadd.f32 0.0, %v1059
        %1061 = vmatmul.f32.gmra.mxu0 %v470
        %v1062 = vpop.f32.mrf.mxu0
        %v1063 = vadd.f32 0.0, %v1062
        %1064 = vmatmul.f32.gmra.mxu0 %v474
        %v1065 = vpop.f32.mrf.mxu0
        %v1066 = vadd.f32 0.0, %v1065
        %1067 = vmatmul.f32.gmra.mxu0 %v478
        %v1068 = vpop.f32.mrf.mxu0
        %v1069 = vadd.f32 0.0, %v1068
        %1070 = vmatmul.f32.gmra.mxu0 %v482
        %v1071 = vpop.f32.mrf.mxu0
        %v1072 = vadd.f32 0.0, %v1071
        %1073 = vmatmul.f32.gmra.mxu0 %v486
        %v1074 = vpop.f32.mrf.mxu0
        %v1075 = vadd.f32 0.0, %v1074
        %1076 = vmatmul.f32.gmra.mxu0 %v490
        %v1077 = vpop.f32.mrf.mxu0
        %v1078 = vadd.f32 0.0, %v1077
        %1079 = vmatmul.f32.gmra.mxu0 %v494
        %v1080 = vpop.f32.mrf.mxu0
        %v1081 = vadd.f32 0.0, %v1080
        %1082 = vmatmul.f32.gmra.mxu0 %v498
        %v1083 = vpop.f32.mrf.mxu0
        %v1084 = vadd.f32 0.0, %v1083
        %1085 = vmatmul.f32.gmra.mxu0 %v502
        %v1086 = vpop.f32.mrf.mxu0
        %v1087 = vadd.f32 0.0, %v1086
        %1088 = vmatmul.f32.gmra.mxu0 %v506
        %v1089 = vpop.f32.mrf.mxu0
        %v1090 = vadd.f32 0.0, %v1089
        %1091 = vmatmul.f32.gmra.mxu0 %v510
        %v1092 = vpop.f32.mrf.mxu0
        %v1093 = vadd.f32 0.0, %v1092
        %1094 = vmatmul.f32.gmra.mxu0 %v514
        %v1095 = vpop.f32.mrf.mxu0
        %v1096 = vadd.f32 0.0, %v1095
        %1097 = vmatmul.f32.gmra.mxu0 %v518
        %v1098 = vpop.f32.mrf.mxu0
        %v1099 = vadd.f32 0.0, %v1098
        %1100 = vmatmul.f32.gmra.mxu0 %v522
        %v1101 = vpop.f32.mrf.mxu0
        %v1102 = vadd.f32 0.0, %v1101
        %1103 = vmatmul.f32.gmra.mxu0 %v526
        %v1104 = vpop.f32.mrf.mxu0
        %v1105 = vadd.f32 0.0, %v1104
        %1106 = vmatmul.f32.gmra.mxu0 %v530
        %v1107 = vpop.f32.mrf.mxu0
        %v1108 = vadd.f32 0.0, %v1107
        %1109 = vmatmul.f32.gmra.mxu0 %v534
        %v1110 = vpop.f32.mrf.mxu0
        %v1111 = vadd.f32 0.0, %v1110
        %1112 = vmatmul.f32.gmra.mxu0 %v538
        %v1113 = vpop.f32.mrf.mxu0
        %v1114 = vadd.f32 0.0, %v1113
        %1115 = vmatmul.f32.gmra.mxu0 %v542
        %v1116 = vpop.f32.mrf.mxu0
        %v1117 = vadd.f32 0.0, %v1116
        %1118 = vmatmul.f32.gmra.mxu0 %v546
        %v1119 = vpop.f32.mrf.mxu0
        %v1120 = vadd.f32 0.0, %v1119
        %1121 = vmatmul.f32.gmra.mxu0 %v550
        %v1122 = vpop.f32.mrf.mxu0
        %v1123 = vadd.f32 0.0, %v1122
        %1124 = vmatmul.f32.gmra.mxu0 %v554
        %v1125 = vpop.f32.mrf.mxu0
        %v1126 = vadd.f32 0.0, %v1125
        %1127 = vmatmul.f32.gmra.mxu0 %v558
        %v1128 = vpop.f32.mrf.mxu0
        %v1129 = vadd.f32 0.0, %v1128
        %1130 = vmatmul.f32.gmra.mxu0 %v562
        %v1131 = vpop.f32.mrf.mxu0
        %v1132 = vadd.f32 0.0, %v1131
        %1133 = vmatmul.f32.gmra.mxu0 %v566
        %v1134 = vpop.f32.mrf.mxu0
        %v1135 = vadd.f32 0.0, %v1134
        %1136 = vmatmul.f32.gmra.mxu0 %v570
        %v1137 = vpop.f32.mrf.mxu0
        %v1138 = vadd.f32 0.0, %v1137
        %1139 = vmatmul.f32.gmra.mxu0 %v574
        %v1140 = vpop.f32.mrf.mxu0
        %v1141 = vadd.f32 0.0, %v1140
        %1142 = vmatmul.f32.gmra.mxu0 %v578
        %v1143 = vpop.f32.mrf.mxu0
        %v1144 = vadd.f32 0.0, %v1143
        %1145 = vmatmul.f32.gmra.mxu0 %v582
        %v1146 = vpop.f32.mrf.mxu0
        %v1147 = vadd.f32 0.0, %v1146
        %1148 = vmatmul.f32.gmra.mxu0 %v586
        %v1149 = vpop.f32.mrf.mxu0
        %v1150 = vadd.f32 0.0, %v1149
        %1151 = vmatmul.f32.gmra.mxu0 %v590
        %v1152 = vpop.f32.mrf.mxu0
        %v1153 = vadd.f32 0.0, %v1152
        %1154 = vmatmul.f32.gmra.mxu0 %v594
        %v1155 = vpop.f32.mrf.mxu0
        %v1156 = vadd.f32 0.0, %v1155
        %1157 = vmatmul.f32.gmra.mxu0 %v598
        %v1158 = vpop.f32.mrf.mxu0
        %v1159 = vadd.f32 0.0, %v1158
        %1160 = vmatmul.f32.gmra.mxu0 %v602
        %v1161 = vpop.f32.mrf.mxu0
        %v1162 = vadd.f32 0.0, %v1161
        %1163 = vmatmul.f32.gmra.mxu0 %v606
        %v1164 = vpop.f32.mrf.mxu0
        %v1165 = vadd.f32 0.0, %v1164
        %1166 = vmatmul.f32.gmra.mxu0 %v610
        %v1167 = vpop.f32.mrf.mxu0
        %v1168 = vadd.f32 0.0, %v1167
        %1169 = vmatmul.f32.gmra.mxu0 %v614
        %v1170 = vpop.f32.mrf.mxu0
        %v1171 = vadd.f32 0.0, %v1170
        %1172 = vmatmul.f32.gmra.mxu0 %v618
        %v1173 = vpop.f32.mrf.mxu0
        %v1174 = vadd.f32 0.0, %v1173
        %1175 = vmatmul.f32.gmra.mxu0 %v622
        %v1176 = vpop.f32.mrf.mxu0
        %v1177 = vadd.f32 0.0, %v1176
        %1178 = vmatmul.f32.gmra.mxu0 %v626
        %v1179 = vpop.f32.mrf.mxu0
        %v1180 = vadd.f32 0.0, %v1179
        %1181 = vmatmul.f32.gmra.mxu0 %v630
        %v1182 = vpop.f32.mrf.mxu0
        %v1183 = vadd.f32 0.0, %v1182
        %1184 = vmatmul.f32.gmra.mxu0 %v634
        %v1185 = vpop.f32.mrf.mxu0
        %v1186 = vadd.f32 0.0, %v1185
        %1187 = vmatmul.f32.gmra.mxu0 %v638
        %v1188 = vpop.f32.mrf.mxu0
        %v1189 = vadd.f32 0.0, %v1188
        %1190 = vmatmul.f32.gmra.mxu0 %v642
        %v1191 = vpop.f32.mrf.mxu0
        %v1192 = vadd.f32 0.0, %v1191
        %1193 = vmatmul.f32.gmra.mxu0 %v646
        %v1194 = vpop.f32.mrf.mxu0
        %v1195 = vadd.f32 0.0, %v1194
        %1196 = vmatmul.f32.gmra.mxu0 %v650
        %v1197 = vpop.f32.mrf.mxu0
        %v1198 = vadd.f32 0.0, %v1197
        %1199 = vmatmul.f32.gmra.mxu0 %v654
        %v1200 = vpop.f32.mrf.mxu0
        %v1201 = vadd.f32 0.0, %v1200
        %1202 = vmatmul.f32.gmra.mxu0 %v658
        %v1203 = vpop.f32.mrf.mxu0
        %v1204 = vadd.f32 0.0, %v1203
        %1205 = vmatmul.f32.gmra.mxu0 %v662
        %v1206 = vpop.f32.mrf.mxu0
        %v1207 = vadd.f32 0.0, %v1206
        %1208 = vmatmul.f32.gmra.mxu0 %v666
        %v1209 = vpop.f32.mrf.mxu0
        %v1210 = vadd.f32 0.0, %v1209
        %1211 = vmatmul.f32.gmra.mxu0 %v670
        %v1212 = vpop.f32.mrf.mxu0
        %v1213 = vadd.f32 0.0, %v1212
        %1214 = vmatmul.f32.gmra.mxu0 %v674
        %v1215 = vpop.f32.mrf.mxu0
        %v1216 = vadd.f32 0.0, %v1215
        %1217 = vmatmul.f32.gmra.mxu0 %v678
        %v1218 = vpop.f32.mrf.mxu0
        %v1219 = vadd.f32 0.0, %v1218
        %1220 = vmatmul.f32.gmra.mxu0 %v682
        %v1221 = vpop.f32.mrf.mxu0
        %v1222 = vadd.f32 0.0, %v1221
        %1223 = vmatmul.f32.gmra.mxu0 %v686
        %v1224 = vpop.f32.mrf.mxu0
        %v1225 = vadd.f32 0.0, %v1224
        %1226 = vmatmul.f32.gmra.mxu0 %v690
        %v1227 = vpop.f32.mrf.mxu0
        %v1228 = vadd.f32 0.0, %v1227
        %1229 = vmatmul.f32.gmra.mxu0 %v694
        %v1230 = vpop.f32.mrf.mxu0
        %v1231 = vadd.f32 0.0, %v1230
        %1232 = vmatmul.f32.gmra.mxu0 %v698
        %v1233 = vpop.f32.mrf.mxu0
        %v1234 = vadd.f32 0.0, %v1233
        %1235 = vmatmul.f32.gmra.mxu0 %v702
        %v1236 = vpop.f32.mrf.mxu0
        %v1237 = vadd.f32 0.0, %v1236
        %1238 = vmatmul.f32.gmra.mxu0 %v706
        %v1239 = vpop.f32.mrf.mxu0
        %v1240 = vadd.f32 0.0, %v1239
        %1241 = vmatmul.f32.gmra.mxu0 %v710
        %v1242 = vpop.f32.mrf.mxu0
        %v1243 = vadd.f32 0.0, %v1242
        %1244 = vmatmul.f32.gmra.mxu0 %v714
        %v1245 = vpop.f32.mrf.mxu0
        %v1246 = vadd.f32 0.0, %v1245
        %1247 = vmatmul.f32.gmra.mxu0 %v718
        %v1248 = vpop.f32.mrf.mxu0
        %v1249 = vadd.f32 0.0, %v1248
        %1250 = vmatmul.f32.gmra.mxu0 %v722
        %v1251 = vpop.f32.mrf.mxu0
        %v1252 = vadd.f32 0.0, %v1251
        %1253 = vmatmul.f32.gmra.mxu0 %v726
        %v1254 = vpop.f32.mrf.mxu0
        %v1255 = vadd.f32 0.0, %v1254
        %1256 = vmatmul.f32.gmra.mxu0 %v730
        %v1257 = vpop.f32.mrf.mxu0
        %v1258 = vadd.f32 0.0, %v1257
        %1259 = vmatmul.f32.gmra.mxu0 %v734
        %v1260 = vpop.f32.mrf.mxu0
        %v1261 = vadd.f32 0.0, %v1260
        %1262 = vmatmul.f32.gmra.mxu0 %v738
        %v1263 = vpop.f32.mrf.mxu0
        %v1264 = vadd.f32 0.0, %v1263
        %1265 = vmatmul.f32.gmra.mxu0 %v742
        %v1266 = vpop.f32.mrf.mxu0
        %v1267 = vadd.f32 0.0, %v1266
        %1268 = vmatmul.f32.gmra.mxu0 %v746
        %v1269 = vpop.f32.mrf.mxu0
        %v1270 = vadd.f32 0.0, %v1269
        %1271 = vmatmul.f32.gmra.mxu0 %v750
        %v1272 = vpop.f32.mrf.mxu0
        %v1273 = vadd.f32 0.0, %v1272
        %1274 = vmatmul.f32.gmra.mxu0 %v754
        %v1275 = vpop.f32.mrf.mxu0
        %v1276 = vadd.f32 0.0, %v1275
        %1277 = vmatmul.f32.gmra.mxu0 %v758
        %v1278 = vpop.f32.mrf.mxu0
        %v1279 = vadd.f32 0.0, %v1278
        %1280 = vmatmul.f32.gmra.mxu0 %v762
        %v1281 = vpop.f32.mrf.mxu0
        %v1282 = vadd.f32 0.0, %v1281
        %1283 = vmatmul.f32.gmra.mxu0 %v766
        %v1284 = vpop.f32.mrf.mxu0
        %v1285 = vadd.f32 0.0, %v1284
        %1286 = vmatmul.f32.gmra.mxu0 %v770
        %v1287 = vpop.f32.mrf.mxu0
        %v1288 = vadd.f32 0.0, %v1287
        %1289 = vmatmul.f32.gmra.mxu0 %v774
        %v1290 = vpop.f32.mrf.mxu0
        %v1291 = vadd.f32 0.0, %v1290
        %1292 = vmatmul.f32.gmra.mxu0 %v778
        %v1293 = vpop.f32.mrf.mxu0
        %v1294 = vadd.f32 0.0, %v1293
        %1295 = vmatmul.f32.gmra.mxu0 %v782
        %v1296 = vpop.f32.mrf.mxu0
        %v1297 = vadd.f32 0.0, %v1296
        %1298 = vmatmul.f32.gmra.mxu0 %v786
        %v1299 = vpop.f32.mrf.mxu0
        %v1300 = vadd.f32 0.0, %v1299
        %1301 = vmatmul.f32.gmra.mxu0 %v790
        %v1302 = vpop.f32.mrf.mxu0
        %v1303 = vadd.f32 0.0, %v1302
        %1304 = vmatmul.f32.gmra.mxu0 %v794
        %v1305 = vpop.f32.mrf.mxu0
        %v1306 = vadd.f32 0.0, %v1305
        %1307 = vmatmul.f32.gmra.mxu0 %v798
        %v1308 = vpop.f32.mrf.mxu0
        %v1309 = vadd.f32 0.0, %v1308
        %1310 = vmatmul.f32.gmra.mxu0 %v802
        %v1311 = vpop.f32.mrf.mxu0
        %v1312 = vadd.f32 0.0, %v1311
        %1313 = vmatmul.f32.gmra.mxu0 %v806
        %v1314 = vpop.f32.mrf.mxu0
        %v1315 = vadd.f32 0.0, %v1314
        %1316 = vmatmul.f32.gmra.mxu0 %v810
        %v1317 = vpop.f32.mrf.mxu0
        %v1318 = vadd.f32 0.0, %v1317
        %1319 = vmatmul.f32.gmra.mxu0 %v814
        %v1320 = vpop.f32.mrf.mxu0
        %v1321 = vadd.f32 0.0, %v1320
        %1322 = vmatmul.f32.gmra.mxu0 %v818
        %v1323 = vpop.f32.mrf.mxu0
        %v1324 = vadd.f32 0.0, %v1323
        %1325 = vmatmul.f32.gmra.mxu0 %v822
        %v1326 = vpop.f32.mrf.mxu0
        %v1327 = vadd.f32 0.0, %v1326
        %1328 = vmatmul.f32.gmra.mxu0 %v826
        %v1329 = vpop.f32.mrf.mxu0
        %v1330 = vadd.f32 0.0, %v1329
        %1331 = vmatmul.f32.gmra.mxu0 %v830
        %v1332 = vpop.f32.mrf.mxu0
        %v1333 = vadd.f32 0.0, %v1332
        %1334 = vmatmul.f32.gmra.mxu0 %v834
        %v1335 = vpop.f32.mrf.mxu0
        %v1336 = vadd.f32 0.0, %v1335
        %1337 = vmatmul.f32.gmra.mxu0 %v838
        %v1338 = vpop.f32.mrf.mxu0
        %v1339 = vadd.f32 0.0, %v1338
        %1340 = vmatmul.f32.gmra.mxu0 %v842
        %v1341 = vpop.f32.mrf.mxu0
        %v1342 = vadd.f32 0.0, %v1341
        %1343 = vmatmul.f32.gmra.mxu0 %v846
        %v1344 = vpop.f32.mrf.mxu0
        %v1345 = vadd.f32 0.0, %v1344
        %1346 = vmatmul.f32.gmra.mxu0 %v850
        %v1347 = vpop.f32.mrf.mxu0
        %v1348 = vadd.f32 0.0, %v1347
        %1349 = vmatmul.f32.gmra.mxu0 %v854
        %v1350 = vpop.f32.mrf.mxu0
        %v1351 = vadd.f32 0.0, %v1350
        %1352 = vmatmul.f32.gmra.mxu0 %v858
        %v1353 = vpop.f32.mrf.mxu0
        %v1354 = vadd.f32 0.0, %v1353
        %1355 = vmatmul.f32.gmra.mxu0 %v862
        %v1356 = vpop.f32.mrf.mxu0
        %v1357 = vadd.f32 0.0, %v1356
        %1358 = vmatmul.f32.gmra.mxu0 %v866
        %v1359 = vpop.f32.mrf.mxu0
        %v1360 = vadd.f32 0.0, %v1359
        %1361 = vmatmul.f32.gmra.mxu0 %v870
        %v1362 = vpop.f32.mrf.mxu0
        %v1363 = vadd.f32 0.0, %v1362
        %1364 = vmatmul.f32.gmra.mxu0 %v874
        %v1365 = vpop.f32.mrf.mxu0
        %v1366 = vadd.f32 0.0, %v1365
        %1367 = vmatmul.f32.gmra.mxu0 %v878
        %v1368 = vpop.f32.mrf.mxu0
        %v1369 = vadd.f32 0.0, %v1368
        %1370 = vmatmul.f32.gmra.mxu0 %v882
        %v1371 = vpop.f32.mrf.mxu0
        %v1372 = vadd.f32 0.0, %v1371
        %1373 = vmatmul.f32.gmra.mxu0 %v886
        %v1374 = vpop.f32.mrf.mxu0
        %v1375 = vadd.f32 0.0, %v1374
        %1376 = vmatmul.f32.gmra.mxu0 %v890
        %v1377 = vpop.f32.mrf.mxu0
        %v1378 = vadd.f32 0.0, %v1377
        %1379 = vmatmul.f32.gmra.mxu0 %v894
        %v1380 = vpop.f32.mrf.mxu0
        %v1381 = vadd.f32 0.0, %v1380
        %1382 = vmatmul.f32.gmra.mxu0 %v898
        %v1383 = vpop.f32.mrf.mxu0
        %v1384 = vadd.f32 0.0, %v1383
        %1385 = vmatmul.f32.gmra.mxu0 %v902
        %v1386 = vpop.f32.mrf.mxu0
        %v1387 = vadd.f32 0.0, %v1386
        %1388 = vmatmul.f32.gmra.mxu0 %v906
        %v1389 = vpop.f32.mrf.mxu0
        %v1390 = vadd.f32 0.0, %v1389
        %1391 = vmatmul.f32.gmra.mxu0 %v910
        %v1392 = vpop.f32.mrf.mxu0
        %v1393 = vadd.f32 0.0, %v1392
        %1394 = vmatmul.f32.gmra.mxu0 %v914
        %v1395 = vpop.f32.mrf.mxu0
        %v1396 = vadd.f32 0.0, %v1395
        %1397 = vmatmul.f32.gmra.mxu0 %v918
        %v1398 = vpop.f32.mrf.mxu0
        %v1399 = vadd.f32 0.0, %v1398
        %1400 = vmatmul.f32.gmra.mxu0 %v922
        %v1401 = vpop.f32.mrf.mxu0
        %v1402 = vadd.f32 0.0, %v1401
        %1403 = vmatmul.f32.gmra.mxu0 %v926
        %v1404 = vpop.f32.mrf.mxu0
        %v1405 = vadd.f32 0.0, %v1404
        %1406 = vmatmul.f32.gmra.mxu0 %v930
        %v1407 = vpop.f32.mrf.mxu0
        %v1408 = vadd.f32 0.0, %v1407
        %1409 = vmatmul.f32.gmra.mxu0 %v934
        %v1410 = vpop.f32.mrf.mxu0
        %v1411 = vadd.f32 0.0, %v1410
        %1412 = vmatmul.f32.gmra.mxu0 %v938
        %v1413 = vpop.f32.mrf.mxu0
        %v1414 = vadd.f32 0.0, %v1413
        %1415 = vmatmul.f32.gmra.mxu0 %v942
        %v1416 = vpop.f32.mrf.mxu0
        %v1417 = vadd.f32 0.0, %v1416
        %1418 = vmatmul.f32.gmra.mxu0 %v946
        %v1419 = vpop.f32.mrf.mxu0
        %v1420 = vadd.f32 0.0, %v1419
        %1421 = vmatmul.f32.gmra.mxu0 %v950
        %v1422 = vpop.f32.mrf.mxu0
        %v1423 = vadd.f32 0.0, %v1422
        %1424 = vmatmul.f32.gmra.mxu0 %v954
        %v1425 = vpop.f32.mrf.mxu0
        %v1426 = vadd.f32 0.0, %v1425
        %1427 = vmatmul.f32.gmra.mxu0 %v958
        %v1428 = vpop.f32.mrf.mxu0
        %v1429 = vadd.f32 0.0, %v1428
        %1430 = vmatmul.f32.gmra.mxu0 %v962
        %v1431 = vpop.f32.mrf.mxu0
        %v1432 = vadd.f32 0.0, %v1431
        %1433 = vmatmul.f32.gmra.mxu0 %v966
        %v1434 = vpop.f32.mrf.mxu0
        %v1435 = vadd.f32 0.0, %v1434
        %1436 = vmatmul.f32.gmra.mxu0 %v970
        %v1437 = vpop.f32.mrf.mxu0
        %v1438 = vadd.f32 0.0, %v1437
        %1439 = vmatmul.f32.gmra.mxu0 %v974
        %v1440 = vpop.f32.mrf.mxu0
        %v1441 = vadd.f32 0.0, %v1440
        %1442 = vmatmul.f32.gmra.mxu0 %v978
        %v1443 = vpop.f32.mrf.mxu0
        %v1444 = vadd.f32 0.0, %v1443
        %1445 = vmatmul.f32.gmra.mxu0 %v982
        %v1446 = vpop.f32.mrf.mxu0
        %v1447 = vadd.f32 0.0, %v1446
        %1448 = vmatmul.f32.gmra.mxu0 %v986
        %v1449 = vpop.f32.mrf.mxu0
        %v1450 = vadd.f32 0.0, %v1449
        %1451 = vmatmul.f32.gmra.mxu0 %v990
        %v1452 = vpop.f32.mrf.mxu0
        %v1453 = vadd.f32 0.0, %v1452
        %1454 = vmatmul.f32.gmra.mxu0 %v994
        %v1455 = vpop.f32.mrf.mxu0
        %v1456 = vadd.f32 0.0, %v1455
        %1457 = vmatmul.f32.gmra.mxu0 %v998
        %v1458 = vpop.f32.mrf.mxu0
        %v1459 = vadd.f32 0.0, %v1458
        %1460 = vmatmul.f32.gmra.mxu0 %v1002
        %v1461 = vpop.f32.mrf.mxu0
        %v1462 = vadd.f32 0.0, %v1461
        %1463 = vmatmul.f32.gmra.mxu0 %v1006
        %v1464 = vpop.f32.mrf.mxu0
        %v1465 = vadd.f32 0.0, %v1464
        %1466 = vmatmul.f32.gmra.mxu0 %v1010
        %v1467 = vpop.f32.mrf.mxu0
        %v1468 = vadd.f32 0.0, %v1467
        %1469 = vmatmul.f32.gmra.mxu0 %v1014
        %v1470 = vpop.f32.mrf.mxu0
        %v1471 = vadd.f32 0.0, %v1470
        %1472 = vmatmul.f32.gmra.mxu0 %v1018
        %v1473 = vpop.f32.mrf.mxu0
        %v1474 = vadd.f32 0.0, %v1473
        %1475 = vmatmul.f32.gmra.mxu0 %v1022
        %v1476 = vpop.f32.mrf.mxu0
        %v1477 = vadd.f32 0.0, %v1476
        %1478 = vmatmul.f32.gmra.mxu0 %v1026
        %v1479 = vpop.f32.mrf.mxu0
        %v1480 = vadd.f32 0.0, %v1479
        %1481 = vmatmul.f32.gmra.mxu0 %v1030
        %v1482 = vpop.f32.mrf.mxu0
        %v1483 = vadd.f32 0.0, %v1482
        %1484 = vmatmul.f32.gmra.mxu0 %v1034
        %v1485 = vpop.f32.mrf.mxu0
        %v1486 = vadd.f32 0.0, %v1485
        %1487 = vmatmul.f32.gmra.mxu0 %v1038
        %v1488 = vpop.f32.mrf.mxu0
        %v1489 = vadd.f32 0.0, %v1488
        %1490 = vdwg.mxu0
        %1491 = vmatpush.msra.mxu0 %v433
        %1492 = vmatpush.msra.mxu0 %v432
        %1493 = vmatpush.msra.mxu0 %v431
        %1494 = vmatpush.msra.mxu0 %v430
        %1495 = vmatpush.msra.mxu0 %v429
        %1496 = vmatpush.msra.mxu0 %v428
        %1497 = vmatpush.msra.mxu0 %v427
        %1498 = vmatpush.msra.mxu0 %v426
        %1499 = vmatpush.msra.mxu0 %v425
        %1500 = vmatpush.msra.mxu0 %v424
        %1501 = vmatpush.msra.mxu0 %v423
        %1502 = vmatpush.msra.mxu0 %v422
        %1503 = vmatpush.msra.mxu0 %v421
        %1504 = vmatpush.msra.mxu0 %v420
        %1505 = vmatpush.msra.mxu0 %v419
        %1506 = vmatpush.msra.mxu0 %v418
        %1507 = vmatmul.f32.gmra.mxu0 %v467
        %v1508 = vpop.f32.mrf.mxu0
        %v1509 = vadd.f32 %v1060, %v1508
        %1510 = vmatmul.f32.gmra.mxu0 %v471
        %v1511 = vpop.f32.mrf.mxu0
        %v1512 = vadd.f32 %v1063, %v1511
        %1513 = vmatmul.f32.gmra.mxu0 %v475
        %v1514 = vpop.f32.mrf.mxu0
        %v1515 = vadd.f32 %v1066, %v1514
        %1516 = vmatmul.f32.gmra.mxu0 %v479
        %v1517 = vpop.f32.mrf.mxu0
        %v1518 = vadd.f32 %v1069, %v1517
        %1519 = vmatmul.f32.gmra.mxu0 %v483
        %v1520 = vpop.f32.mrf.mxu0
        %v1521 = vadd.f32 %v1072, %v1520
        %1522 = vmatmul.f32.gmra.mxu0 %v487
        %v1523 = vpop.f32.mrf.mxu0
        %v1524 = vadd.f32 %v1075, %v1523
        %1525 = vmatmul.f32.gmra.mxu0 %v491
        %v1526 = vpop.f32.mrf.mxu0
        %v1527 = vadd.f32 %v1078, %v1526
        %1528 = vmatmul.f32.gmra.mxu0 %v495
        %v1529 = vpop.f32.mrf.mxu0
        %v1530 = vadd.f32 %v1081, %v1529
        %1531 = vmatmul.f32.gmra.mxu0 %v499
        %v1532 = vpop.f32.mrf.mxu0
        %v1533 = vadd.f32 %v1084, %v1532
        %1534 = vmatmul.f32.gmra.mxu0 %v503
        %v1535 = vpop.f32.mrf.mxu0
        %v1536 = vadd.f32 %v1087, %v1535
        %1537 = vmatmul.f32.gmra.mxu0 %v507
        %v1538 = vpop.f32.mrf.mxu0
        %v1539 = vadd.f32 %v1090, %v1538
        %1540 = vmatmul.f32.gmra.mxu0 %v511
        %v1541 = vpop.f32.mrf.mxu0
        %v1542 = vadd.f32 %v1093, %v1541
        %1543 = vmatmul.f32.gmra.mxu0 %v515
        %v1544 = vpop.f32.mrf.mxu0
        %v1545 = vadd.f32 %v1096, %v1544
        %1546 = vmatmul.f32.gmra.mxu0 %v519
        %v1547 = vpop.f32.mrf.mxu0
        %v1548 = vadd.f32 %v1099, %v1547
        %1549 = vmatmul.f32.gmra.mxu0 %v523
        %v1550 = vpop.f32.mrf.mxu0
        %v1551 = vadd.f32 %v1102, %v1550
        %1552 = vmatmul.f32.gmra.mxu0 %v527
        %v1553 = vpop.f32.mrf.mxu0
        %v1554 = vadd.f32 %v1105, %v1553
        %1555 = vmatmul.f32.gmra.mxu0 %v531
        %v1556 = vpop.f32.mrf.mxu0
        %v1557 = vadd.f32 %v1108, %v1556
        %1558 = vmatmul.f32.gmra.mxu0 %v535
        %v1559 = vpop.f32.mrf.mxu0
        %v1560 = vadd.f32 %v1111, %v1559
        %1561 = vmatmul.f32.gmra.mxu0 %v539
        %v1562 = vpop.f32.mrf.mxu0
        %v1563 = vadd.f32 %v1114, %v1562
        %1564 = vmatmul.f32.gmra.mxu0 %v543
        %v1565 = vpop.f32.mrf.mxu0
        %v1566 = vadd.f32 %v1117, %v1565
        %1567 = vmatmul.f32.gmra.mxu0 %v547
        %v1568 = vpop.f32.mrf.mxu0
        %v1569 = vadd.f32 %v1120, %v1568
        %1570 = vmatmul.f32.gmra.mxu0 %v551
        %v1571 = vpop.f32.mrf.mxu0
        %v1572 = vadd.f32 %v1123, %v1571
        %1573 = vmatmul.f32.gmra.mxu0 %v555
        %v1574 = vpop.f32.mrf.mxu0
        %v1575 = vadd.f32 %v1126, %v1574
        %1576 = vmatmul.f32.gmra.mxu0 %v559
        %v1577 = vpop.f32.mrf.mxu0
        %v1578 = vadd.f32 %v1129, %v1577
        %1579 = vmatmul.f32.gmra.mxu0 %v563
        %v1580 = vpop.f32.mrf.mxu0
        %v1581 = vadd.f32 %v1132, %v1580
        %1582 = vmatmul.f32.gmra.mxu0 %v567
        %v1583 = vpop.f32.mrf.mxu0
        %v1584 = vadd.f32 %v1135, %v1583
        %1585 = vmatmul.f32.gmra.mxu0 %v571
        %v1586 = vpop.f32.mrf.mxu0
        %v1587 = vadd.f32 %v1138, %v1586
        %1588 = vmatmul.f32.gmra.mxu0 %v575
        %v1589 = vpop.f32.mrf.mxu0
        %v1590 = vadd.f32 %v1141, %v1589
        %1591 = vmatmul.f32.gmra.mxu0 %v579
        %v1592 = vpop.f32.mrf.mxu0
        %v1593 = vadd.f32 %v1144, %v1592
        %1594 = vmatmul.f32.gmra.mxu0 %v583
        %v1595 = vpop.f32.mrf.mxu0
        %v1596 = vadd.f32 %v1147, %v1595
        %1597 = vmatmul.f32.gmra.mxu0 %v587
        %v1598 = vpop.f32.mrf.mxu0
        %v1599 = vadd.f32 %v1150, %v1598
        %1600 = vmatmul.f32.gmra.mxu0 %v591
        %v1601 = vpop.f32.mrf.mxu0
        %v1602 = vadd.f32 %v1153, %v1601
        %1603 = vmatmul.f32.gmra.mxu0 %v595
        %v1604 = vpop.f32.mrf.mxu0
        %v1605 = vadd.f32 %v1156, %v1604
        %1606 = vmatmul.f32.gmra.mxu0 %v599
        %v1607 = vpop.f32.mrf.mxu0
        %v1608 = vadd.f32 %v1159, %v1607
        %1609 = vmatmul.f32.gmra.mxu0 %v603
        %v1610 = vpop.f32.mrf.mxu0
        %v1611 = vadd.f32 %v1162, %v1610
        %1612 = vmatmul.f32.gmra.mxu0 %v607
        %v1613 = vpop.f32.mrf.mxu0
        %v1614 = vadd.f32 %v1165, %v1613
        %1615 = vmatmul.f32.gmra.mxu0 %v611
        %v1616 = vpop.f32.mrf.mxu0
        %v1617 = vadd.f32 %v1168, %v1616
        %1618 = vmatmul.f32.gmra.mxu0 %v615
        %v1619 = vpop.f32.mrf.mxu0
        %v1620 = vadd.f32 %v1171, %v1619
        %1621 = vmatmul.f32.gmra.mxu0 %v619
        %v1622 = vpop.f32.mrf.mxu0
        %v1623 = vadd.f32 %v1174, %v1622
        %1624 = vmatmul.f32.gmra.mxu0 %v623
        %v1625 = vpop.f32.mrf.mxu0
        %v1626 = vadd.f32 %v1177, %v1625
        %1627 = vmatmul.f32.gmra.mxu0 %v627
        %v1628 = vpop.f32.mrf.mxu0
        %v1629 = vadd.f32 %v1180, %v1628
        %1630 = vmatmul.f32.gmra.mxu0 %v631
        %v1631 = vpop.f32.mrf.mxu0
        %v1632 = vadd.f32 %v1183, %v1631
        %1633 = vmatmul.f32.gmra.mxu0 %v635
        %v1634 = vpop.f32.mrf.mxu0
        %v1635 = vadd.f32 %v1186, %v1634
        %1636 = vmatmul.f32.gmra.mxu0 %v639
        %v1637 = vpop.f32.mrf.mxu0
        %v1638 = vadd.f32 %v1189, %v1637
        %1639 = vmatmul.f32.gmra.mxu0 %v643
        %v1640 = vpop.f32.mrf.mxu0
        %v1641 = vadd.f32 %v1192, %v1640
        %1642 = vmatmul.f32.gmra.mxu0 %v647
        %v1643 = vpop.f32.mrf.mxu0
        %v1644 = vadd.f32 %v1195, %v1643
        %1645 = vmatmul.f32.gmra.mxu0 %v651
        %v1646 = vpop.f32.mrf.mxu0
        %v1647 = vadd.f32 %v1198, %v1646
        %1648 = vmatmul.f32.gmra.mxu0 %v655
        %v1649 = vpop.f32.mrf.mxu0
        %v1650 = vadd.f32 %v1201, %v1649
        %1651 = vmatmul.f32.gmra.mxu0 %v659
        %v1652 = vpop.f32.mrf.mxu0
        %v1653 = vadd.f32 %v1204, %v1652
        %1654 = vmatmul.f32.gmra.mxu0 %v663
        %v1655 = vpop.f32.mrf.mxu0
        %v1656 = vadd.f32 %v1207, %v1655
        %1657 = vmatmul.f32.gmra.mxu0 %v667
        %v1658 = vpop.f32.mrf.mxu0
        %v1659 = vadd.f32 %v1210, %v1658
        %1660 = vmatmul.f32.gmra.mxu0 %v671
        %v1661 = vpop.f32.mrf.mxu0
        %v1662 = vadd.f32 %v1213, %v1661
        %1663 = vmatmul.f32.gmra.mxu0 %v675
        %v1664 = vpop.f32.mrf.mxu0
        %v1665 = vadd.f32 %v1216, %v1664
        %1666 = vmatmul.f32.gmra.mxu0 %v679
        %v1667 = vpop.f32.mrf.mxu0
        %v1668 = vadd.f32 %v1219, %v1667
        %1669 = vmatmul.f32.gmra.mxu0 %v683
        %v1670 = vpop.f32.mrf.mxu0
        %v1671 = vadd.f32 %v1222, %v1670
        %1672 = vmatmul.f32.gmra.mxu0 %v687
        %v1673 = vpop.f32.mrf.mxu0
        %v1674 = vadd.f32 %v1225, %v1673
        %1675 = vmatmul.f32.gmra.mxu0 %v691
        %v1676 = vpop.f32.mrf.mxu0
        %v1677 = vadd.f32 %v1228, %v1676
        %1678 = vmatmul.f32.gmra.mxu0 %v695
        %v1679 = vpop.f32.mrf.mxu0
        %v1680 = vadd.f32 %v1231, %v1679
        %1681 = vmatmul.f32.gmra.mxu0 %v699
        %v1682 = vpop.f32.mrf.mxu0
        %v1683 = vadd.f32 %v1234, %v1682
        %1684 = vmatmul.f32.gmra.mxu0 %v703
        %v1685 = vpop.f32.mrf.mxu0
        %v1686 = vadd.f32 %v1237, %v1685
        %1687 = vmatmul.f32.gmra.mxu0 %v707
        %v1688 = vpop.f32.mrf.mxu0
        %v1689 = vadd.f32 %v1240, %v1688
        %1690 = vmatmul.f32.gmra.mxu0 %v711
        %v1691 = vpop.f32.mrf.mxu0
        %v1692 = vadd.f32 %v1243, %v1691
        %1693 = vmatmul.f32.gmra.mxu0 %v715
        %v1694 = vpop.f32.mrf.mxu0
        %v1695 = vadd.f32 %v1246, %v1694
        %1696 = vmatmul.f32.gmra.mxu0 %v719
        %v1697 = vpop.f32.mrf.mxu0
        %v1698 = vadd.f32 %v1249, %v1697
        %1699 = vmatmul.f32.gmra.mxu0 %v723
        %v1700 = vpop.f32.mrf.mxu0
        %v1701 = vadd.f32 %v1252, %v1700
        %1702 = vmatmul.f32.gmra.mxu0 %v727
        %v1703 = vpop.f32.mrf.mxu0
        %v1704 = vadd.f32 %v1255, %v1703
        %1705 = vmatmul.f32.gmra.mxu0 %v731
        %v1706 = vpop.f32.mrf.mxu0
        %v1707 = vadd.f32 %v1258, %v1706
        %1708 = vmatmul.f32.gmra.mxu0 %v735
        %v1709 = vpop.f32.mrf.mxu0
        %v1710 = vadd.f32 %v1261, %v1709
        %1711 = vmatmul.f32.gmra.mxu0 %v739
        %v1712 = vpop.f32.mrf.mxu0
        %v1713 = vadd.f32 %v1264, %v1712
        %1714 = vmatmul.f32.gmra.mxu0 %v743
        %v1715 = vpop.f32.mrf.mxu0
        %v1716 = vadd.f32 %v1267, %v1715
        %1717 = vmatmul.f32.gmra.mxu0 %v747
        %v1718 = vpop.f32.mrf.mxu0
        %v1719 = vadd.f32 %v1270, %v1718
        %1720 = vmatmul.f32.gmra.mxu0 %v751
        %v1721 = vpop.f32.mrf.mxu0
        %v1722 = vadd.f32 %v1273, %v1721
        %1723 = vmatmul.f32.gmra.mxu0 %v755
        %v1724 = vpop.f32.mrf.mxu0
        %v1725 = vadd.f32 %v1276, %v1724
        %1726 = vmatmul.f32.gmra.mxu0 %v759
        %v1727 = vpop.f32.mrf.mxu0
        %v1728 = vadd.f32 %v1279, %v1727
        %1729 = vmatmul.f32.gmra.mxu0 %v763
        %v1730 = vpop.f32.mrf.mxu0
        %v1731 = vadd.f32 %v1282, %v1730
        %1732 = vmatmul.f32.gmra.mxu0 %v767
        %v1733 = vpop.f32.mrf.mxu0
        %v1734 = vadd.f32 %v1285, %v1733
        %1735 = vmatmul.f32.gmra.mxu0 %v771
        %v1736 = vpop.f32.mrf.mxu0
        %v1737 = vadd.f32 %v1288, %v1736
        %1738 = vmatmul.f32.gmra.mxu0 %v775
        %v1739 = vpop.f32.mrf.mxu0
        %v1740 = vadd.f32 %v1291, %v1739
        %1741 = vmatmul.f32.gmra.mxu0 %v779
        %v1742 = vpop.f32.mrf.mxu0
        %v1743 = vadd.f32 %v1294, %v1742
        %1744 = vmatmul.f32.gmra.mxu0 %v783
        %v1745 = vpop.f32.mrf.mxu0
        %v1746 = vadd.f32 %v1297, %v1745
        %1747 = vmatmul.f32.gmra.mxu0 %v787
        %v1748 = vpop.f32.mrf.mxu0
        %v1749 = vadd.f32 %v1300, %v1748
        %1750 = vmatmul.f32.gmra.mxu0 %v791
        %v1751 = vpop.f32.mrf.mxu0
        %v1752 = vadd.f32 %v1303, %v1751
        %1753 = vmatmul.f32.gmra.mxu0 %v795
        %v1754 = vpop.f32.mrf.mxu0
        %v1755 = vadd.f32 %v1306, %v1754
        %1756 = vmatmul.f32.gmra.mxu0 %v799
        %v1757 = vpop.f32.mrf.mxu0
        %v1758 = vadd.f32 %v1309, %v1757
        %1759 = vmatmul.f32.gmra.mxu0 %v803
        %v1760 = vpop.f32.mrf.mxu0
        %v1761 = vadd.f32 %v1312, %v1760
        %1762 = vmatmul.f32.gmra.mxu0 %v807
        %v1763 = vpop.f32.mrf.mxu0
        %v1764 = vadd.f32 %v1315, %v1763
        %1765 = vmatmul.f32.gmra.mxu0 %v811
        %v1766 = vpop.f32.mrf.mxu0
        %v1767 = vadd.f32 %v1318, %v1766
        %1768 = vmatmul.f32.gmra.mxu0 %v815
        %v1769 = vpop.f32.mrf.mxu0
        %v1770 = vadd.f32 %v1321, %v1769
        %1771 = vmatmul.f32.gmra.mxu0 %v819
        %v1772 = vpop.f32.mrf.mxu0
        %v1773 = vadd.f32 %v1324, %v1772
        %1774 = vmatmul.f32.gmra.mxu0 %v823
        %v1775 = vpop.f32.mrf.mxu0
        %v1776 = vadd.f32 %v1327, %v1775
        %1777 = vmatmul.f32.gmra.mxu0 %v827
        %v1778 = vpop.f32.mrf.mxu0
        %v1779 = vadd.f32 %v1330, %v1778
        %1780 = vmatmul.f32.gmra.mxu0 %v831
        %v1781 = vpop.f32.mrf.mxu0
        %v1782 = vadd.f32 %v1333, %v1781
        %1783 = vmatmul.f32.gmra.mxu0 %v835
        %v1784 = vpop.f32.mrf.mxu0
        %v1785 = vadd.f32 %v1336, %v1784
        %1786 = vmatmul.f32.gmra.mxu0 %v839
        %v1787 = vpop.f32.mrf.mxu0
        %v1788 = vadd.f32 %v1339, %v1787
        %1789 = vmatmul.f32.gmra.mxu0 %v843
        %v1790 = vpop.f32.mrf.mxu0
        %v1791 = vadd.f32 %v1342, %v1790
        %1792 = vmatmul.f32.gmra.mxu0 %v847
        %v1793 = vpop.f32.mrf.mxu0
        %v1794 = vadd.f32 %v1345, %v1793
        %1795 = vmatmul.f32.gmra.mxu0 %v851
        %v1796 = vpop.f32.mrf.mxu0
        %v1797 = vadd.f32 %v1348, %v1796
        %1798 = vmatmul.f32.gmra.mxu0 %v855
        %v1799 = vpop.f32.mrf.mxu0
        %v1800 = vadd.f32 %v1351, %v1799
        %1801 = vmatmul.f32.gmra.mxu0 %v859
        %v1802 = vpop.f32.mrf.mxu0
        %v1803 = vadd.f32 %v1354, %v1802
        %1804 = vmatmul.f32.gmra.mxu0 %v863
        %v1805 = vpop.f32.mrf.mxu0
        %v1806 = vadd.f32 %v1357, %v1805
        %1807 = vmatmul.f32.gmra.mxu0 %v867
        %v1808 = vpop.f32.mrf.mxu0
        %v1809 = vadd.f32 %v1360, %v1808
        %1810 = vmatmul.f32.gmra.mxu0 %v871
        %v1811 = vpop.f32.mrf.mxu0
        %v1812 = vadd.f32 %v1363, %v1811
        %1813 = vmatmul.f32.gmra.mxu0 %v875
        %v1814 = vpop.f32.mrf.mxu0
        %v1815 = vadd.f32 %v1366, %v1814
        %1816 = vmatmul.f32.gmra.mxu0 %v879
        %v1817 = vpop.f32.mrf.mxu0
        %v1818 = vadd.f32 %v1369, %v1817
        %1819 = vmatmul.f32.gmra.mxu0 %v883
        %v1820 = vpop.f32.mrf.mxu0
        %v1821 = vadd.f32 %v1372, %v1820
        %1822 = vmatmul.f32.gmra.mxu0 %v887
        %v1823 = vpop.f32.mrf.mxu0
        %v1824 = vadd.f32 %v1375, %v1823
        %1825 = vmatmul.f32.gmra.mxu0 %v891
        %v1826 = vpop.f32.mrf.mxu0
        %v1827 = vadd.f32 %v1378, %v1826
        %1828 = vmatmul.f32.gmra.mxu0 %v895
        %v1829 = vpop.f32.mrf.mxu0
        %v1830 = vadd.f32 %v1381, %v1829
        %1831 = vmatmul.f32.gmra.mxu0 %v899
        %v1832 = vpop.f32.mrf.mxu0
        %v1833 = vadd.f32 %v1384, %v1832
        %1834 = vmatmul.f32.gmra.mxu0 %v903
        %v1835 = vpop.f32.mrf.mxu0
        %v1836 = vadd.f32 %v1387, %v1835
        %1837 = vmatmul.f32.gmra.mxu0 %v907
        %v1838 = vpop.f32.mrf.mxu0
        %v1839 = vadd.f32 %v1390, %v1838
        %1840 = vmatmul.f32.gmra.mxu0 %v911
        %v1841 = vpop.f32.mrf.mxu0
        %v1842 = vadd.f32 %v1393, %v1841
        %1843 = vmatmul.f32.gmra.mxu0 %v915
        %v1844 = vpop.f32.mrf.mxu0
        %v1845 = vadd.f32 %v1396, %v1844
        %1846 = vmatmul.f32.gmra.mxu0 %v919
        %v1847 = vpop.f32.mrf.mxu0
        %v1848 = vadd.f32 %v1399, %v1847
        %1849 = vmatmul.f32.gmra.mxu0 %v923
        %v1850 = vpop.f32.mrf.mxu0
        %v1851 = vadd.f32 %v1402, %v1850
        %1852 = vmatmul.f32.gmra.mxu0 %v927
        %v1853 = vpop.f32.mrf.mxu0
        %v1854 = vadd.f32 %v1405, %v1853
        %1855 = vmatmul.f32.gmra.mxu0 %v931
        %v1856 = vpop.f32.mrf.mxu0
        %v1857 = vadd.f32 %v1408, %v1856
        %1858 = vmatmul.f32.gmra.mxu0 %v935
        %v1859 = vpop.f32.mrf.mxu0
        %v1860 = vadd.f32 %v1411, %v1859
        %1861 = vmatmul.f32.gmra.mxu0 %v939
        %v1862 = vpop.f32.mrf.mxu0
        %v1863 = vadd.f32 %v1414, %v1862
        %1864 = vmatmul.f32.gmra.mxu0 %v943
        %v1865 = vpop.f32.mrf.mxu0
        %v1866 = vadd.f32 %v1417, %v1865
        %1867 = vmatmul.f32.gmra.mxu0 %v947
        %v1868 = vpop.f32.mrf.mxu0
        %v1869 = vadd.f32 %v1420, %v1868
        %1870 = vmatmul.f32.gmra.mxu0 %v951
        %v1871 = vpop.f32.mrf.mxu0
        %v1872 = vadd.f32 %v1423, %v1871
        %1873 = vmatmul.f32.gmra.mxu0 %v955
        %v1874 = vpop.f32.mrf.mxu0
        %v1875 = vadd.f32 %v1426, %v1874
        %1876 = vmatmul.f32.gmra.mxu0 %v959
        %v1877 = vpop.f32.mrf.mxu0
        %v1878 = vadd.f32 %v1429, %v1877
        %1879 = vmatmul.f32.gmra.mxu0 %v963
        %v1880 = vpop.f32.mrf.mxu0
        %v1881 = vadd.f32 %v1432, %v1880
        %1882 = vmatmul.f32.gmra.mxu0 %v967
        %v1883 = vpop.f32.mrf.mxu0
        %v1884 = vadd.f32 %v1435, %v1883
        %1885 = vmatmul.f32.gmra.mxu0 %v971
        %v1886 = vpop.f32.mrf.mxu0
        %v1887 = vadd.f32 %v1438, %v1886
        %1888 = vmatmul.f32.gmra.mxu0 %v975
        %v1889 = vpop.f32.mrf.mxu0
        %v1890 = vadd.f32 %v1441, %v1889
        %1891 = vmatmul.f32.gmra.mxu0 %v979
        %v1892 = vpop.f32.mrf.mxu0
        %v1893 = vadd.f32 %v1444, %v1892
        %1894 = vmatmul.f32.gmra.mxu0 %v983
        %v1895 = vpop.f32.mrf.mxu0
        %v1896 = vadd.f32 %v1447, %v1895
        %1897 = vmatmul.f32.gmra.mxu0 %v987
        %v1898 = vpop.f32.mrf.mxu0
        %v1899 = vadd.f32 %v1450, %v1898
        %1900 = vmatmul.f32.gmra.mxu0 %v991
        %v1901 = vpop.f32.mrf.mxu0
        %v1902 = vadd.f32 %v1453, %v1901
        %1903 = vmatmul.f32.gmra.mxu0 %v995
        %v1904 = vpop.f32.mrf.mxu0
        %v1905 = vadd.f32 %v1456, %v1904
        %1906 = vmatmul.f32.gmra.mxu0 %v999
        %v1907 = vpop.f32.mrf.mxu0
        %v1908 = vadd.f32 %v1459, %v1907
        %1909 = vmatmul.f32.gmra.mxu0 %v1003
        %v1910 = vpop.f32.mrf.mxu0
        %v1911 = vadd.f32 %v1462, %v1910
        %1912 = vmatmul.f32.gmra.mxu0 %v1007
        %v1913 = vpop.f32.mrf.mxu0
        %v1914 = vadd.f32 %v1465, %v1913
        %1915 = vmatmul.f32.gmra.mxu0 %v1011
        %v1916 = vpop.f32.mrf.mxu0
        %v1917 = vadd.f32 %v1468, %v1916
        %1918 = vmatmul.f32.gmra.mxu0 %v1015
        %v1919 = vpop.f32.mrf.mxu0
        %v1920 = vadd.f32 %v1471, %v1919
        %1921 = vmatmul.f32.gmra.mxu0 %v1019
        %v1922 = vpop.f32.mrf.mxu0
        %v1923 = vadd.f32 %v1474, %v1922
        %1924 = vmatmul.f32.gmra.mxu0 %v1023
        %v1925 = vpop.f32.mrf.mxu0
        %v1926 = vadd.f32 %v1477, %v1925
        %1927 = vmatmul.f32.gmra.mxu0 %v1027
        %v1928 = vpop.f32.mrf.mxu0
        %v1929 = vadd.f32 %v1480, %v1928
        %1930 = vmatmul.f32.gmra.mxu0 %v1031
        %v1931 = vpop.f32.mrf.mxu0
        %v1932 = vadd.f32 %v1483, %v1931
        %1933 = vmatmul.f32.gmra.mxu0 %v1035
        %v1934 = vpop.f32.mrf.mxu0
        %v1935 = vadd.f32 %v1486, %v1934
        %1936 = vmatmul.f32.gmra.mxu0 %v1039
        %v1937 = vpop.f32.mrf.mxu0
        %v1938 = vadd.f32 %v1489, %v1937
        %1939 = vdwg.mxu0
        %1940 = vmatpush.msra.mxu0 %v449
        %1941 = vmatpush.msra.mxu0 %v448
        %1942 = vmatpush.msra.mxu0 %v447
        %1943 = vmatpush.msra.mxu0 %v446
        %1944 = vmatpush.msra.mxu0 %v445
        %1945 = vmatpush.msra.mxu0 %v444
        %1946 = vmatpush.msra.mxu0 %v443
        %1947 = vmatpush.msra.mxu0 %v442
        %1948 = vmatpush.msra.mxu0 %v441
        %1949 = vmatpush.msra.mxu0 %v440
        %1950 = vmatpush.msra.mxu0 %v439
        %1951 = vmatpush.msra.mxu0 %v438
        %1952 = vmatpush.msra.mxu0 %v437
        %1953 = vmatpush.msra.mxu0 %v436
        %1954 = vmatpush.msra.mxu0 %v435
        %1955 = vmatpush.msra.mxu0 %v434
        %1956 = vmatmul.f32.gmra.mxu0 %v468
        %v1957 = vpop.f32.mrf.mxu0
        %v1958 = vadd.f32 %v1509, %v1957
        %1959 = vmatmul.f32.gmra.mxu0 %v472
        %v1960 = vpop.f32.mrf.mxu0
        %v1961 = vadd.f32 %v1512, %v1960
        %1962 = vmatmul.f32.gmra.mxu0 %v476
        %v1963 = vpop.f32.mrf.mxu0
        %v1964 = vadd.f32 %v1515, %v1963
        %1965 = vmatmul.f32.gmra.mxu0 %v480
        %v1966 = vpop.f32.mrf.mxu0
        %v1967 = vadd.f32 %v1518, %v1966
        %1968 = vmatmul.f32.gmra.mxu0 %v484
        %v1969 = vpop.f32.mrf.mxu0
        %v1970 = vadd.f32 %v1521, %v1969
        %1971 = vmatmul.f32.gmra.mxu0 %v488
        %v1972 = vpop.f32.mrf.mxu0
        %v1973 = vadd.f32 %v1524, %v1972
        %1974 = vmatmul.f32.gmra.mxu0 %v492
        %v1975 = vpop.f32.mrf.mxu0
        %v1976 = vadd.f32 %v1527, %v1975
        %1977 = vmatmul.f32.gmra.mxu0 %v496
        %v1978 = vpop.f32.mrf.mxu0
        %v1979 = vadd.f32 %v1530, %v1978
        %1980 = vmatmul.f32.gmra.mxu0 %v500
        %v1981 = vpop.f32.mrf.mxu0
        %v1982 = vadd.f32 %v1533, %v1981
        %1983 = vmatmul.f32.gmra.mxu0 %v504
        %v1984 = vpop.f32.mrf.mxu0
        %v1985 = vadd.f32 %v1536, %v1984
        %1986 = vmatmul.f32.gmra.mxu0 %v508
        %v1987 = vpop.f32.mrf.mxu0
        %v1988 = vadd.f32 %v1539, %v1987
        %1989 = vmatmul.f32.gmra.mxu0 %v512
        %v1990 = vpop.f32.mrf.mxu0
        %v1991 = vadd.f32 %v1542, %v1990
        %1992 = vmatmul.f32.gmra.mxu0 %v516
        %v1993 = vpop.f32.mrf.mxu0
        %v1994 = vadd.f32 %v1545, %v1993
        %1995 = vmatmul.f32.gmra.mxu0 %v520
        %v1996 = vpop.f32.mrf.mxu0
        %v1997 = vadd.f32 %v1548, %v1996
        %1998 = vmatmul.f32.gmra.mxu0 %v524
        %v1999 = vpop.f32.mrf.mxu0
        %v2000 = vadd.f32 %v1551, %v1999
        %2001 = vmatmul.f32.gmra.mxu0 %v528
        %v2002 = vpop.f32.mrf.mxu0
        %v2003 = vadd.f32 %v1554, %v2002
        %2004 = vmatmul.f32.gmra.mxu0 %v532
        %v2005 = vpop.f32.mrf.mxu0
        %v2006 = vadd.f32 %v1557, %v2005
        %2007 = vmatmul.f32.gmra.mxu0 %v536
        %v2008 = vpop.f32.mrf.mxu0
        %v2009 = vadd.f32 %v1560, %v2008
        %2010 = vmatmul.f32.gmra.mxu0 %v540
        %v2011 = vpop.f32.mrf.mxu0
        %v2012 = vadd.f32 %v1563, %v2011
        %2013 = vmatmul.f32.gmra.mxu0 %v544
        %v2014 = vpop.f32.mrf.mxu0
        %v2015 = vadd.f32 %v1566, %v2014
        %2016 = vmatmul.f32.gmra.mxu0 %v548
        %v2017 = vpop.f32.mrf.mxu0
        %v2018 = vadd.f32 %v1569, %v2017
        %2019 = vmatmul.f32.gmra.mxu0 %v552
        %v2020 = vpop.f32.mrf.mxu0
        %v2021 = vadd.f32 %v1572, %v2020
        %2022 = vmatmul.f32.gmra.mxu0 %v556
        %v2023 = vpop.f32.mrf.mxu0
        %v2024 = vadd.f32 %v1575, %v2023
        %2025 = vmatmul.f32.gmra.mxu0 %v560
        %v2026 = vpop.f32.mrf.mxu0
        %v2027 = vadd.f32 %v1578, %v2026
        %2028 = vmatmul.f32.gmra.mxu0 %v564
        %v2029 = vpop.f32.mrf.mxu0
        %v2030 = vadd.f32 %v1581, %v2029
        %2031 = vmatmul.f32.gmra.mxu0 %v568
        %v2032 = vpop.f32.mrf.mxu0
        %v2033 = vadd.f32 %v1584, %v2032
        %2034 = vmatmul.f32.gmra.mxu0 %v572
        %v2035 = vpop.f32.mrf.mxu0
        %v2036 = vadd.f32 %v1587, %v2035
        %2037 = vmatmul.f32.gmra.mxu0 %v576
        %v2038 = vpop.f32.mrf.mxu0
        %v2039 = vadd.f32 %v1590, %v2038
        %2040 = vmatmul.f32.gmra.mxu0 %v580
        %v2041 = vpop.f32.mrf.mxu0
        %v2042 = vadd.f32 %v1593, %v2041
        %2043 = vmatmul.f32.gmra.mxu0 %v584
        %v2044 = vpop.f32.mrf.mxu0
        %v2045 = vadd.f32 %v1596, %v2044
        %2046 = vmatmul.f32.gmra.mxu0 %v588
        %v2047 = vpop.f32.mrf.mxu0
        %v2048 = vadd.f32 %v1599, %v2047
        %2049 = vmatmul.f32.gmra.mxu0 %v592
        %v2050 = vpop.f32.mrf.mxu0
        %v2051 = vadd.f32 %v1602, %v2050
        %2052 = vmatmul.f32.gmra.mxu0 %v596
        %v2053 = vpop.f32.mrf.mxu0
        %v2054 = vadd.f32 %v1605, %v2053
        %2055 = vmatmul.f32.gmra.mxu0 %v600
        %v2056 = vpop.f32.mrf.mxu0
        %v2057 = vadd.f32 %v1608, %v2056
        %2058 = vmatmul.f32.gmra.mxu0 %v604
        %v2059 = vpop.f32.mrf.mxu0
        %v2060 = vadd.f32 %v1611, %v2059
        %2061 = vmatmul.f32.gmra.mxu0 %v608
        %v2062 = vpop.f32.mrf.mxu0
        %v2063 = vadd.f32 %v1614, %v2062
        %2064 = vmatmul.f32.gmra.mxu0 %v612
        %v2065 = vpop.f32.mrf.mxu0
        %v2066 = vadd.f32 %v1617, %v2065
        %2067 = vmatmul.f32.gmra.mxu0 %v616
        %v2068 = vpop.f32.mrf.mxu0
        %v2069 = vadd.f32 %v1620, %v2068
        %2070 = vmatmul.f32.gmra.mxu0 %v620
        %v2071 = vpop.f32.mrf.mxu0
        %v2072 = vadd.f32 %v1623, %v2071
        %2073 = vmatmul.f32.gmra.mxu0 %v624
        %v2074 = vpop.f32.mrf.mxu0
        %v2075 = vadd.f32 %v1626, %v2074
        %2076 = vmatmul.f32.gmra.mxu0 %v628
        %v2077 = vpop.f32.mrf.mxu0
        %v2078 = vadd.f32 %v1629, %v2077
        %2079 = vmatmul.f32.gmra.mxu0 %v632
        %v2080 = vpop.f32.mrf.mxu0
        %v2081 = vadd.f32 %v1632, %v2080
        %2082 = vmatmul.f32.gmra.mxu0 %v636
        %v2083 = vpop.f32.mrf.mxu0
        %v2084 = vadd.f32 %v1635, %v2083
        %2085 = vmatmul.f32.gmra.mxu0 %v640
        %v2086 = vpop.f32.mrf.mxu0
        %v2087 = vadd.f32 %v1638, %v2086
        %2088 = vmatmul.f32.gmra.mxu0 %v644
        %v2089 = vpop.f32.mrf.mxu0
        %v2090 = vadd.f32 %v1641, %v2089
        %2091 = vmatmul.f32.gmra.mxu0 %v648
        %v2092 = vpop.f32.mrf.mxu0
        %v2093 = vadd.f32 %v1644, %v2092
        %2094 = vmatmul.f32.gmra.mxu0 %v652
        %v2095 = vpop.f32.mrf.mxu0
        %v2096 = vadd.f32 %v1647, %v2095
        %2097 = vmatmul.f32.gmra.mxu0 %v656
        %v2098 = vpop.f32.mrf.mxu0
        %v2099 = vadd.f32 %v1650, %v2098
        %2100 = vmatmul.f32.gmra.mxu0 %v660
        %v2101 = vpop.f32.mrf.mxu0
        %v2102 = vadd.f32 %v1653, %v2101
        %2103 = vmatmul.f32.gmra.mxu0 %v664
        %v2104 = vpop.f32.mrf.mxu0
        %v2105 = vadd.f32 %v1656, %v2104
        %2106 = vmatmul.f32.gmra.mxu0 %v668
        %v2107 = vpop.f32.mrf.mxu0
        %v2108 = vadd.f32 %v1659, %v2107
        %2109 = vmatmul.f32.gmra.mxu0 %v672
        %v2110 = vpop.f32.mrf.mxu0
        %v2111 = vadd.f32 %v1662, %v2110
        %2112 = vmatmul.f32.gmra.mxu0 %v676
        %v2113 = vpop.f32.mrf.mxu0
        %v2114 = vadd.f32 %v1665, %v2113
        %2115 = vmatmul.f32.gmra.mxu0 %v680
        %v2116 = vpop.f32.mrf.mxu0
        %v2117 = vadd.f32 %v1668, %v2116
        %2118 = vmatmul.f32.gmra.mxu0 %v684
        %v2119 = vpop.f32.mrf.mxu0
        %v2120 = vadd.f32 %v1671, %v2119
        %2121 = vmatmul.f32.gmra.mxu0 %v688
        %v2122 = vpop.f32.mrf.mxu0
        %v2123 = vadd.f32 %v1674, %v2122
        %2124 = vmatmul.f32.gmra.mxu0 %v692
        %v2125 = vpop.f32.mrf.mxu0
        %v2126 = vadd.f32 %v1677, %v2125
        %2127 = vmatmul.f32.gmra.mxu0 %v696
        %v2128 = vpop.f32.mrf.mxu0
        %v2129 = vadd.f32 %v1680, %v2128
        %2130 = vmatmul.f32.gmra.mxu0 %v700
        %v2131 = vpop.f32.mrf.mxu0
        %v2132 = vadd.f32 %v1683, %v2131
        %2133 = vmatmul.f32.gmra.mxu0 %v704
        %v2134 = vpop.f32.mrf.mxu0
        %v2135 = vadd.f32 %v1686, %v2134
        %2136 = vmatmul.f32.gmra.mxu0 %v708
        %v2137 = vpop.f32.mrf.mxu0
        %v2138 = vadd.f32 %v1689, %v2137
        %2139 = vmatmul.f32.gmra.mxu0 %v712
        %v2140 = vpop.f32.mrf.mxu0
        %v2141 = vadd.f32 %v1692, %v2140
        %2142 = vmatmul.f32.gmra.mxu0 %v716
        %v2143 = vpop.f32.mrf.mxu0
        %v2144 = vadd.f32 %v1695, %v2143
        %2145 = vmatmul.f32.gmra.mxu0 %v720
        %v2146 = vpop.f32.mrf.mxu0
        %v2147 = vadd.f32 %v1698, %v2146
        %2148 = vmatmul.f32.gmra.mxu0 %v724
        %v2149 = vpop.f32.mrf.mxu0
        %v2150 = vadd.f32 %v1701, %v2149
        %2151 = vmatmul.f32.gmra.mxu0 %v728
        %v2152 = vpop.f32.mrf.mxu0
        %v2153 = vadd.f32 %v1704, %v2152
        %2154 = vmatmul.f32.gmra.mxu0 %v732
        %v2155 = vpop.f32.mrf.mxu0
        %v2156 = vadd.f32 %v1707, %v2155
        %2157 = vmatmul.f32.gmra.mxu0 %v736
        %v2158 = vpop.f32.mrf.mxu0
        %v2159 = vadd.f32 %v1710, %v2158
        %2160 = vmatmul.f32.gmra.mxu0 %v740
        %v2161 = vpop.f32.mrf.mxu0
        %v2162 = vadd.f32 %v1713, %v2161
        %2163 = vmatmul.f32.gmra.mxu0 %v744
        %v2164 = vpop.f32.mrf.mxu0
        %v2165 = vadd.f32 %v1716, %v2164
        %2166 = vmatmul.f32.gmra.mxu0 %v748
        %v2167 = vpop.f32.mrf.mxu0
        %v2168 = vadd.f32 %v1719, %v2167
        %2169 = vmatmul.f32.gmra.mxu0 %v752
        %v2170 = vpop.f32.mrf.mxu0
        %v2171 = vadd.f32 %v1722, %v2170
        %2172 = vmatmul.f32.gmra.mxu0 %v756
        %v2173 = vpop.f32.mrf.mxu0
        %v2174 = vadd.f32 %v1725, %v2173
        %2175 = vmatmul.f32.gmra.mxu0 %v760
        %v2176 = vpop.f32.mrf.mxu0
        %v2177 = vadd.f32 %v1728, %v2176
        %2178 = vmatmul.f32.gmra.mxu0 %v764
        %v2179 = vpop.f32.mrf.mxu0
        %v2180 = vadd.f32 %v1731, %v2179
        %2181 = vmatmul.f32.gmra.mxu0 %v768
        %v2182 = vpop.f32.mrf.mxu0
        %v2183 = vadd.f32 %v1734, %v2182
        %2184 = vmatmul.f32.gmra.mxu0 %v772
        %v2185 = vpop.f32.mrf.mxu0
        %v2186 = vadd.f32 %v1737, %v2185
        %2187 = vmatmul.f32.gmra.mxu0 %v776
        %v2188 = vpop.f32.mrf.mxu0
        %v2189 = vadd.f32 %v1740, %v2188
        %2190 = vmatmul.f32.gmra.mxu0 %v780
        %v2191 = vpop.f32.mrf.mxu0
        %v2192 = vadd.f32 %v1743, %v2191
        %2193 = vmatmul.f32.gmra.mxu0 %v784
        %v2194 = vpop.f32.mrf.mxu0
        %v2195 = vadd.f32 %v1746, %v2194
        %2196 = vmatmul.f32.gmra.mxu0 %v788
        %v2197 = vpop.f32.mrf.mxu0
        %v2198 = vadd.f32 %v1749, %v2197
        %2199 = vmatmul.f32.gmra.mxu0 %v792
        %v2200 = vpop.f32.mrf.mxu0
        %v2201 = vadd.f32 %v1752, %v2200
        %2202 = vmatmul.f32.gmra.mxu0 %v796
        %v2203 = vpop.f32.mrf.mxu0
        %v2204 = vadd.f32 %v1755, %v2203
        %2205 = vmatmul.f32.gmra.mxu0 %v800
        %v2206 = vpop.f32.mrf.mxu0
        %v2207 = vadd.f32 %v1758, %v2206
        %2208 = vmatmul.f32.gmra.mxu0 %v804
        %v2209 = vpop.f32.mrf.mxu0
        %v2210 = vadd.f32 %v1761, %v2209
        %2211 = vmatmul.f32.gmra.mxu0 %v808
        %v2212 = vpop.f32.mrf.mxu0
        %v2213 = vadd.f32 %v1764, %v2212
        %2214 = vmatmul.f32.gmra.mxu0 %v812
        %v2215 = vpop.f32.mrf.mxu0
        %v2216 = vadd.f32 %v1767, %v2215
        %2217 = vmatmul.f32.gmra.mxu0 %v816
        %v2218 = vpop.f32.mrf.mxu0
        %v2219 = vadd.f32 %v1770, %v2218
        %2220 = vmatmul.f32.gmra.mxu0 %v820
        %v2221 = vpop.f32.mrf.mxu0
        %v2222 = vadd.f32 %v1773, %v2221
        %2223 = vmatmul.f32.gmra.mxu0 %v824
        %v2224 = vpop.f32.mrf.mxu0
        %v2225 = vadd.f32 %v1776, %v2224
        %2226 = vmatmul.f32.gmra.mxu0 %v828
        %v2227 = vpop.f32.mrf.mxu0
        %v2228 = vadd.f32 %v1779, %v2227
        %2229 = vmatmul.f32.gmra.mxu0 %v832
        %v2230 = vpop.f32.mrf.mxu0
        %v2231 = vadd.f32 %v1782, %v2230
        %2232 = vmatmul.f32.gmra.mxu0 %v836
        %v2233 = vpop.f32.mrf.mxu0
        %v2234 = vadd.f32 %v1785, %v2233
        %2235 = vmatmul.f32.gmra.mxu0 %v840
        %v2236 = vpop.f32.mrf.mxu0
        %v2237 = vadd.f32 %v1788, %v2236
        %2238 = vmatmul.f32.gmra.mxu0 %v844
        %v2239 = vpop.f32.mrf.mxu0
        %v2240 = vadd.f32 %v1791, %v2239
        %2241 = vmatmul.f32.gmra.mxu0 %v848
        %v2242 = vpop.f32.mrf.mxu0
        %v2243 = vadd.f32 %v1794, %v2242
        %2244 = vmatmul.f32.gmra.mxu0 %v852
        %v2245 = vpop.f32.mrf.mxu0
        %v2246 = vadd.f32 %v1797, %v2245
        %2247 = vmatmul.f32.gmra.mxu0 %v856
        %v2248 = vpop.f32.mrf.mxu0
        %v2249 = vadd.f32 %v1800, %v2248
        %2250 = vmatmul.f32.gmra.mxu0 %v860
        %v2251 = vpop.f32.mrf.mxu0
        %v2252 = vadd.f32 %v1803, %v2251
        %2253 = vmatmul.f32.gmra.mxu0 %v864
        %v2254 = vpop.f32.mrf.mxu0
        %v2255 = vadd.f32 %v1806, %v2254
        %2256 = vmatmul.f32.gmra.mxu0 %v868
        %v2257 = vpop.f32.mrf.mxu0
        %v2258 = vadd.f32 %v1809, %v2257
        %2259 = vmatmul.f32.gmra.mxu0 %v872
        %v2260 = vpop.f32.mrf.mxu0
        %v2261 = vadd.f32 %v1812, %v2260
        %2262 = vmatmul.f32.gmra.mxu0 %v876
        %v2263 = vpop.f32.mrf.mxu0
        %v2264 = vadd.f32 %v1815, %v2263
        %2265 = vmatmul.f32.gmra.mxu0 %v880
        %v2266 = vpop.f32.mrf.mxu0
        %v2267 = vadd.f32 %v1818, %v2266
        %2268 = vmatmul.f32.gmra.mxu0 %v884
        %v2269 = vpop.f32.mrf.mxu0
        %v2270 = vadd.f32 %v1821, %v2269
        %2271 = vmatmul.f32.gmra.mxu0 %v888
        %v2272 = vpop.f32.mrf.mxu0
        %v2273 = vadd.f32 %v1824, %v2272
        %2274 = vmatmul.f32.gmra.mxu0 %v892
        %v2275 = vpop.f32.mrf.mxu0
        %v2276 = vadd.f32 %v1827, %v2275
        %2277 = vmatmul.f32.gmra.mxu0 %v896
        %v2278 = vpop.f32.mrf.mxu0
        %v2279 = vadd.f32 %v1830, %v2278
        %2280 = vmatmul.f32.gmra.mxu0 %v900
        %v2281 = vpop.f32.mrf.mxu0
        %v2282 = vadd.f32 %v1833, %v2281
        %2283 = vmatmul.f32.gmra.mxu0 %v904
        %v2284 = vpop.f32.mrf.mxu0
        %v2285 = vadd.f32 %v1836, %v2284
        %2286 = vmatmul.f32.gmra.mxu0 %v908
        %v2287 = vpop.f32.mrf.mxu0
        %v2288 = vadd.f32 %v1839, %v2287
        %2289 = vmatmul.f32.gmra.mxu0 %v912
        %v2290 = vpop.f32.mrf.mxu0
        %v2291 = vadd.f32 %v1842, %v2290
        %2292 = vmatmul.f32.gmra.mxu0 %v916
        %v2293 = vpop.f32.mrf.mxu0
        %v2294 = vadd.f32 %v1845, %v2293
        %2295 = vmatmul.f32.gmra.mxu0 %v920
        %v2296 = vpop.f32.mrf.mxu0
        %v2297 = vadd.f32 %v1848, %v2296
        %2298 = vmatmul.f32.gmra.mxu0 %v924
        %v2299 = vpop.f32.mrf.mxu0
        %v2300 = vadd.f32 %v1851, %v2299
        %2301 = vmatmul.f32.gmra.mxu0 %v928
        %v2302 = vpop.f32.mrf.mxu0
        %v2303 = vadd.f32 %v1854, %v2302
        %2304 = vmatmul.f32.gmra.mxu0 %v932
        %v2305 = vpop.f32.mrf.mxu0
        %v2306 = vadd.f32 %v1857, %v2305
        %2307 = vmatmul.f32.gmra.mxu0 %v936
        %v2308 = vpop.f32.mrf.mxu0
        %v2309 = vadd.f32 %v1860, %v2308
        %2310 = vmatmul.f32.gmra.mxu0 %v940
        %v2311 = vpop.f32.mrf.mxu0
        %v2312 = vadd.f32 %v1863, %v2311
        %2313 = vmatmul.f32.gmra.mxu0 %v944
        %v2314 = vpop.f32.mrf.mxu0
        %v2315 = vadd.f32 %v1866, %v2314
        %2316 = vmatmul.f32.gmra.mxu0 %v948
        %v2317 = vpop.f32.mrf.mxu0
        %v2318 = vadd.f32 %v1869, %v2317
        %2319 = vmatmul.f32.gmra.mxu0 %v952
        %v2320 = vpop.f32.mrf.mxu0
        %v2321 = vadd.f32 %v1872, %v2320
        %2322 = vmatmul.f32.gmra.mxu0 %v956
        %v2323 = vpop.f32.mrf.mxu0
        %v2324 = vadd.f32 %v1875, %v2323
        %2325 = vmatmul.f32.gmra.mxu0 %v960
        %v2326 = vpop.f32.mrf.mxu0
        %v2327 = vadd.f32 %v1878, %v2326
        %2328 = vmatmul.f32.gmra.mxu0 %v964
        %v2329 = vpop.f32.mrf.mxu0
        %v2330 = vadd.f32 %v1881, %v2329
        %2331 = vmatmul.f32.gmra.mxu0 %v968
        %v2332 = vpop.f32.mrf.mxu0
        %v2333 = vadd.f32 %v1884, %v2332
        %2334 = vmatmul.f32.gmra.mxu0 %v972
        %v2335 = vpop.f32.mrf.mxu0
        %v2336 = vadd.f32 %v1887, %v2335
        %2337 = vmatmul.f32.gmra.mxu0 %v976
        %v2338 = vpop.f32.mrf.mxu0
        %v2339 = vadd.f32 %v1890, %v2338
        %2340 = vmatmul.f32.gmra.mxu0 %v980
        %v2341 = vpop.f32.mrf.mxu0
        %v2342 = vadd.f32 %v1893, %v2341
        %2343 = vmatmul.f32.gmra.mxu0 %v984
        %v2344 = vpop.f32.mrf.mxu0
        %v2345 = vadd.f32 %v1896, %v2344
        %2346 = vmatmul.f32.gmra.mxu0 %v988
        %v2347 = vpop.f32.mrf.mxu0
        %v2348 = vadd.f32 %v1899, %v2347
        %2349 = vmatmul.f32.gmra.mxu0 %v992
        %v2350 = vpop.f32.mrf.mxu0
        %v2351 = vadd.f32 %v1902, %v2350
        %2352 = vmatmul.f32.gmra.mxu0 %v996
        %v2353 = vpop.f32.mrf.mxu0
        %v2354 = vadd.f32 %v1905, %v2353
        %2355 = vmatmul.f32.gmra.mxu0 %v1000
        %v2356 = vpop.f32.mrf.mxu0
        %v2357 = vadd.f32 %v1908, %v2356
        %2358 = vmatmul.f32.gmra.mxu0 %v1004
        %v2359 = vpop.f32.mrf.mxu0
        %v2360 = vadd.f32 %v1911, %v2359
        %2361 = vmatmul.f32.gmra.mxu0 %v1008
        %v2362 = vpop.f32.mrf.mxu0
        %v2363 = vadd.f32 %v1914, %v2362
        %2364 = vmatmul.f32.gmra.mxu0 %v1012
        %v2365 = vpop.f32.mrf.mxu0
        %v2366 = vadd.f32 %v1917, %v2365
        %2367 = vmatmul.f32.gmra.mxu0 %v1016
        %v2368 = vpop.f32.mrf.mxu0
        %v2369 = vadd.f32 %v1920, %v2368
        %2370 = vmatmul.f32.gmra.mxu0 %v1020
        %v2371 = vpop.f32.mrf.mxu0
        %v2372 = vadd.f32 %v1923, %v2371
        %2373 = vmatmul.f32.gmra.mxu0 %v1024
        %v2374 = vpop.f32.mrf.mxu0
        %v2375 = vadd.f32 %v1926, %v2374
        %2376 = vmatmul.f32.gmra.mxu0 %v1028
        %v2377 = vpop.f32.mrf.mxu0
        %v2378 = vadd.f32 %v1929, %v2377
        %2379 = vmatmul.f32.gmra.mxu0 %v1032
        %v2380 = vpop.f32.mrf.mxu0
        %v2381 = vadd.f32 %v1932, %v2380
        %2382 = vmatmul.f32.gmra.mxu0 %v1036
        %v2383 = vpop.f32.mrf.mxu0
        %v2384 = vadd.f32 %v1935, %v2383
        %2385 = vmatmul.f32.gmra.mxu0 %v1040
        %v2386 = vpop.f32.mrf.mxu0
        %v2387 = vadd.f32 %v1938, %v2386
        %2388 = vdwg.mxu0
        %2389 = vmatpush.msra.mxu0 %v465
        %2390 = vmatpush.msra.mxu0 %v464
        %2391 = vmatpush.msra.mxu0 %v463
        %2392 = vmatpush.msra.mxu0 %v462
        %2393 = vmatpush.msra.mxu0 %v461
        %2394 = vmatpush.msra.mxu0 %v460
        %2395 = vmatpush.msra.mxu0 %v459
        %2396 = vmatpush.msra.mxu0 %v458
        %2397 = vmatpush.msra.mxu0 %v457
        %2398 = vmatpush.msra.mxu0 %v456
        %2399 = vmatpush.msra.mxu0 %v455
        %2400 = vmatpush.msra.mxu0 %v454
        %2401 = vmatpush.msra.mxu0 %v453
        %2402 = vmatpush.msra.mxu0 %v452
        %2403 = vmatpush.msra.mxu0 %v451
        %2404 = vmatpush.msra.mxu0 %v450
        %2405 = vmatmul.f32.gmra.mxu0 %v469
        %v2406 = vpop.f32.mrf.mxu0
        %v2407 = vadd.f32 %v1958, %v2406
        %2408 = vmatmul.f32.gmra.mxu0 %v473
        %v2409 = vpop.f32.mrf.mxu0
        %v2410 = vadd.f32 %v1961, %v2409
        %2411 = vmatmul.f32.gmra.mxu0 %v477
        %v2412 = vpop.f32.mrf.mxu0
        %v2413 = vadd.f32 %v1964, %v2412
        %2414 = vmatmul.f32.gmra.mxu0 %v481
        %v2415 = vpop.f32.mrf.mxu0
        %v2416 = vadd.f32 %v1967, %v2415
        %2417 = vmatmul.f32.gmra.mxu0 %v485
        %v2418 = vpop.f32.mrf.mxu0
        %v2419 = vadd.f32 %v1970, %v2418
        %2420 = vmatmul.f32.gmra.mxu0 %v489
        %v2421 = vpop.f32.mrf.mxu0
        %v2422 = vadd.f32 %v1973, %v2421
        %2423 = vmatmul.f32.gmra.mxu0 %v493
        %v2424 = vpop.f32.mrf.mxu0
        %v2425 = vadd.f32 %v1976, %v2424
        %2426 = vmatmul.f32.gmra.mxu0 %v497
        %v2427 = vpop.f32.mrf.mxu0
        %v2428 = vadd.f32 %v1979, %v2427
        %2429 = vmatmul.f32.gmra.mxu0 %v501
        %v2430 = vpop.f32.mrf.mxu0
        %v2431 = vadd.f32 %v1982, %v2430
        %2432 = vmatmul.f32.gmra.mxu0 %v505
        %v2433 = vpop.f32.mrf.mxu0
        %v2434 = vadd.f32 %v1985, %v2433
        %2435 = vmatmul.f32.gmra.mxu0 %v509
        %v2436 = vpop.f32.mrf.mxu0
        %v2437 = vadd.f32 %v1988, %v2436
        %2438 = vmatmul.f32.gmra.mxu0 %v513
        %v2439 = vpop.f32.mrf.mxu0
        %v2440 = vadd.f32 %v1991, %v2439
        %2441 = vmatmul.f32.gmra.mxu0 %v517
        %v2442 = vpop.f32.mrf.mxu0
        %v2443 = vadd.f32 %v1994, %v2442
        %2444 = vmatmul.f32.gmra.mxu0 %v521
        %v2445 = vpop.f32.mrf.mxu0
        %v2446 = vadd.f32 %v1997, %v2445
        %2447 = vmatmul.f32.gmra.mxu0 %v525
        %v2448 = vpop.f32.mrf.mxu0
        %v2449 = vadd.f32 %v2000, %v2448
        %2450 = vmatmul.f32.gmra.mxu0 %v529
        %v2451 = vpop.f32.mrf.mxu0
        %v2452 = vadd.f32 %v2003, %v2451
        %2453 = vmatmul.f32.gmra.mxu0 %v533
        %v2454 = vpop.f32.mrf.mxu0
        %v2455 = vadd.f32 %v2006, %v2454
        %2456 = vmatmul.f32.gmra.mxu0 %v537
        %v2457 = vpop.f32.mrf.mxu0
        %v2458 = vadd.f32 %v2009, %v2457
        %2459 = vmatmul.f32.gmra.mxu0 %v541
        %v2460 = vpop.f32.mrf.mxu0
        %v2461 = vadd.f32 %v2012, %v2460
        %2462 = vmatmul.f32.gmra.mxu0 %v545
        %v2463 = vpop.f32.mrf.mxu0
        %v2464 = vadd.f32 %v2015, %v2463
        %2465 = vmatmul.f32.gmra.mxu0 %v549
        %v2466 = vpop.f32.mrf.mxu0
        %v2467 = vadd.f32 %v2018, %v2466
        %2468 = vmatmul.f32.gmra.mxu0 %v553
        %v2469 = vpop.f32.mrf.mxu0
        %v2470 = vadd.f32 %v2021, %v2469
        %2471 = vmatmul.f32.gmra.mxu0 %v557
        %v2472 = vpop.f32.mrf.mxu0
        %v2473 = vadd.f32 %v2024, %v2472
        %2474 = vmatmul.f32.gmra.mxu0 %v561
        %v2475 = vpop.f32.mrf.mxu0
        %v2476 = vadd.f32 %v2027, %v2475
        %2477 = vmatmul.f32.gmra.mxu0 %v565
        %v2478 = vpop.f32.mrf.mxu0
        %v2479 = vadd.f32 %v2030, %v2478
        %2480 = vmatmul.f32.gmra.mxu0 %v569
        %v2481 = vpop.f32.mrf.mxu0
        %v2482 = vadd.f32 %v2033, %v2481
        %2483 = vmatmul.f32.gmra.mxu0 %v573
        %v2484 = vpop.f32.mrf.mxu0
        %v2485 = vadd.f32 %v2036, %v2484
        %2486 = vmatmul.f32.gmra.mxu0 %v577
        %v2487 = vpop.f32.mrf.mxu0
        %v2488 = vadd.f32 %v2039, %v2487
        %2489 = vmatmul.f32.gmra.mxu0 %v581
        %v2490 = vpop.f32.mrf.mxu0
        %v2491 = vadd.f32 %v2042, %v2490
        %2492 = vmatmul.f32.gmra.mxu0 %v585
        %v2493 = vpop.f32.mrf.mxu0
        %v2494 = vadd.f32 %v2045, %v2493
        %2495 = vmatmul.f32.gmra.mxu0 %v589
        %v2496 = vpop.f32.mrf.mxu0
        %v2497 = vadd.f32 %v2048, %v2496
        %2498 = vmatmul.f32.gmra.mxu0 %v593
        %v2499 = vpop.f32.mrf.mxu0
        %v2500 = vadd.f32 %v2051, %v2499
        %2501 = vmatmul.f32.gmra.mxu0 %v597
        %v2502 = vpop.f32.mrf.mxu0
        %v2503 = vadd.f32 %v2054, %v2502
        %2504 = vmatmul.f32.gmra.mxu0 %v601
        %v2505 = vpop.f32.mrf.mxu0
        %v2506 = vadd.f32 %v2057, %v2505
        %2507 = vmatmul.f32.gmra.mxu0 %v605
        %v2508 = vpop.f32.mrf.mxu0
        %v2509 = vadd.f32 %v2060, %v2508
        %2510 = vmatmul.f32.gmra.mxu0 %v609
        %v2511 = vpop.f32.mrf.mxu0
        %v2512 = vadd.f32 %v2063, %v2511
        %2513 = vmatmul.f32.gmra.mxu0 %v613
        %v2514 = vpop.f32.mrf.mxu0
        %v2515 = vadd.f32 %v2066, %v2514
        %2516 = vmatmul.f32.gmra.mxu0 %v617
        %v2517 = vpop.f32.mrf.mxu0
        %v2518 = vadd.f32 %v2069, %v2517
        %2519 = vmatmul.f32.gmra.mxu0 %v621
        %v2520 = vpop.f32.mrf.mxu0
        %v2521 = vadd.f32 %v2072, %v2520
        %2522 = vmatmul.f32.gmra.mxu0 %v625
        %v2523 = vpop.f32.mrf.mxu0
        %v2524 = vadd.f32 %v2075, %v2523
        %2525 = vmatmul.f32.gmra.mxu0 %v629
        %v2526 = vpop.f32.mrf.mxu0
        %v2527 = vadd.f32 %v2078, %v2526
        %2528 = vmatmul.f32.gmra.mxu0 %v633
        %v2529 = vpop.f32.mrf.mxu0
        %v2530 = vadd.f32 %v2081, %v2529
        %2531 = vmatmul.f32.gmra.mxu0 %v637
        %v2532 = vpop.f32.mrf.mxu0
        %v2533 = vadd.f32 %v2084, %v2532
        %2534 = vmatmul.f32.gmra.mxu0 %v641
        %v2535 = vpop.f32.mrf.mxu0
        %v2536 = vadd.f32 %v2087, %v2535
        %2537 = vmatmul.f32.gmra.mxu0 %v645
        %v2538 = vpop.f32.mrf.mxu0
        %v2539 = vadd.f32 %v2090, %v2538
        %2540 = vmatmul.f32.gmra.mxu0 %v649
        %v2541 = vpop.f32.mrf.mxu0
        %v2542 = vadd.f32 %v2093, %v2541
        %2543 = vmatmul.f32.gmra.mxu0 %v653
        %v2544 = vpop.f32.mrf.mxu0
        %v2545 = vadd.f32 %v2096, %v2544
        %2546 = vmatmul.f32.gmra.mxu0 %v657
        %v2547 = vpop.f32.mrf.mxu0
        %v2548 = vadd.f32 %v2099, %v2547
        %2549 = vmatmul.f32.gmra.mxu0 %v661
        %v2550 = vpop.f32.mrf.mxu0
        %v2551 = vadd.f32 %v2102, %v2550
        %2552 = vmatmul.f32.gmra.mxu0 %v665
        %v2553 = vpop.f32.mrf.mxu0
        %v2554 = vadd.f32 %v2105, %v2553
        %2555 = vmatmul.f32.gmra.mxu0 %v669
        %v2556 = vpop.f32.mrf.mxu0
        %v2557 = vadd.f32 %v2108, %v2556
        %2558 = vmatmul.f32.gmra.mxu0 %v673
        %v2559 = vpop.f32.mrf.mxu0
        %v2560 = vadd.f32 %v2111, %v2559
        %2561 = vmatmul.f32.gmra.mxu0 %v677
        %v2562 = vpop.f32.mrf.mxu0
        %v2563 = vadd.f32 %v2114, %v2562
        %2564 = vmatmul.f32.gmra.mxu0 %v681
        %v2565 = vpop.f32.mrf.mxu0
        %v2566 = vadd.f32 %v2117, %v2565
        %2567 = vmatmul.f32.gmra.mxu0 %v685
        %v2568 = vpop.f32.mrf.mxu0
        %v2569 = vadd.f32 %v2120, %v2568
        %2570 = vmatmul.f32.gmra.mxu0 %v689
        %v2571 = vpop.f32.mrf.mxu0
        %v2572 = vadd.f32 %v2123, %v2571
        %2573 = vmatmul.f32.gmra.mxu0 %v693
        %v2574 = vpop.f32.mrf.mxu0
        %v2575 = vadd.f32 %v2126, %v2574
        %2576 = vmatmul.f32.gmra.mxu0 %v697
        %v2577 = vpop.f32.mrf.mxu0
        %v2578 = vadd.f32 %v2129, %v2577
        %2579 = vmatmul.f32.gmra.mxu0 %v701
        %v2580 = vpop.f32.mrf.mxu0
        %v2581 = vadd.f32 %v2132, %v2580
        %2582 = vmatmul.f32.gmra.mxu0 %v705
        %v2583 = vpop.f32.mrf.mxu0
        %v2584 = vadd.f32 %v2135, %v2583
        %2585 = vmatmul.f32.gmra.mxu0 %v709
        %v2586 = vpop.f32.mrf.mxu0
        %v2587 = vadd.f32 %v2138, %v2586
        %2588 = vmatmul.f32.gmra.mxu0 %v713
        %v2589 = vpop.f32.mrf.mxu0
        %v2590 = vadd.f32 %v2141, %v2589
        %2591 = vmatmul.f32.gmra.mxu0 %v717
        %v2592 = vpop.f32.mrf.mxu0
        %v2593 = vadd.f32 %v2144, %v2592
        %2594 = vmatmul.f32.gmra.mxu0 %v721
        %v2595 = vpop.f32.mrf.mxu0
        %v2596 = vadd.f32 %v2147, %v2595
        %2597 = vmatmul.f32.gmra.mxu0 %v725
        %v2598 = vpop.f32.mrf.mxu0
        %v2599 = vadd.f32 %v2150, %v2598
        %2600 = vmatmul.f32.gmra.mxu0 %v729
        %v2601 = vpop.f32.mrf.mxu0
        %v2602 = vadd.f32 %v2153, %v2601
        %2603 = vmatmul.f32.gmra.mxu0 %v733
        %v2604 = vpop.f32.mrf.mxu0
        %v2605 = vadd.f32 %v2156, %v2604
        %2606 = vmatmul.f32.gmra.mxu0 %v737
        %v2607 = vpop.f32.mrf.mxu0
        %v2608 = vadd.f32 %v2159, %v2607
        %2609 = vmatmul.f32.gmra.mxu0 %v741
        %v2610 = vpop.f32.mrf.mxu0
        %v2611 = vadd.f32 %v2162, %v2610
        %2612 = vmatmul.f32.gmra.mxu0 %v745
        %v2613 = vpop.f32.mrf.mxu0
        %v2614 = vadd.f32 %v2165, %v2613
        %2615 = vmatmul.f32.gmra.mxu0 %v749
        %v2616 = vpop.f32.mrf.mxu0
        %v2617 = vadd.f32 %v2168, %v2616
        %2618 = vmatmul.f32.gmra.mxu0 %v753
        %v2619 = vpop.f32.mrf.mxu0
        %v2620 = vadd.f32 %v2171, %v2619
        %2621 = vmatmul.f32.gmra.mxu0 %v757
        %v2622 = vpop.f32.mrf.mxu0
        %v2623 = vadd.f32 %v2174, %v2622
        %2624 = vmatmul.f32.gmra.mxu0 %v761
        %v2625 = vpop.f32.mrf.mxu0
        %v2626 = vadd.f32 %v2177, %v2625
        %2627 = vmatmul.f32.gmra.mxu0 %v765
        %v2628 = vpop.f32.mrf.mxu0
        %v2629 = vadd.f32 %v2180, %v2628
        %2630 = vmatmul.f32.gmra.mxu0 %v769
        %v2631 = vpop.f32.mrf.mxu0
        %v2632 = vadd.f32 %v2183, %v2631
        %2633 = vmatmul.f32.gmra.mxu0 %v773
        %v2634 = vpop.f32.mrf.mxu0
        %v2635 = vadd.f32 %v2186, %v2634
        %2636 = vmatmul.f32.gmra.mxu0 %v777
        %v2637 = vpop.f32.mrf.mxu0
        %v2638 = vadd.f32 %v2189, %v2637
        %2639 = vmatmul.f32.gmra.mxu0 %v781
        %v2640 = vpop.f32.mrf.mxu0
        %v2641 = vadd.f32 %v2192, %v2640
        %2642 = vmatmul.f32.gmra.mxu0 %v785
        %v2643 = vpop.f32.mrf.mxu0
        %v2644 = vadd.f32 %v2195, %v2643
        %2645 = vmatmul.f32.gmra.mxu0 %v789
        %v2646 = vpop.f32.mrf.mxu0
        %v2647 = vadd.f32 %v2198, %v2646
        %2648 = vmatmul.f32.gmra.mxu0 %v793
        %v2649 = vpop.f32.mrf.mxu0
        %v2650 = vadd.f32 %v2201, %v2649
        %2651 = vmatmul.f32.gmra.mxu0 %v797
        %v2652 = vpop.f32.mrf.mxu0
        %v2653 = vadd.f32 %v2204, %v2652
        %2654 = vmatmul.f32.gmra.mxu0 %v801
        %v2655 = vpop.f32.mrf.mxu0
        %v2656 = vadd.f32 %v2207, %v2655
        %2657 = vmatmul.f32.gmra.mxu0 %v805
        %v2658 = vpop.f32.mrf.mxu0
        %v2659 = vadd.f32 %v2210, %v2658
        %2660 = vmatmul.f32.gmra.mxu0 %v809
        %v2661 = vpop.f32.mrf.mxu0
        %v2662 = vadd.f32 %v2213, %v2661
        %2663 = vmatmul.f32.gmra.mxu0 %v813
        %v2664 = vpop.f32.mrf.mxu0
        %v2665 = vadd.f32 %v2216, %v2664
        %2666 = vmatmul.f32.gmra.mxu0 %v817
        %v2667 = vpop.f32.mrf.mxu0
        %v2668 = vadd.f32 %v2219, %v2667
        %2669 = vmatmul.f32.gmra.mxu0 %v821
        %v2670 = vpop.f32.mrf.mxu0
        %v2671 = vadd.f32 %v2222, %v2670
        %2672 = vmatmul.f32.gmra.mxu0 %v825
        %v2673 = vpop.f32.mrf.mxu0
        %v2674 = vadd.f32 %v2225, %v2673
        %2675 = vmatmul.f32.gmra.mxu0 %v829
        %v2676 = vpop.f32.mrf.mxu0
        %v2677 = vadd.f32 %v2228, %v2676
        %2678 = vmatmul.f32.gmra.mxu0 %v833
        %v2679 = vpop.f32.mrf.mxu0
        %v2680 = vadd.f32 %v2231, %v2679
        %2681 = vmatmul.f32.gmra.mxu0 %v837
        %v2682 = vpop.f32.mrf.mxu0
        %v2683 = vadd.f32 %v2234, %v2682
        %2684 = vmatmul.f32.gmra.mxu0 %v841
        %v2685 = vpop.f32.mrf.mxu0
        %v2686 = vadd.f32 %v2237, %v2685
        %2687 = vmatmul.f32.gmra.mxu0 %v845
        %v2688 = vpop.f32.mrf.mxu0
        %v2689 = vadd.f32 %v2240, %v2688
        %2690 = vmatmul.f32.gmra.mxu0 %v849
        %v2691 = vpop.f32.mrf.mxu0
        %v2692 = vadd.f32 %v2243, %v2691
        %2693 = vmatmul.f32.gmra.mxu0 %v853
        %v2694 = vpop.f32.mrf.mxu0
        %v2695 = vadd.f32 %v2246, %v2694
        %2696 = vmatmul.f32.gmra.mxu0 %v857
        %v2697 = vpop.f32.mrf.mxu0
        %v2698 = vadd.f32 %v2249, %v2697
        %2699 = vmatmul.f32.gmra.mxu0 %v861
        %v2700 = vpop.f32.mrf.mxu0
        %v2701 = vadd.f32 %v2252, %v2700
        %2702 = vmatmul.f32.gmra.mxu0 %v865
        %v2703 = vpop.f32.mrf.mxu0
        %v2704 = vadd.f32 %v2255, %v2703
        %2705 = vmatmul.f32.gmra.mxu0 %v869
        %v2706 = vpop.f32.mrf.mxu0
        %v2707 = vadd.f32 %v2258, %v2706
        %2708 = vmatmul.f32.gmra.mxu0 %v873
        %v2709 = vpop.f32.mrf.mxu0
        %v2710 = vadd.f32 %v2261, %v2709
        %2711 = vmatmul.f32.gmra.mxu0 %v877
        %v2712 = vpop.f32.mrf.mxu0
        %v2713 = vadd.f32 %v2264, %v2712
        %2714 = vmatmul.f32.gmra.mxu0 %v881
        %v2715 = vpop.f32.mrf.mxu0
        %v2716 = vadd.f32 %v2267, %v2715
        %2717 = vmatmul.f32.gmra.mxu0 %v885
        %v2718 = vpop.f32.mrf.mxu0
        %v2719 = vadd.f32 %v2270, %v2718
        %2720 = vmatmul.f32.gmra.mxu0 %v889
        %v2721 = vpop.f32.mrf.mxu0
        %v2722 = vadd.f32 %v2273, %v2721
        %2723 = vmatmul.f32.gmra.mxu0 %v893
        %v2724 = vpop.f32.mrf.mxu0
        %v2725 = vadd.f32 %v2276, %v2724
        %2726 = vmatmul.f32.gmra.mxu0 %v897
        %v2727 = vpop.f32.mrf.mxu0
        %v2728 = vadd.f32 %v2279, %v2727
        %2729 = vmatmul.f32.gmra.mxu0 %v901
        %v2730 = vpop.f32.mrf.mxu0
        %v2731 = vadd.f32 %v2282, %v2730
        %2732 = vmatmul.f32.gmra.mxu0 %v905
        %v2733 = vpop.f32.mrf.mxu0
        %v2734 = vadd.f32 %v2285, %v2733
        %2735 = vmatmul.f32.gmra.mxu0 %v909
        %v2736 = vpop.f32.mrf.mxu0
        %v2737 = vadd.f32 %v2288, %v2736
        %2738 = vmatmul.f32.gmra.mxu0 %v913
        %v2739 = vpop.f32.mrf.mxu0
        %v2740 = vadd.f32 %v2291, %v2739
        %2741 = vmatmul.f32.gmra.mxu0 %v917
        %v2742 = vpop.f32.mrf.mxu0
        %v2743 = vadd.f32 %v2294, %v2742
        %2744 = vmatmul.f32.gmra.mxu0 %v921
        %v2745 = vpop.f32.mrf.mxu0
        %v2746 = vadd.f32 %v2297, %v2745
        %2747 = vmatmul.f32.gmra.mxu0 %v925
        %v2748 = vpop.f32.mrf.mxu0
        %v2749 = vadd.f32 %v2300, %v2748
        %2750 = vmatmul.f32.gmra.mxu0 %v929
        %v2751 = vpop.f32.mrf.mxu0
        %v2752 = vadd.f32 %v2303, %v2751
        %2753 = vmatmul.f32.gmra.mxu0 %v933
        %v2754 = vpop.f32.mrf.mxu0
        %v2755 = vadd.f32 %v2306, %v2754
        %2756 = vmatmul.f32.gmra.mxu0 %v937
        %v2757 = vpop.f32.mrf.mxu0
        %v2758 = vadd.f32 %v2309, %v2757
        %2759 = vmatmul.f32.gmra.mxu0 %v941
        %v2760 = vpop.f32.mrf.mxu0
        %v2761 = vadd.f32 %v2312, %v2760
        %2762 = vmatmul.f32.gmra.mxu0 %v945
        %v2763 = vpop.f32.mrf.mxu0
        %v2764 = vadd.f32 %v2315, %v2763
        %2765 = vmatmul.f32.gmra.mxu0 %v949
        %v2766 = vpop.f32.mrf.mxu0
        %v2767 = vadd.f32 %v2318, %v2766
        %2768 = vmatmul.f32.gmra.mxu0 %v953
        %v2769 = vpop.f32.mrf.mxu0
        %v2770 = vadd.f32 %v2321, %v2769
        %2771 = vmatmul.f32.gmra.mxu0 %v957
        %v2772 = vpop.f32.mrf.mxu0
        %v2773 = vadd.f32 %v2324, %v2772
        %2774 = vmatmul.f32.gmra.mxu0 %v961
        %v2775 = vpop.f32.mrf.mxu0
        %v2776 = vadd.f32 %v2327, %v2775
        %2777 = vmatmul.f32.gmra.mxu0 %v965
        %v2778 = vpop.f32.mrf.mxu0
        %v2779 = vadd.f32 %v2330, %v2778
        %2780 = vmatmul.f32.gmra.mxu0 %v969
        %v2781 = vpop.f32.mrf.mxu0
        %v2782 = vadd.f32 %v2333, %v2781
        %2783 = vmatmul.f32.gmra.mxu0 %v973
        %v2784 = vpop.f32.mrf.mxu0
        %v2785 = vadd.f32 %v2336, %v2784
        %2786 = vmatmul.f32.gmra.mxu0 %v977
        %v2787 = vpop.f32.mrf.mxu0
        %v2788 = vadd.f32 %v2339, %v2787
        %2789 = vmatmul.f32.gmra.mxu0 %v981
        %v2790 = vpop.f32.mrf.mxu0
        %v2791 = vadd.f32 %v2342, %v2790
        %2792 = vmatmul.f32.gmra.mxu0 %v985
        %v2793 = vpop.f32.mrf.mxu0
        %v2794 = vadd.f32 %v2345, %v2793
        %2795 = vmatmul.f32.gmra.mxu0 %v989
        %v2796 = vpop.f32.mrf.mxu0
        %v2797 = vadd.f32 %v2348, %v2796
        %2798 = vmatmul.f32.gmra.mxu0 %v993
        %v2799 = vpop.f32.mrf.mxu0
        %v2800 = vadd.f32 %v2351, %v2799
        %2801 = vmatmul.f32.gmra.mxu0 %v997
        %v2802 = vpop.f32.mrf.mxu0
        %v2803 = vadd.f32 %v2354, %v2802
        %2804 = vmatmul.f32.gmra.mxu0 %v1001
        %v2805 = vpop.f32.mrf.mxu0
        %v2806 = vadd.f32 %v2357, %v2805
        %2807 = vmatmul.f32.gmra.mxu0 %v1005
        %v2808 = vpop.f32.mrf.mxu0
        %v2809 = vadd.f32 %v2360, %v2808
        %2810 = vmatmul.f32.gmra.mxu0 %v1009
        %v2811 = vpop.f32.mrf.mxu0
        %v2812 = vadd.f32 %v2363, %v2811
        %2813 = vmatmul.f32.gmra.mxu0 %v1013
        %v2814 = vpop.f32.mrf.mxu0
        %v2815 = vadd.f32 %v2366, %v2814
        %2816 = vmatmul.f32.gmra.mxu0 %v1017
        %v2817 = vpop.f32.mrf.mxu0
        %v2818 = vadd.f32 %v2369, %v2817
        %2819 = vmatmul.f32.gmra.mxu0 %v1021
        %v2820 = vpop.f32.mrf.mxu0
        %v2821 = vadd.f32 %v2372, %v2820
        %2822 = vmatmul.f32.gmra.mxu0 %v1025
        %v2823 = vpop.f32.mrf.mxu0
        %v2824 = vadd.f32 %v2375, %v2823
        %2825 = vmatmul.f32.gmra.mxu0 %v1029
        %v2826 = vpop.f32.mrf.mxu0
        %v2827 = vadd.f32 %v2378, %v2826
        %2828 = vmatmul.f32.gmra.mxu0 %v1033
        %v2829 = vpop.f32.mrf.mxu0
        %v2830 = vadd.f32 %v2381, %v2829
        %2831 = vmatmul.f32.gmra.mxu0 %v1037
        %v2832 = vpop.f32.mrf.mxu0
        %v2833 = vadd.f32 %v2384, %v2832
        %2834 = vmatmul.f32.gmra.mxu0 %v1041
        %v2835 = vpop.f32.mrf.mxu0
        %v2836 = vadd.f32 %v2387, %v2835
        %2837 = vdwg.mxu0
        %2854 = vrot.lane.b32.xlu0 %v2455, 64
        %v2855 = vpop.permute.xlu0 %2854
        %2856 = vrot.lane.b32.xlu0 %v2458, 64
        %v2857 = vpop.permute.xlu0 %2856
        %2858 = vrot.lane.b32.xlu0 %v2461, 64
        %v2859 = vpop.permute.xlu0 %2858
        %2860 = vrot.lane.b32.xlu0 %v2464, 64
        %v2861 = vpop.permute.xlu0 %2860
        %2862 = vrot.lane.b32.xlu0 %v2467, 64
        %v2863 = vpop.permute.xlu0 %2862
        %2864 = vrot.lane.b32.xlu0 %v2470, 64
        %v2865 = vpop.permute.xlu0 %2864
        %2866 = vrot.lane.b32.xlu0 %v2473, 64
        %v2867 = vpop.permute.xlu0 %2866
        %2868 = vrot.lane.b32.xlu0 %v2476, 64
        %v2869 = vpop.permute.xlu0 %2868
        %2870 = vrot.lane.b32.xlu0 %v2479, 64
        %v2871 = vpop.permute.xlu0 %2870
        %2872 = vrot.lane.b32.xlu0 %v2482, 64
        %v2873 = vpop.permute.xlu0 %2872
        %2874 = vrot.lane.b32.xlu0 %v2485, 64
        %v2875 = vpop.permute.xlu0 %2874
        %2876 = vrot.lane.b32.xlu0 %v2488, 64
        %v2877 = vpop.permute.xlu0 %2876
        %2878 = vrot.lane.b32.xlu0 %v2491, 64
        %v2879 = vpop.permute.xlu0 %2878
        %2880 = vrot.lane.b32.xlu0 %v2494, 64
        %v2881 = vpop.permute.xlu0 %2880
        %2882 = vrot.lane.b32.xlu0 %v2497, 64
        %v2883 = vpop.permute.xlu0 %2882
        %2884 = vrot.lane.b32.xlu0 %v2500, 64
        %v2885 = vpop.permute.xlu0 %2884
        %2918 = vrot.lane.b32.xlu0 %v2551, 64
        %v2919 = vpop.permute.xlu0 %2918
        %2920 = vrot.lane.b32.xlu0 %v2554, 64
        %v2921 = vpop.permute.xlu0 %2920
        %2922 = vrot.lane.b32.xlu0 %v2557, 64
        %v2923 = vpop.permute.xlu0 %2922
        %2924 = vrot.lane.b32.xlu0 %v2560, 64
        %v2925 = vpop.permute.xlu0 %2924
        %2926 = vrot.lane.b32.xlu0 %v2563, 64
        %v2927 = vpop.permute.xlu0 %2926
        %2928 = vrot.lane.b32.xlu0 %v2566, 64
        %v2929 = vpop.permute.xlu0 %2928
        %2930 = vrot.lane.b32.xlu0 %v2569, 64
        %v2931 = vpop.permute.xlu0 %2930
        %2932 = vrot.lane.b32.xlu0 %v2572, 64
        %v2933 = vpop.permute.xlu0 %2932
        %2934 = vrot.lane.b32.xlu0 %v2575, 64
        %v2935 = vpop.permute.xlu0 %2934
        %2936 = vrot.lane.b32.xlu0 %v2578, 64
        %v2937 = vpop.permute.xlu0 %2936
        %2938 = vrot.lane.b32.xlu0 %v2581, 64
        %v2939 = vpop.permute.xlu0 %2938
        %2940 = vrot.lane.b32.xlu0 %v2584, 64
        %v2941 = vpop.permute.xlu0 %2940
        %2942 = vrot.lane.b32.xlu0 %v2587, 64
        %v2943 = vpop.permute.xlu0 %2942
        %2944 = vrot.lane.b32.xlu0 %v2590, 64
        %v2945 = vpop.permute.xlu0 %2944
        %2946 = vrot.lane.b32.xlu0 %v2593, 64
        %v2947 = vpop.permute.xlu0 %2946
        %2948 = vrot.lane.b32.xlu0 %v2596, 64
        %v2949 = vpop.permute.xlu0 %2948
        %2982 = vrot.lane.b32.xlu0 %v2647, 64
        %v2983 = vpop.permute.xlu0 %2982
        %2984 = vrot.lane.b32.xlu0 %v2650, 64
        %v2985 = vpop.permute.xlu0 %2984
        %2986 = vrot.lane.b32.xlu0 %v2653, 64
        %v2987 = vpop.permute.xlu0 %2986
        %2988 = vrot.lane.b32.xlu0 %v2656, 64
        %v2989 = vpop.permute.xlu0 %2988
        %2990 = vrot.lane.b32.xlu0 %v2659, 64
        %v2991 = vpop.permute.xlu0 %2990
        %2992 = vrot.lane.b32.xlu0 %v2662, 64
        %v2993 = vpop.permute.xlu0 %2992
        %2994 = vrot.lane.b32.xlu0 %v2665, 64
        %v2995 = vpop.permute.xlu0 %2994
        %2996 = vrot.lane.b32.xlu0 %v2668, 64
        %v2997 = vpop.permute.xlu0 %2996
        %2998 = vrot.lane.b32.xlu0 %v2671, 64
        %v2999 = vpop.permute.xlu0 %2998
        %3000 = vrot.lane.b32.xlu0 %v2674, 64
        %v3001 = vpop.permute.xlu0 %3000
        %3002 = vrot.lane.b32.xlu0 %v2677, 64
        %v3003 = vpop.permute.xlu0 %3002
        %3004 = vrot.lane.b32.xlu0 %v2680, 64
        %v3005 = vpop.permute.xlu0 %3004
        %3006 = vrot.lane.b32.xlu0 %v2683, 64
        %v3007 = vpop.permute.xlu0 %3006
        %3008 = vrot.lane.b32.xlu0 %v2686, 64
        %v3009 = vpop.permute.xlu0 %3008
        %3010 = vrot.lane.b32.xlu0 %v2689, 64
        %v3011 = vpop.permute.xlu0 %3010
        %3012 = vrot.lane.b32.xlu0 %v2692, 64
        %v3013 = vpop.permute.xlu0 %3012
        %3046 = vrot.lane.b32.xlu0 %v2743, 64
        %v3047 = vpop.permute.xlu0 %3046
        %3048 = vrot.lane.b32.xlu0 %v2746, 64
        %v3049 = vpop.permute.xlu0 %3048
        %3050 = vrot.lane.b32.xlu0 %v2749, 64
        %v3051 = vpop.permute.xlu0 %3050
        %3052 = vrot.lane.b32.xlu0 %v2752, 64
        %v3053 = vpop.permute.xlu0 %3052
        %3054 = vrot.lane.b32.xlu0 %v2755, 64
        %v3055 = vpop.permute.xlu0 %3054
        %3056 = vrot.lane.b32.xlu0 %v2758, 64
        %v3057 = vpop.permute.xlu0 %3056
        %3058 = vrot.lane.b32.xlu0 %v2761, 64
        %v3059 = vpop.permute.xlu0 %3058
        %3060 = vrot.lane.b32.xlu0 %v2764, 64
        %v3061 = vpop.permute.xlu0 %3060
        %3062 = vrot.lane.b32.xlu0 %v2767, 64
        %v3063 = vpop.permute.xlu0 %3062
        %3064 = vrot.lane.b32.xlu0 %v2770, 64
        %v3065 = vpop.permute.xlu0 %3064
        %3066 = vrot.lane.b32.xlu0 %v2773, 64
        %v3067 = vpop.permute.xlu0 %3066
        %3068 = vrot.lane.b32.xlu0 %v2776, 64
        %v3069 = vpop.permute.xlu0 %3068
        %3070 = vrot.lane.b32.xlu0 %v2779, 64
        %v3071 = vpop.permute.xlu0 %3070
        %3072 = vrot.lane.b32.xlu0 %v2782, 64
        %v3073 = vpop.permute.xlu0 %3072
        %3074 = vrot.lane.b32.xlu0 %v2785, 64
        %v3075 = vpop.permute.xlu0 %3074
        %3076 = vrot.lane.b32.xlu0 %v2788, 64
        %v3077 = vpop.permute.xlu0 %3076
        %vm3094 = vcmask 523264
        %v3095 = vsel %vm3094, %v2407, %v2855
        %v3096 = vsel %vm3094, %v2410, %v2857
        %v3097 = vsel %vm3094, %v2413, %v2859
        %v3098 = vsel %vm3094, %v2416, %v2861
        %v3099 = vsel %vm3094, %v2419, %v2863
        %v3100 = vsel %vm3094, %v2422, %v2865
        %v3101 = vsel %vm3094, %v2425, %v2867
        %v3102 = vsel %vm3094, %v2428, %v2869
        %v3103 = vsel %vm3094, %v2431, %v2871
        %v3104 = vsel %vm3094, %v2434, %v2873
        %v3105 = vsel %vm3094, %v2437, %v2875
        %v3106 = vsel %vm3094, %v2440, %v2877
        %v3107 = vsel %vm3094, %v2443, %v2879
        %v3108 = vsel %vm3094, %v2446, %v2881
        %v3109 = vsel %vm3094, %v2449, %v2883
        %v3110 = vsel %vm3094, %v2452, %v2885
        %v3111 = vsel %vm3094, %v2503, %v2919
        %v3112 = vsel %vm3094, %v2506, %v2921
        %v3113 = vsel %vm3094, %v2509, %v2923
        %v3114 = vsel %vm3094, %v2512, %v2925
        %v3115 = vsel %vm3094, %v2515, %v2927
        %v3116 = vsel %vm3094, %v2518, %v2929
        %v3117 = vsel %vm3094, %v2521, %v2931
        %v3118 = vsel %vm3094, %v2524, %v2933
        %v3119 = vsel %vm3094, %v2527, %v2935
        %v3120 = vsel %vm3094, %v2530, %v2937
        %v3121 = vsel %vm3094, %v2533, %v2939
        %v3122 = vsel %vm3094, %v2536, %v2941
        %v3123 = vsel %vm3094, %v2539, %v2943
        %v3124 = vsel %vm3094, %v2542, %v2945
        %v3125 = vsel %vm3094, %v2545, %v2947
        %v3126 = vsel %vm3094, %v2548, %v2949
        %v3127 = vsel %vm3094, %v2599, %v2983
        %v3128 = vsel %vm3094, %v2602, %v2985
        %v3129 = vsel %vm3094, %v2605, %v2987
        %v3130 = vsel %vm3094, %v2608, %v2989
        %v3131 = vsel %vm3094, %v2611, %v2991
        %v3132 = vsel %vm3094, %v2614, %v2993
        %v3133 = vsel %vm3094, %v2617, %v2995
        %v3134 = vsel %vm3094, %v2620, %v2997
        %v3135 = vsel %vm3094, %v2623, %v2999
        %v3136 = vsel %vm3094, %v2626, %v3001
        %v3137 = vsel %vm3094, %v2629, %v3003
        %v3138 = vsel %vm3094, %v2632, %v3005
        %v3139 = vsel %vm3094, %v2635, %v3007
        %v3140 = vsel %vm3094, %v2638, %v3009
        %v3141 = vsel %vm3094, %v2641, %v3011
        %v3142 = vsel %vm3094, %v2644, %v3013
        %v3143 = vsel %vm3094, %v2695, %v3047
        %v3144 = vsel %vm3094, %v2698, %v3049
        %v3145 = vsel %vm3094, %v2701, %v3051
        %v3146 = vsel %vm3094, %v2704, %v3053
        %v3147 = vsel %vm3094, %v2707, %v3055
        %v3148 = vsel %vm3094, %v2710, %v3057
        %v3149 = vsel %vm3094, %v2713, %v3059
        %v3150 = vsel %vm3094, %v2716, %v3061
        %v3151 = vsel %vm3094, %v2719, %v3063
        %v3152 = vsel %vm3094, %v2722, %v3065
        %v3153 = vsel %vm3094, %v2725, %v3067
        %v3154 = vsel %vm3094, %v2728, %v3069
        %v3155 = vsel %vm3094, %v2731, %v3071
        %v3156 = vsel %vm3094, %v2734, %v3073
        %v3157 = vsel %vm3094, %v2737, %v3075
        %v3158 = vsel %vm3094, %v2740, %v3077
        %v3159 = vld [vmem:[#allocation4] sm:$0xff]
        %v3160 = vld [vmem:[#allocation4 + $0x8] sm:$0xff]
        %v3161 = vld [vmem:[#allocation4 + $0x10] sm:$0xff]
        %v3162 = vld [vmem:[#allocation4 + $0x18] sm:$0xff]
        %v3163 = vld [vmem:[#allocation4 + $0x20] sm:$0xff]
        %v3164 = vld [vmem:[#allocation4 + $0x28] sm:$0xff]
        %v3165 = vld [vmem:[#allocation4 + $0x30] sm:$0xff]
        %v3166 = vld [vmem:[#allocation4 + $0x38] sm:$0xff]
        %v3167 = vld [vmem:[#allocation4 + $0x40] sm:$0xff]
        %v3168 = vld [vmem:[#allocation4 + $0x48] sm:$0xff]
        %v3169 = vld [vmem:[#allocation4 + $0x50] sm:$0xff]
        %v3170 = vld [vmem:[#allocation4 + $0x58] sm:$0xff]
        %v3171 = vld [vmem:[#allocation4 + $0x60] sm:$0xff]
        %v3172 = vld [vmem:[#allocation4 + $0x68] sm:$0xff]
        %v3173 = vld [vmem:[#allocation4 + $0x70] sm:$0xff]
        %v3174 = vld [vmem:[#allocation4 + $0x78] sm:$0xff]
        %v3175 = vld [vmem:[#allocation4 + $0x80] sm:$0xff]
        %v3176 = vld [vmem:[#allocation4 + $0x88] sm:$0xff]
        %v3177 = vld [vmem:[#allocation4 + $0x90] sm:$0xff]
        %v3178 = vld [vmem:[#allocation4 + $0x98] sm:$0xff]
        %v3179 = vld [vmem:[#allocation4 + $0xa0] sm:$0xff]
        %v3180 = vld [vmem:[#allocation4 + $0xa8] sm:$0xff]
        %v3181 = vld [vmem:[#allocation4 + $0xb0] sm:$0xff]
        %v3182 = vld [vmem:[#allocation4 + $0xb8] sm:$0xff]
        %v3183 = vld [vmem:[#allocation4 + $0xc0] sm:$0xff]
        %v3184 = vld [vmem:[#allocation4 + $0xc8] sm:$0xff]
        %v3185 = vld [vmem:[#allocation4 + $0xd0] sm:$0xff]
        %v3186 = vld [vmem:[#allocation4 + $0xd8] sm:$0xff]
        %v3187 = vld [vmem:[#allocation4 + $0xe0] sm:$0xff]
        %v3188 = vld [vmem:[#allocation4 + $0xe8] sm:$0xff]
        %v3189 = vld [vmem:[#allocation4 + $0xf0] sm:$0xff]
        %v3190 = vld [vmem:[#allocation4 + $0xf8] sm:$0xff]
        %v3191 = vld [vmem:[#allocation4 + $0x100] sm:$0xff]
        %v3192 = vld [vmem:[#allocation4 + $0x108] sm:$0xff]
        %v3193 = vld [vmem:[#allocation4 + $0x110] sm:$0xff]
        %v3194 = vld [vmem:[#allocation4 + $0x118] sm:$0xff]
        %v3195 = vld [vmem:[#allocation4 + $0x120] sm:$0xff]
        %v3196 = vld [vmem:[#allocation4 + $0x128] sm:$0xff]
        %v3197 = vld [vmem:[#allocation4 + $0x130] sm:$0xff]
        %v3198 = vld [vmem:[#allocation4 + $0x138] sm:$0xff]
        %v3199 = vld [vmem:[#allocation4 + $0x140] sm:$0xff]
        %v3200 = vld [vmem:[#allocation4 + $0x148] sm:$0xff]
        %v3201 = vld [vmem:[#allocation4 + $0x150] sm:$0xff]
        %v3202 = vld [vmem:[#allocation4 + $0x158] sm:$0xff]
        %v3203 = vld [vmem:[#allocation4 + $0x160] sm:$0xff]
        %v3204 = vld [vmem:[#allocation4 + $0x168] sm:$0xff]
        %v3205 = vld [vmem:[#allocation4 + $0x170] sm:$0xff]
        %v3206 = vld [vmem:[#allocation4 + $0x178] sm:$0xff]
        %v3207 = vld [vmem:[#allocation4 + $0x180] sm:$0xff]
        %v3208 = vld [vmem:[#allocation4 + $0x188] sm:$0xff]
        %v3209 = vld [vmem:[#allocation4 + $0x190] sm:$0xff]
        %v3210 = vld [vmem:[#allocation4 + $0x198] sm:$0xff]
        %v3211 = vld [vmem:[#allocation4 + $0x1a0] sm:$0xff]
        %v3212 = vld [vmem:[#allocation4 + $0x1a8] sm:$0xff]
        %v3213 = vld [vmem:[#allocation4 + $0x1b0] sm:$0xff]
        %v3214 = vld [vmem:[#allocation4 + $0x1b8] sm:$0xff]
        %v3215 = vld [vmem:[#allocation4 + $0x1c0] sm:$0xff]
        %v3216 = vld [vmem:[#allocation4 + $0x1c8] sm:$0xff]
        %v3217 = vld [vmem:[#allocation4 + $0x1d0] sm:$0xff]
        %v3218 = vld [vmem:[#allocation4 + $0x1d8] sm:$0xff]
        %v3219 = vld [vmem:[#allocation4 + $0x1e0] sm:$0xff]
        %v3220 = vld [vmem:[#allocation4 + $0x1e8] sm:$0xff]
        %v3221 = vld [vmem:[#allocation4 + $0x1f0] sm:$0xff]
        %v3222 = vld [vmem:[#allocation4 + $0x1f8] sm:$0xff]
        %v3223 = vld [vmem:[#allocation4 + $0x200] sm:$0xff]
        %v3224 = vld [vmem:[#allocation4 + $0x208] sm:$0xff]
        %v3225 = vld [vmem:[#allocation4 + $0x210] sm:$0xff]
        %v3226 = vld [vmem:[#allocation4 + $0x218] sm:$0xff]
        %v3227 = vld [vmem:[#allocation4 + $0x220] sm:$0xff]
        %v3228 = vld [vmem:[#allocation4 + $0x228] sm:$0xff]
        %v3229 = vld [vmem:[#allocation4 + $0x230] sm:$0xff]
        %v3230 = vld [vmem:[#allocation4 + $0x238] sm:$0xff]
        %v3232 = vsel %vm3094, %v2791, 0
        %v3235 = vsel %vm3094, %v2794, 0
        %v3238 = vsel %vm3094, %v2797, 0
        %v3241 = vsel %vm3094, %v2800, 0
        %v3244 = vsel %vm3094, %v2803, 0
        %v3247 = vsel %vm3094, %v2806, 0
        %v3250 = vsel %vm3094, %v2809, 0
        %v3253 = vsel %vm3094, %v2812, 0
        %v3256 = vsel %vm3094, %v2815, 0
        %v3259 = vsel %vm3094, %v2818, 0
        %v3262 = vsel %vm3094, %v2821, 0
        %v3265 = vsel %vm3094, %v2824, 0
        %v3268 = vsel %vm3094, %v2827, 0
        %v3271 = vsel %vm3094, %v2830, 0
        %v3274 = vsel %vm3094, %v2833, 0
        %v3277 = vsel %vm3094, %v2836, 0
        %3279 = vmatpush.msra.mxu0 %v3174
        %3280 = vmatpush.msra.mxu0 %v3173
        %3281 = vmatpush.msra.mxu0 %v3172
        %3282 = vmatpush.msra.mxu0 %v3171
        %3283 = vmatpush.msra.mxu0 %v3170
        %3284 = vmatpush.msra.mxu0 %v3169
        %3285 = vmatpush.msra.mxu0 %v3168
        %3286 = vmatpush.msra.mxu0 %v3167
        %3287 = vmatpush.msra.mxu0 %v3166
        %3288 = vmatpush.msra.mxu0 %v3165
        %3289 = vmatpush.msra.mxu0 %v3164
        %3290 = vmatpush.msra.mxu0 %v3163
        %3291 = vmatpush.msra.mxu0 %v3162
        %3292 = vmatpush.msra.mxu0 %v3161
        %3293 = vmatpush.msra.mxu0 %v3160
        %3294 = vmatpush.msra.mxu0 %v3159
        %3295 = vmatmul.f32.gmra.mxu0 %v3095
        %v3296 = vpop.f32.mrf.mxu0
        %v3297 = vadd.f32 0.0, %v3296
        %3298 = vmatmul.f32.gmra.mxu0 %v3096
        %v3299 = vpop.f32.mrf.mxu0
        %v3300 = vadd.f32 0.0, %v3299
        %3301 = vmatmul.f32.gmra.mxu0 %v3097
        %v3302 = vpop.f32.mrf.mxu0
        %v3303 = vadd.f32 0.0, %v3302
        %3304 = vmatmul.f32.gmra.mxu0 %v3098
        %v3305 = vpop.f32.mrf.mxu0
        %v3306 = vadd.f32 0.0, %v3305
        %3307 = vmatmul.f32.gmra.mxu0 %v3099
        %v3308 = vpop.f32.mrf.mxu0
        %v3309 = vadd.f32 0.0, %v3308
        %3310 = vmatmul.f32.gmra.mxu0 %v3100
        %v3311 = vpop.f32.mrf.mxu0
        %v3312 = vadd.f32 0.0, %v3311
        %3313 = vmatmul.f32.gmra.mxu0 %v3101
        %v3314 = vpop.f32.mrf.mxu0
        %v3315 = vadd.f32 0.0, %v3314
        %3316 = vmatmul.f32.gmra.mxu0 %v3102
        %v3317 = vpop.f32.mrf.mxu0
        %v3318 = vadd.f32 0.0, %v3317
        %3319 = vmatmul.f32.gmra.mxu0 %v3103
        %v3320 = vpop.f32.mrf.mxu0
        %v3321 = vadd.f32 0.0, %v3320
        %3322 = vmatmul.f32.gmra.mxu0 %v3104
        %v3323 = vpop.f32.mrf.mxu0
        %v3324 = vadd.f32 0.0, %v3323
        %3325 = vmatmul.f32.gmra.mxu0 %v3105
        %v3326 = vpop.f32.mrf.mxu0
        %v3327 = vadd.f32 0.0, %v3326
        %3328 = vmatmul.f32.gmra.mxu0 %v3106
        %v3329 = vpop.f32.mrf.mxu0
        %v3330 = vadd.f32 0.0, %v3329
        %3331 = vmatmul.f32.gmra.mxu0 %v3107
        %v3332 = vpop.f32.mrf.mxu0
        %v3333 = vadd.f32 0.0, %v3332
        %3334 = vmatmul.f32.gmra.mxu0 %v3108
        %v3335 = vpop.f32.mrf.mxu0
        %v3336 = vadd.f32 0.0, %v3335
        %3337 = vmatmul.f32.gmra.mxu0 %v3109
        %v3338 = vpop.f32.mrf.mxu0
        %v3339 = vadd.f32 0.0, %v3338
        %3340 = vmatmul.f32.gmra.mxu0 %v3110
        %v3341 = vpop.f32.mrf.mxu0
        %v3342 = vadd.f32 0.0, %v3341
        %3343 = vdwg.mxu0
        %3344 = vmatpush.msra.mxu0 %v3190
        %3345 = vmatpush.msra.mxu0 %v3189
        %3346 = vmatpush.msra.mxu0 %v3188
        %3347 = vmatpush.msra.mxu0 %v3187
        %3348 = vmatpush.msra.mxu0 %v3186
        %3349 = vmatpush.msra.mxu0 %v3185
        %3350 = vmatpush.msra.mxu0 %v3184
        %3351 = vmatpush.msra.mxu0 %v3183
        %3352 = vmatpush.msra.mxu0 %v3182
        %3353 = vmatpush.msra.mxu0 %v3181
        %3354 = vmatpush.msra.mxu0 %v3180
        %3355 = vmatpush.msra.mxu0 %v3179
        %3356 = vmatpush.msra.mxu0 %v3178
        %3357 = vmatpush.msra.mxu0 %v3177
        %3358 = vmatpush.msra.mxu0 %v3176
        %3359 = vmatpush.msra.mxu0 %v3175
        %3360 = vmatmul.f32.gmra.mxu0 %v3111
        %v3361 = vpop.f32.mrf.mxu0
        %v3362 = vadd.f32 %v3297, %v3361
        %3363 = vmatmul.f32.gmra.mxu0 %v3112
        %v3364 = vpop.f32.mrf.mxu0
        %v3365 = vadd.f32 %v3300, %v3364
        %3366 = vmatmul.f32.gmra.mxu0 %v3113
        %v3367 = vpop.f32.mrf.mxu0
        %v3368 = vadd.f32 %v3303, %v3367
        %3369 = vmatmul.f32.gmra.mxu0 %v3114
        %v3370 = vpop.f32.mrf.mxu0
        %v3371 = vadd.f32 %v3306, %v3370
        %3372 = vmatmul.f32.gmra.mxu0 %v3115
        %v3373 = vpop.f32.mrf.mxu0
        %v3374 = vadd.f32 %v3309, %v3373
        %3375 = vmatmul.f32.gmra.mxu0 %v3116
        %v3376 = vpop.f32.mrf.mxu0
        %v3377 = vadd.f32 %v3312, %v3376
        %3378 = vmatmul.f32.gmra.mxu0 %v3117
        %v3379 = vpop.f32.mrf.mxu0
        %v3380 = vadd.f32 %v3315, %v3379
        %3381 = vmatmul.f32.gmra.mxu0 %v3118
        %v3382 = vpop.f32.mrf.mxu0
        %v3383 = vadd.f32 %v3318, %v3382
        %3384 = vmatmul.f32.gmra.mxu0 %v3119
        %v3385 = vpop.f32.mrf.mxu0
        %v3386 = vadd.f32 %v3321, %v3385
        %3387 = vmatmul.f32.gmra.mxu0 %v3120
        %v3388 = vpop.f32.mrf.mxu0
        %v3389 = vadd.f32 %v3324, %v3388
        %3390 = vmatmul.f32.gmra.mxu0 %v3121
        %v3391 = vpop.f32.mrf.mxu0
        %v3392 = vadd.f32 %v3327, %v3391
        %3393 = vmatmul.f32.gmra.mxu0 %v3122
        %v3394 = vpop.f32.mrf.mxu0
        %v3395 = vadd.f32 %v3330, %v3394
        %3396 = vmatmul.f32.gmra.mxu0 %v3123
        %v3397 = vpop.f32.mrf.mxu0
        %v3398 = vadd.f32 %v3333, %v3397
        %3399 = vmatmul.f32.gmra.mxu0 %v3124
        %v3400 = vpop.f32.mrf.mxu0
        %v3401 = vadd.f32 %v3336, %v3400
        %3402 = vmatmul.f32.gmra.mxu0 %v3125
        %v3403 = vpop.f32.mrf.mxu0
        %v3404 = vadd.f32 %v3339, %v3403
        %3405 = vmatmul.f32.gmra.mxu0 %v3126
        %v3406 = vpop.f32.mrf.mxu0
        %v3407 = vadd.f32 %v3342, %v3406
        %3408 = vdwg.mxu0
        %3409 = vmatpush.msra.mxu0 %v3206
        %3410 = vmatpush.msra.mxu0 %v3205
        %3411 = vmatpush.msra.mxu0 %v3204
        %3412 = vmatpush.msra.mxu0 %v3203
        %3413 = vmatpush.msra.mxu0 %v3202
        %3414 = vmatpush.msra.mxu0 %v3201
        %3415 = vmatpush.msra.mxu0 %v3200
        %3416 = vmatpush.msra.mxu0 %v3199
        %3417 = vmatpush.msra.mxu0 %v3198
        %3418 = vmatpush.msra.mxu0 %v3197
        %3419 = vmatpush.msra.mxu0 %v3196
        %3420 = vmatpush.msra.mxu0 %v3195
        %3421 = vmatpush.msra.mxu0 %v3194
        %3422 = vmatpush.msra.mxu0 %v3193
        %3423 = vmatpush.msra.mxu0 %v3192
        %3424 = vmatpush.msra.mxu0 %v3191
        %3425 = vmatmul.f32.gmra.mxu0 %v3127
        %v3426 = vpop.f32.mrf.mxu0
        %v3427 = vadd.f32 %v3362, %v3426
        %3428 = vmatmul.f32.gmra.mxu0 %v3128
        %v3429 = vpop.f32.mrf.mxu0
        %v3430 = vadd.f32 %v3365, %v3429
        %3431 = vmatmul.f32.gmra.mxu0 %v3129
        %v3432 = vpop.f32.mrf.mxu0
        %v3433 = vadd.f32 %v3368, %v3432
        %3434 = vmatmul.f32.gmra.mxu0 %v3130
        %v3435 = vpop.f32.mrf.mxu0
        %v3436 = vadd.f32 %v3371, %v3435
        %3437 = vmatmul.f32.gmra.mxu0 %v3131
        %v3438 = vpop.f32.mrf.mxu0
        %v3439 = vadd.f32 %v3374, %v3438
        %3440 = vmatmul.f32.gmra.mxu0 %v3132
        %v3441 = vpop.f32.mrf.mxu0
        %v3442 = vadd.f32 %v3377, %v3441
        %3443 = vmatmul.f32.gmra.mxu0 %v3133
        %v3444 = vpop.f32.mrf.mxu0
        %v3445 = vadd.f32 %v3380, %v3444
        %3446 = vmatmul.f32.gmra.mxu0 %v3134
        %v3447 = vpop.f32.mrf.mxu0
        %v3448 = vadd.f32 %v3383, %v3447
        %3449 = vmatmul.f32.gmra.mxu0 %v3135
        %v3450 = vpop.f32.mrf.mxu0
        %v3451 = vadd.f32 %v3386, %v3450
        %3452 = vmatmul.f32.gmra.mxu0 %v3136
        %v3453 = vpop.f32.mrf.mxu0
        %v3454 = vadd.f32 %v3389, %v3453
        %3455 = vmatmul.f32.gmra.mxu0 %v3137
        %v3456 = vpop.f32.mrf.mxu0
        %v3457 = vadd.f32 %v3392, %v3456
        %3458 = vmatmul.f32.gmra.mxu0 %v3138
        %v3459 = vpop.f32.mrf.mxu0
        %v3460 = vadd.f32 %v3395, %v3459
        %3461 = vmatmul.f32.gmra.mxu0 %v3139
        %v3462 = vpop.f32.mrf.mxu0
        %v3463 = vadd.f32 %v3398, %v3462
        %3464 = vmatmul.f32.gmra.mxu0 %v3140
        %v3465 = vpop.f32.mrf.mxu0
        %v3466 = vadd.f32 %v3401, %v3465
        %3467 = vmatmul.f32.gmra.mxu0 %v3141
        %v3468 = vpop.f32.mrf.mxu0
        %v3469 = vadd.f32 %v3404, %v3468
        %3470 = vmatmul.f32.gmra.mxu0 %v3142
        %v3471 = vpop.f32.mrf.mxu0
        %v3472 = vadd.f32 %v3407, %v3471
        %3473 = vdwg.mxu0
        %3474 = vmatpush.msra.mxu0 %v3222
        %3475 = vmatpush.msra.mxu0 %v3221
        %3476 = vmatpush.msra.mxu0 %v3220
        %3477 = vmatpush.msra.mxu0 %v3219
        %3478 = vmatpush.msra.mxu0 %v3218
        %3479 = vmatpush.msra.mxu0 %v3217
        %3480 = vmatpush.msra.mxu0 %v3216
        %3481 = vmatpush.msra.mxu0 %v3215
        %3482 = vmatpush.msra.mxu0 %v3214
        %3483 = vmatpush.msra.mxu0 %v3213
        %3484 = vmatpush.msra.mxu0 %v3212
        %3485 = vmatpush.msra.mxu0 %v3211
        %3486 = vmatpush.msra.mxu0 %v3210
        %3487 = vmatpush.msra.mxu0 %v3209
        %3488 = vmatpush.msra.mxu0 %v3208
        %3489 = vmatpush.msra.mxu0 %v3207
        %3490 = vmatmul.f32.gmra.mxu0 %v3143
        %v3491 = vpop.f32.mrf.mxu0
        %v3492 = vadd.f32 %v3427, %v3491
        %3493 = vmatmul.f32.gmra.mxu0 %v3144
        %v3494 = vpop.f32.mrf.mxu0
        %v3495 = vadd.f32 %v3430, %v3494
        %3496 = vmatmul.f32.gmra.mxu0 %v3145
        %v3497 = vpop.f32.mrf.mxu0
        %v3498 = vadd.f32 %v3433, %v3497
        %3499 = vmatmul.f32.gmra.mxu0 %v3146
        %v3500 = vpop.f32.mrf.mxu0
        %v3501 = vadd.f32 %v3436, %v3500
        %3502 = vmatmul.f32.gmra.mxu0 %v3147
        %v3503 = vpop.f32.mrf.mxu0
        %v3504 = vadd.f32 %v3439, %v3503
        %3505 = vmatmul.f32.gmra.mxu0 %v3148
        %v3506 = vpop.f32.mrf.mxu0
        %v3507 = vadd.f32 %v3442, %v3506
        %3508 = vmatmul.f32.gmra.mxu0 %v3149
        %v3509 = vpop.f32.mrf.mxu0
        %v3510 = vadd.f32 %v3445, %v3509
        %3511 = vmatmul.f32.gmra.mxu0 %v3150
        %v3512 = vpop.f32.mrf.mxu0
        %v3513 = vadd.f32 %v3448, %v3512
        %3514 = vmatmul.f32.gmra.mxu0 %v3151
        %v3515 = vpop.f32.mrf.mxu0
        %v3516 = vadd.f32 %v3451, %v3515
        %3517 = vmatmul.f32.gmra.mxu0 %v3152
        %v3518 = vpop.f32.mrf.mxu0
        %v3519 = vadd.f32 %v3454, %v3518
        %3520 = vmatmul.f32.gmra.mxu0 %v3153
        %v3521 = vpop.f32.mrf.mxu0
        %v3522 = vadd.f32 %v3457, %v3521
        %3523 = vmatmul.f32.gmra.mxu0 %v3154
        %v3524 = vpop.f32.mrf.mxu0
        %v3525 = vadd.f32 %v3460, %v3524
        %3526 = vmatmul.f32.gmra.mxu0 %v3155
        %v3527 = vpop.f32.mrf.mxu0
        %v3528 = vadd.f32 %v3463, %v3527
        %3529 = vmatmul.f32.gmra.mxu0 %v3156
        %v3530 = vpop.f32.mrf.mxu0
        %v3531 = vadd.f32 %v3466, %v3530
        %3532 = vmatmul.f32.gmra.mxu0 %v3157
        %v3533 = vpop.f32.mrf.mxu0
        %v3534 = vadd.f32 %v3469, %v3533
        %3535 = vmatmul.f32.gmra.mxu0 %v3158
        %v3536 = vpop.f32.mrf.mxu0
        %v3537 = vadd.f32 %v3472, %v3536
        %3538 = vdwg.mxu0
        %3539 = vmatpush.msra.mxu0 0.0
        %3540 = vmatpush.msra.mxu0 0.0
        %3541 = vmatpush.msra.mxu0 0.0
        %3542 = vmatpush.msra.mxu0 0.0
        %3543 = vmatpush.msra.mxu0 0.0
        %3544 = vmatpush.msra.mxu0 0.0
        %3545 = vmatpush.msra.mxu0 0.0
        %3546 = vmatpush.msra.mxu0 0.0
        %3547 = vmatpush.msra.mxu0 %v3230
        %3548 = vmatpush.msra.mxu0 %v3229
        %3549 = vmatpush.msra.mxu0 %v3228
        %3550 = vmatpush.msra.mxu0 %v3227
        %3551 = vmatpush.msra.mxu0 %v3226
        %3552 = vmatpush.msra.mxu0 %v3225
        %3553 = vmatpush.msra.mxu0 %v3224
        %3554 = vmatpush.msra.mxu0 %v3223
        %3555 = vmatmul.f32.gmra.mxu0 %v3232
        %v3556 = vpop.f32.mrf.mxu0
        %v3557 = vadd.f32 %v3492, %v3556
        %3558 = vmatmul.f32.gmra.mxu0 %v3235
        %v3559 = vpop.f32.mrf.mxu0
        %v3560 = vadd.f32 %v3495, %v3559
        %3561 = vmatmul.f32.gmra.mxu0 %v3238
        %v3562 = vpop.f32.mrf.mxu0
        %v3563 = vadd.f32 %v3498, %v3562
        %3564 = vmatmul.f32.gmra.mxu0 %v3241
        %v3565 = vpop.f32.mrf.mxu0
        %v3566 = vadd.f32 %v3501, %v3565
        %3567 = vmatmul.f32.gmra.mxu0 %v3244
        %v3568 = vpop.f32.mrf.mxu0
        %v3569 = vadd.f32 %v3504, %v3568
        %3570 = vmatmul.f32.gmra.mxu0 %v3247
        %v3571 = vpop.f32.mrf.mxu0
        %v3572 = vadd.f32 %v3507, %v3571
        %3573 = vmatmul.f32.gmra.mxu0 %v3250
        %v3574 = vpop.f32.mrf.mxu0
        %v3575 = vadd.f32 %v3510, %v3574
        %3576 = vmatmul.f32.gmra.mxu0 %v3253
        %v3577 = vpop.f32.mrf.mxu0
        %v3578 = vadd.f32 %v3513, %v3577
        %3579 = vmatmul.f32.gmra.mxu0 %v3256
        %v3580 = vpop.f32.mrf.mxu0
        %v3581 = vadd.f32 %v3516, %v3580
        %3582 = vmatmul.f32.gmra.mxu0 %v3259
        %v3583 = vpop.f32.mrf.mxu0
        %v3584 = vadd.f32 %v3519, %v3583
        %3585 = vmatmul.f32.gmra.mxu0 %v3262
        %v3586 = vpop.f32.mrf.mxu0
        %v3587 = vadd.f32 %v3522, %v3586
        %3588 = vmatmul.f32.gmra.mxu0 %v3265
        %v3589 = vpop.f32.mrf.mxu0
        %v3590 = vadd.f32 %v3525, %v3589
        %3591 = vmatmul.f32.gmra.mxu0 %v3268
        %v3592 = vpop.f32.mrf.mxu0
        %v3593 = vadd.f32 %v3528, %v3592
        %3594 = vmatmul.f32.gmra.mxu0 %v3271
        %v3595 = vpop.f32.mrf.mxu0
        %v3596 = vadd.f32 %v3531, %v3595
        %3597 = vmatmul.f32.gmra.mxu0 %v3274
        %v3598 = vpop.f32.mrf.mxu0
        %v3599 = vadd.f32 %v3534, %v3598
        %3600 = vmatmul.f32.gmra.mxu0 %v3277
        %v3601 = vpop.f32.mrf.mxu0
        %v3602 = vadd.f32 %v3537, %v3601
        %3603 = vdwg.mxu0
        %v3604 = vmax.f32 %v3557, 0.0
        %v3605 = vmax.f32 %v3560, 0.0
        %v3606 = vmax.f32 %v3563, 0.0
        %v3607 = vmax.f32 %v3566, 0.0
        %v3608 = vmax.f32 %v3569, 0.0
        %v3609 = vmax.f32 %v3572, 0.0
        %v3610 = vmax.f32 %v3575, 0.0
        %v3611 = vmax.f32 %v3578, 0.0
        %v3612 = vmax.f32 %v3581, 0.0
        %v3613 = vmax.f32 %v3584, 0.0
        %v3614 = vmax.f32 %v3587, 0.0
        %v3615 = vmax.f32 %v3590, 0.0
        %v3616 = vmax.f32 %v3593, 0.0
        %v3617 = vmax.f32 %v3596, 0.0
        %v3618 = vmax.f32 %v3599, 0.0
        %v3619 = vmax.f32 %v3602, 0.0
        %v3620 = vld [vmem:[#allocation10] sm:$0xff]
        %v3621 = vld [vmem:[#allocation10 + $0x8] sm:$0xff]
        %v3622 = vld [vmem:[#allocation10 + $0x10] sm:$0xff]
        %v3623 = vld [vmem:[#allocation10 + $0x18] sm:$0xff]
        %v3624 = vld [vmem:[#allocation10 + $0x20] sm:$0xff]
        %v3625 = vld [vmem:[#allocation10 + $0x28] sm:$0xff]
        %v3626 = vld [vmem:[#allocation10 + $0x30] sm:$0xff]
        %v3627 = vld [vmem:[#allocation10 + $0x38] sm:$0xff]
        %v3628 = vld [vmem:[#allocation10 + $0x40] sm:$0xff]
        %v3629 = vld [vmem:[#allocation10 + $0x48] sm:$0xff]
        %v3630 = vld [vmem:[#allocation10 + $0x50] sm:$0xff]
        %v3631 = vld [vmem:[#allocation10 + $0x58] sm:$0xff]
        %v3632 = vld [vmem:[#allocation10 + $0x60] sm:$0xff]
        %v3633 = vld [vmem:[#allocation10 + $0x68] sm:$0xff]
        %v3634 = vld [vmem:[#allocation10 + $0x70] sm:$0xff]
        %v3635 = vld [vmem:[#allocation10 + $0x78] sm:$0xff]
        %v3636 = vld [vmem:[#allocation10 + $0x80] sm:$0xff]
        %v3637 = vld [vmem:[#allocation10 + $0x88] sm:$0xff]
        %v3638 = vld [vmem:[#allocation10 + $0x90] sm:$0xff]
        %v3639 = vld [vmem:[#allocation10 + $0x98] sm:$0xff]
        %v3640 = vld [vmem:[#allocation10 + $0xa0] sm:$0xff]
        %v3641 = vld [vmem:[#allocation10 + $0xa8] sm:$0xff]
        %v3642 = vld [vmem:[#allocation10 + $0xb0] sm:$0xff]
        %v3643 = vld [vmem:[#allocation10 + $0xb8] sm:$0xff]
        %v3644 = vld [vmem:[#allocation10 + $0xc0] sm:$0xff]
        %v3645 = vld [vmem:[#allocation10 + $0xc8] sm:$0xff]
        %v3646 = vld [vmem:[#allocation10 + $0xd0] sm:$0xff]
        %v3647 = vld [vmem:[#allocation10 + $0xd8] sm:$0xff]
        %v3648 = vld [vmem:[#allocation10 + $0xe0] sm:$0xff]
        %v3649 = vld [vmem:[#allocation10 + $0xe8] sm:$0xff]
        %v3650 = vld [vmem:[#allocation10 + $0xf0] sm:$0xff]
        %v3651 = vld [vmem:[#allocation10 + $0xf8] sm:$0xff]
        %v3652 = vld [vmem:[#allocation10 + $0x100] sm:$0xff]
        %v3653 = vld [vmem:[#allocation10 + $0x108] sm:$0xff]
        %v3654 = vld [vmem:[#allocation10 + $0x110] sm:$0xff]
        %v3655 = vld [vmem:[#allocation10 + $0x118] sm:$0xff]
        %3656 = vmatpush.msra.mxu0 %v3619
        %3657 = vmatpush.msra.mxu0 %v3618
        %3658 = vmatpush.msra.mxu0 %v3617
        %3659 = vmatpush.msra.mxu0 %v3616
        %3660 = vmatpush.msra.mxu0 %v3615
        %3661 = vmatpush.msra.mxu0 %v3614
        %3662 = vmatpush.msra.mxu0 %v3613
        %3663 = vmatpush.msra.mxu0 %v3612
        %3664 = vmatpush.msra.mxu0 %v3611
        %3665 = vmatpush.msra.mxu0 %v3610
        %3666 = vmatpush.msra.mxu0 %v3609
        %3667 = vmatpush.msra.mxu0 %v3608
        %3668 = vmatpush.msra.mxu0 %v3607
        %3669 = vmatpush.msra.mxu0 %v3606
        %3670 = vmatpush.msra.mxu0 %v3605
        %3671 = vmatpush.msra.mxu0 %v3604
        %3672 = vmatmul.f32.gmra.mxu0 %v3620
        %v3673 = vpop.f32.mrf.mxu0
        %v3674 = vadd.f32 0.0, %v3673
        %3675 = vmatmul.f32.gmra.mxu0 %v3621
        %v3676 = vpop.f32.mrf.mxu0
        %v3677 = vadd.f32 0.0, %v3676
        %3678 = vmatmul.f32.gmra.mxu0 %v3622
        %v3679 = vpop.f32.mrf.mxu0
        %v3680 = vadd.f32 0.0, %v3679
        %3681 = vmatmul.f32.gmra.mxu0 %v3623
        %v3682 = vpop.f32.mrf.mxu0
        %v3683 = vadd.f32 0.0, %v3682
        %3684 = vmatmul.f32.gmra.mxu0 %v3624
        %v3685 = vpop.f32.mrf.mxu0
        %v3686 = vadd.f32 0.0, %v3685
        %3687 = vmatmul.f32.gmra.mxu0 %v3625
        %v3688 = vpop.f32.mrf.mxu0
        %v3689 = vadd.f32 0.0, %v3688
        %3690 = vmatmul.f32.gmra.mxu0 %v3626
        %v3691 = vpop.f32.mrf.mxu0
        %v3692 = vadd.f32 0.0, %v3691
        %3693 = vmatmul.f32.gmra.mxu0 %v3627
        %v3694 = vpop.f32.mrf.mxu0
        %v3695 = vadd.f32 0.0, %v3694
        %3696 = vmatmul.f32.gmra.mxu0 %v3628
        %v3697 = vpop.f32.mrf.mxu0
        %v3698 = vadd.f32 0.0, %v3697
        %3699 = vmatmul.f32.gmra.mxu0 %v3629
        %v3700 = vpop.f32.mrf.mxu0
        %v3701 = vadd.f32 0.0, %v3700
        %3702 = vmatmul.f32.gmra.mxu0 %v3630
        %v3703 = vpop.f32.mrf.mxu0
        %v3704 = vadd.f32 0.0, %v3703
        %3705 = vmatmul.f32.gmra.mxu0 %v3631
        %v3706 = vpop.f32.mrf.mxu0
        %v3707 = vadd.f32 0.0, %v3706
        %3708 = vmatmul.f32.gmra.mxu0 %v3632
        %v3709 = vpop.f32.mrf.mxu0
        %v3710 = vadd.f32 0.0, %v3709
        %3711 = vmatmul.f32.gmra.mxu0 %v3633
        %v3712 = vpop.f32.mrf.mxu0
        %v3713 = vadd.f32 0.0, %v3712
        %3714 = vmatmul.f32.gmra.mxu0 %v3634
        %v3715 = vpop.f32.mrf.mxu0
        %v3716 = vadd.f32 0.0, %v3715
        %3717 = vmatmul.f32.gmra.mxu0 %v3635
        %v3718 = vpop.f32.mrf.mxu0
        %v3719 = vadd.f32 0.0, %v3718
        %3720 = vmatmul.f32.gmra.mxu0 %v3636
        %v3721 = vpop.f32.mrf.mxu0
        %v3722 = vadd.f32 0.0, %v3721
        %3723 = vmatmul.f32.gmra.mxu0 %v3637
        %v3724 = vpop.f32.mrf.mxu0
        %v3725 = vadd.f32 0.0, %v3724
        %3726 = vmatmul.f32.gmra.mxu0 %v3638
        %v3727 = vpop.f32.mrf.mxu0
        %v3728 = vadd.f32 0.0, %v3727
        %3729 = vmatmul.f32.gmra.mxu0 %v3639
        %v3730 = vpop.f32.mrf.mxu0
        %v3731 = vadd.f32 0.0, %v3730
        %3732 = vmatmul.f32.gmra.mxu0 %v3640
        %v3733 = vpop.f32.mrf.mxu0
        %v3734 = vadd.f32 0.0, %v3733
        %3735 = vmatmul.f32.gmra.mxu0 %v3641
        %v3736 = vpop.f32.mrf.mxu0
        %v3737 = vadd.f32 0.0, %v3736
        %3738 = vmatmul.f32.gmra.mxu0 %v3642
        %v3739 = vpop.f32.mrf.mxu0
        %v3740 = vadd.f32 0.0, %v3739
        %3741 = vmatmul.f32.gmra.mxu0 %v3643
        %v3742 = vpop.f32.mrf.mxu0
        %v3743 = vadd.f32 0.0, %v3742
        %3744 = vmatmul.f32.gmra.mxu0 %v3644
        %v3745 = vpop.f32.mrf.mxu0
        %v3746 = vadd.f32 0.0, %v3745
        %3747 = vmatmul.f32.gmra.mxu0 %v3645
        %v3748 = vpop.f32.mrf.mxu0
        %v3749 = vadd.f32 0.0, %v3748
        %3750 = vmatmul.f32.gmra.mxu0 %v3646
        %v3751 = vpop.f32.mrf.mxu0
        %v3752 = vadd.f32 0.0, %v3751
        %3753 = vmatmul.f32.gmra.mxu0 %v3647
        %v3754 = vpop.f32.mrf.mxu0
        %v3755 = vadd.f32 0.0, %v3754
        %3756 = vmatmul.f32.gmra.mxu0 %v3648
        %v3757 = vpop.f32.mrf.mxu0
        %v3758 = vadd.f32 0.0, %v3757
        %3759 = vmatmul.f32.gmra.mxu0 %v3649
        %v3760 = vpop.f32.mrf.mxu0
        %v3761 = vadd.f32 0.0, %v3760
        %3762 = vmatmul.f32.gmra.mxu0 %v3650
        %v3763 = vpop.f32.mrf.mxu0
        %v3764 = vadd.f32 0.0, %v3763
        %3765 = vmatmul.f32.gmra.mxu0 %v3651
        %v3766 = vpop.f32.mrf.mxu0
        %v3767 = vadd.f32 0.0, %v3766
        %3768 = vmatmul.f32.gmra.mxu0 %v3652
        %v3769 = vpop.f32.mrf.mxu0
        %v3770 = vadd.f32 0.0, %v3769
        %3771 = vmatmul.f32.gmra.mxu0 %v3653
        %v3772 = vpop.f32.mrf.mxu0
        %v3773 = vadd.f32 0.0, %v3772
        %3774 = vmatmul.f32.gmra.mxu0 %v3654
        %v3775 = vpop.f32.mrf.mxu0
        %v3776 = vadd.f32 0.0, %v3775
        %3777 = vmatmul.f32.gmra.mxu0 %v3655
        %v3778 = vpop.f32.mrf.mxu0
        %v3779 = vadd.f32 0.0, %v3778
        %3780 = vdwg.mxu0
        %3785 = vrot.lane.b32.xlu0 %v3686, 64
        %v3786 = vpop.permute.xlu0 %3785
        %3787 = vrot.lane.b32.xlu0 %v3689, 64
        %v3788 = vpop.permute.xlu0 %3787
        %3789 = vrot.lane.b32.xlu0 %v3692, 64
        %v3790 = vpop.permute.xlu0 %3789
        %3791 = vrot.lane.b32.xlu0 %v3695, 64
        %v3792 = vpop.permute.xlu0 %3791
        %3801 = vrot.lane.b32.xlu0 %v3710, 64
        %v3802 = vpop.permute.xlu0 %3801
        %3803 = vrot.lane.b32.xlu0 %v3713, 64
        %v3804 = vpop.permute.xlu0 %3803
        %3805 = vrot.lane.b32.xlu0 %v3716, 64
        %v3806 = vpop.permute.xlu0 %3805
        %3807 = vrot.lane.b32.xlu0 %v3719, 64
        %v3808 = vpop.permute.xlu0 %3807
        %3817 = vrot.lane.b32.xlu0 %v3734, 64
        %v3818 = vpop.permute.xlu0 %3817
        %3819 = vrot.lane.b32.xlu0 %v3737, 64
        %v3820 = vpop.permute.xlu0 %3819
        %3821 = vrot.lane.b32.xlu0 %v3740, 64
        %v3822 = vpop.permute.xlu0 %3821
        %3823 = vrot.lane.b32.xlu0 %v3743, 64
        %v3824 = vpop.permute.xlu0 %3823
        %3833 = vrot.lane.b32.xlu0 %v3758, 64
        %v3834 = vpop.permute.xlu0 %3833
        %3835 = vrot.lane.b32.xlu0 %v3761, 64
        %v3836 = vpop.permute.xlu0 %3835
        %3837 = vrot.lane.b32.xlu0 %v3764, 64
        %v3838 = vpop.permute.xlu0 %3837
        %3839 = vrot.lane.b32.xlu0 %v3767, 64
        %v3840 = vpop.permute.xlu0 %3839
        %v3845 = vsel %vm3094, %v3674, %v3786
        %v3846 = vsel %vm3094, %v3677, %v3788
        %v3847 = vsel %vm3094, %v3680, %v3790
        %v3848 = vsel %vm3094, %v3683, %v3792
        %v3849 = vsel %vm3094, %v3698, %v3802
        %v3850 = vsel %vm3094, %v3701, %v3804
        %v3851 = vsel %vm3094, %v3704, %v3806
        %v3852 = vsel %vm3094, %v3707, %v3808
        %v3853 = vsel %vm3094, %v3722, %v3818
        %v3854 = vsel %vm3094, %v3725, %v3820
        %v3855 = vsel %vm3094, %v3728, %v3822
        %v3856 = vsel %vm3094, %v3731, %v3824
        %v3857 = vsel %vm3094, %v3746, %v3834
        %v3858 = vsel %vm3094, %v3749, %v3836
        %v3859 = vsel %vm3094, %v3752, %v3838
        %v3860 = vsel %vm3094, %v3755, %v3840
        %v3861 = vld [vmem:[#allocation6] sm:$0xff]
        %v3862 = vld [vmem:[#allocation6 + $0x8] sm:$0xff]
        %v3863 = vld [vmem:[#allocation6 + $0x10] sm:$0xff]
        %v3864 = vld [vmem:[#allocation6 + $0x18] sm:$0xff]
        %v3865 = vld [vmem:[#allocation6 + $0x20] sm:$0xff]
        %v3866 = vld [vmem:[#allocation6 + $0x28] sm:$0xff]
        %v3867 = vld [vmem:[#allocation6 + $0x30] sm:$0xff]
        %v3868 = vld [vmem:[#allocation6 + $0x38] sm:$0xff]
        %v3869 = vld [vmem:[#allocation6 + $0x40] sm:$0xff]
        %v3870 = vld [vmem:[#allocation6 + $0x48] sm:$0xff]
        %v3871 = vld [vmem:[#allocation6 + $0x50] sm:$0xff]
        %v3872 = vld [vmem:[#allocation6 + $0x58] sm:$0xff]
        %v3873 = vld [vmem:[#allocation6 + $0x60] sm:$0xff]
        %v3874 = vld [vmem:[#allocation6 + $0x68] sm:$0xff]
        %v3875 = vld [vmem:[#allocation6 + $0x70] sm:$0xff]
        %v3876 = vld [vmem:[#allocation6 + $0x78] sm:$0xff]
        %v3877 = vld [vmem:[#allocation6 + $0x80] sm:$0xff]
        %v3878 = vld [vmem:[#allocation6 + $0x88] sm:$0xff]
        %v3879 = vld [vmem:[#allocation6 + $0x90] sm:$0xff]
        %v3880 = vld [vmem:[#allocation6 + $0x98] sm:$0xff]
        %v3881 = vld [vmem:[#allocation6 + $0xa0] sm:$0xff]
        %v3882 = vld [vmem:[#allocation6 + $0xa8] sm:$0xff]
        %v3883 = vld [vmem:[#allocation6 + $0xb0] sm:$0xff]
        %v3884 = vld [vmem:[#allocation6 + $0xb8] sm:$0xff]
        %v3885 = vld [vmem:[#allocation6 + $0xc0] sm:$0xff]
        %v3886 = vld [vmem:[#allocation6 + $0xc8] sm:$0xff]
        %v3887 = vld [vmem:[#allocation6 + $0xd0] sm:$0xff]
        %v3888 = vld [vmem:[#allocation6 + $0xd8] sm:$0xff]
        %v3889 = vld [vmem:[#allocation6 + $0xe0] sm:$0xff]
        %v3890 = vld [vmem:[#allocation6 + $0xe8] sm:$0xff]
        %v3891 = vld [vmem:[#allocation6 + $0xf0] sm:$0xff]
        %v3892 = vld [vmem:[#allocation6 + $0xf8] sm:$0xff]
        %v3893 = vld [vmem:[#allocation6 + $0x100] sm:$0xff]
        %v3894 = vld [vmem:[#allocation6 + $0x108] sm:$0xff]
        %v3895 = vld [vmem:[#allocation6 + $0x110] sm:$0xff]
        %v3896 = vld [vmem:[#allocation6 + $0x118] sm:$0xff]
        %v3897 = vld [vmem:[#allocation6 + $0x120] sm:$0xff]
        %v3898 = vld [vmem:[#allocation6 + $0x128] sm:$0xff]
        %v3899 = vld [vmem:[#allocation6 + $0x130] sm:$0xff]
        %v3900 = vld [vmem:[#allocation6 + $0x138] sm:$0xff]
        %v3901 = vld [vmem:[#allocation6 + $0x140] sm:$0xff]
        %v3902 = vld [vmem:[#allocation6 + $0x148] sm:$0xff]
        %v3903 = vld [vmem:[#allocation6 + $0x150] sm:$0xff]
        %v3904 = vld [vmem:[#allocation6 + $0x158] sm:$0xff]
        %v3905 = vld [vmem:[#allocation6 + $0x160] sm:$0xff]
        %v3906 = vld [vmem:[#allocation6 + $0x168] sm:$0xff]
        %v3907 = vld [vmem:[#allocation6 + $0x170] sm:$0xff]
        %v3908 = vld [vmem:[#allocation6 + $0x178] sm:$0xff]
        %v3909 = vld [vmem:[#allocation6 + $0x180] sm:$0xff]
        %v3910 = vld [vmem:[#allocation6 + $0x188] sm:$0xff]
        %v3911 = vld [vmem:[#allocation6 + $0x190] sm:$0xff]
        %v3912 = vld [vmem:[#allocation6 + $0x198] sm:$0xff]
        %v3913 = vld [vmem:[#allocation6 + $0x1a0] sm:$0xff]
        %v3914 = vld [vmem:[#allocation6 + $0x1a8] sm:$0xff]
        %v3915 = vld [vmem:[#allocation6 + $0x1b0] sm:$0xff]
        %v3916 = vld [vmem:[#allocation6 + $0x1b8] sm:$0xff]
        %v3917 = vld [vmem:[#allocation6 + $0x1c0] sm:$0xff]
        %v3918 = vld [vmem:[#allocation6 + $0x1c8] sm:$0xff]
        %v3919 = vld [vmem:[#allocation6 + $0x1d0] sm:$0xff]
        %v3920 = vld [vmem:[#allocation6 + $0x1d8] sm:$0xff]
        %v3921 = vld [vmem:[#allocation6 + $0x1e0] sm:$0xff]
        %v3922 = vld [vmem:[#allocation6 + $0x1e8] sm:$0xff]
        %v3923 = vld [vmem:[#allocation6 + $0x1f0] sm:$0xff]
        %v3924 = vld [vmem:[#allocation6 + $0x1f8] sm:$0xff]
        %v3925 = vld [vmem:[#allocation6 + $0x200] sm:$0xff]
        %v3926 = vld [vmem:[#allocation6 + $0x208] sm:$0xff]
        %v3927 = vld [vmem:[#allocation6 + $0x210] sm:$0xff]
        %v3928 = vld [vmem:[#allocation6 + $0x218] sm:$0xff]
        %v3929 = vld [vmem:[#allocation6 + $0x220] sm:$0xff]
        %v3930 = vld [vmem:[#allocation6 + $0x228] sm:$0xff]
        %v3931 = vld [vmem:[#allocation6 + $0x230] sm:$0xff]
        %v3932 = vld [vmem:[#allocation6 + $0x238] sm:$0xff]
        %v3934 = vsel %vm3094, %v3770, 0
        %v3937 = vsel %vm3094, %v3773, 0
        %v3940 = vsel %vm3094, %v3776, 0
        %v3943 = vsel %vm3094, %v3779, 0
        %3945 = vmatpush.msra.mxu0 %v3876
        %3946 = vmatpush.msra.mxu0 %v3875
        %3947 = vmatpush.msra.mxu0 %v3874
        %3948 = vmatpush.msra.mxu0 %v3873
        %3949 = vmatpush.msra.mxu0 %v3872
        %3950 = vmatpush.msra.mxu0 %v3871
        %3951 = vmatpush.msra.mxu0 %v3870
        %3952 = vmatpush.msra.mxu0 %v3869
        %3953 = vmatpush.msra.mxu0 %v3868
        %3954 = vmatpush.msra.mxu0 %v3867
        %3955 = vmatpush.msra.mxu0 %v3866
        %3956 = vmatpush.msra.mxu0 %v3865
        %3957 = vmatpush.msra.mxu0 %v3864
        %3958 = vmatpush.msra.mxu0 %v3863
        %3959 = vmatpush.msra.mxu0 %v3862
        %3960 = vmatpush.msra.mxu0 %v3861
        %3961 = vmatmul.f32.gmra.mxu0 %v3845
        %v3962 = vpop.f32.mrf.mxu0
        %v3963 = vadd.f32 0.0, %v3962
        %3964 = vmatmul.f32.gmra.mxu0 %v3846
        %v3965 = vpop.f32.mrf.mxu0
        %v3966 = vadd.f32 0.0, %v3965
        %3967 = vmatmul.f32.gmra.mxu0 %v3847
        %v3968 = vpop.f32.mrf.mxu0
        %v3969 = vadd.f32 0.0, %v3968
        %3970 = vmatmul.f32.gmra.mxu0 %v3848
        %v3971 = vpop.f32.mrf.mxu0
        %v3972 = vadd.f32 0.0, %v3971
        %3973 = vdwg.mxu0
        %3974 = vmatpush.msra.mxu0 %v3892
        %3975 = vmatpush.msra.mxu0 %v3891
        %3976 = vmatpush.msra.mxu0 %v3890
        %3977 = vmatpush.msra.mxu0 %v3889
        %3978 = vmatpush.msra.mxu0 %v3888
        %3979 = vmatpush.msra.mxu0 %v3887
        %3980 = vmatpush.msra.mxu0 %v3886
        %3981 = vmatpush.msra.mxu0 %v3885
        %3982 = vmatpush.msra.mxu0 %v3884
        %3983 = vmatpush.msra.mxu0 %v3883
        %3984 = vmatpush.msra.mxu0 %v3882
        %3985 = vmatpush.msra.mxu0 %v3881
        %3986 = vmatpush.msra.mxu0 %v3880
        %3987 = vmatpush.msra.mxu0 %v3879
        %3988 = vmatpush.msra.mxu0 %v3878
        %3989 = vmatpush.msra.mxu0 %v3877
        %3990 = vmatmul.f32.gmra.mxu0 %v3849
        %v3991 = vpop.f32.mrf.mxu0
        %v3992 = vadd.f32 %v3963, %v3991
        %3993 = vmatmul.f32.gmra.mxu0 %v3850
        %v3994 = vpop.f32.mrf.mxu0
        %v3995 = vadd.f32 %v3966, %v3994
        %3996 = vmatmul.f32.gmra.mxu0 %v3851
        %v3997 = vpop.f32.mrf.mxu0
        %v3998 = vadd.f32 %v3969, %v3997
        %3999 = vmatmul.f32.gmra.mxu0 %v3852
        %v4000 = vpop.f32.mrf.mxu0
        %v4001 = vadd.f32 %v3972, %v4000
        %4002 = vdwg.mxu0
        %4003 = vmatpush.msra.mxu0 %v3908
        %4004 = vmatpush.msra.mxu0 %v3907
        %4005 = vmatpush.msra.mxu0 %v3906
        %4006 = vmatpush.msra.mxu0 %v3905
        %4007 = vmatpush.msra.mxu0 %v3904
        %4008 = vmatpush.msra.mxu0 %v3903
        %4009 = vmatpush.msra.mxu0 %v3902
        %4010 = vmatpush.msra.mxu0 %v3901
        %4011 = vmatpush.msra.mxu0 %v3900
        %4012 = vmatpush.msra.mxu0 %v3899
        %4013 = vmatpush.msra.mxu0 %v3898
        %4014 = vmatpush.msra.mxu0 %v3897
        %4015 = vmatpush.msra.mxu0 %v3896
        %4016 = vmatpush.msra.mxu0 %v3895
        %4017 = vmatpush.msra.mxu0 %v3894
        %4018 = vmatpush.msra.mxu0 %v3893
        %4019 = vmatmul.f32.gmra.mxu0 %v3853
        %v4020 = vpop.f32.mrf.mxu0
        %v4021 = vadd.f32 %v3992, %v4020
        %4022 = vmatmul.f32.gmra.mxu0 %v3854
        %v4023 = vpop.f32.mrf.mxu0
        %v4024 = vadd.f32 %v3995, %v4023
        %4025 = vmatmul.f32.gmra.mxu0 %v3855
        %v4026 = vpop.f32.mrf.mxu0
        %v4027 = vadd.f32 %v3998, %v4026
        %4028 = vmatmul.f32.gmra.mxu0 %v3856
        %v4029 = vpop.f32.mrf.mxu0
        %v4030 = vadd.f32 %v4001, %v4029
        %4031 = vdwg.mxu0
        %4032 = vmatpush.msra.mxu0 %v3924
        %4033 = vmatpush.msra.mxu0 %v3923
        %4034 = vmatpush.msra.mxu0 %v3922
        %4035 = vmatpush.msra.mxu0 %v3921
        %4036 = vmatpush.msra.mxu0 %v3920
        %4037 = vmatpush.msra.mxu0 %v3919
        %4038 = vmatpush.msra.mxu0 %v3918
        %4039 = vmatpush.msra.mxu0 %v3917
        %4040 = vmatpush.msra.mxu0 %v3916
        %4041 = vmatpush.msra.mxu0 %v3915
        %4042 = vmatpush.msra.mxu0 %v3914
        %4043 = vmatpush.msra.mxu0 %v3913
        %4044 = vmatpush.msra.mxu0 %v3912
        %4045 = vmatpush.msra.mxu0 %v3911
        %4046 = vmatpush.msra.mxu0 %v3910
        %4047 = vmatpush.msra.mxu0 %v3909
        %4048 = vmatmul.f32.gmra.mxu0 %v3857
        %v4049 = vpop.f32.mrf.mxu0
        %v4050 = vadd.f32 %v4021, %v4049
        %4051 = vmatmul.f32.gmra.mxu0 %v3858
        %v4052 = vpop.f32.mrf.mxu0
        %v4053 = vadd.f32 %v4024, %v4052
        %4054 = vmatmul.f32.gmra.mxu0 %v3859
        %v4055 = vpop.f32.mrf.mxu0
        %v4056 = vadd.f32 %v4027, %v4055
        %4057 = vmatmul.f32.gmra.mxu0 %v3860
        %v4058 = vpop.f32.mrf.mxu0
        %v4059 = vadd.f32 %v4030, %v4058
        %4060 = vdwg.mxu0
        %4061 = vmatpush.msra.mxu0 0.0
        %4062 = vmatpush.msra.mxu0 0.0
        %4063 = vmatpush.msra.mxu0 0.0
        %4064 = vmatpush.msra.mxu0 0.0
        %4065 = vmatpush.msra.mxu0 0.0
        %4066 = vmatpush.msra.mxu0 0.0
        %4067 = vmatpush.msra.mxu0 0.0
        %4068 = vmatpush.msra.mxu0 0.0
        %4069 = vmatpush.msra.mxu0 %v3932
        %4070 = vmatpush.msra.mxu0 %v3931
        %4071 = vmatpush.msra.mxu0 %v3930
        %4072 = vmatpush.msra.mxu0 %v3929
        %4073 = vmatpush.msra.mxu0 %v3928
        %4074 = vmatpush.msra.mxu0 %v3927
        %4075 = vmatpush.msra.mxu0 %v3926
        %4076 = vmatpush.msra.mxu0 %v3925
        %4077 = vmatmul.f32.gmra.mxu0 %v3934
        %v4078 = vpop.f32.mrf.mxu0
        %v4079 = vadd.f32 %v4050, %v4078
        %4080 = vmatmul.f32.gmra.mxu0 %v3937
        %v4081 = vpop.f32.mrf.mxu0
        %v4082 = vadd.f32 %v4053, %v4081
        %4083 = vmatmul.f32.gmra.mxu0 %v3940
        %v4084 = vpop.f32.mrf.mxu0
        %v4085 = vadd.f32 %v4056, %v4084
        %4086 = vmatmul.f32.gmra.mxu0 %v3943
        %v4087 = vpop.f32.mrf.mxu0
        %v4088 = vadd.f32 %v4059, %v4087
        %4089 = vdwg.mxu0
        %v4090 = vld [vmem:[#allocation12] sm:$0xff]
        %v4091 = vld [vmem:[#allocation12 + $0x8] sm:$0xff]
        %v4092 = vld [vmem:[#allocation12 + $0x10] sm:$0xff]
        %v4093 = vld [vmem:[#allocation12 + $0x18] sm:$0xff]
        %v4094 = vld [vmem:[#allocation12 + $0x20] sm:$0xff]
        %v4095 = vld [vmem:[#allocation12 + $0x28] sm:$0xff]
        %v4096 = vld [vmem:[#allocation12 + $0x30] sm:$0xff]
        %v4097 = vld [vmem:[#allocation12 + $0x38] sm:$0xff]
        %v4098 = vld [vmem:[#allocation12 + $0x40] sm:$0xff]
        %v4099 = vld [vmem:[#allocation12 + $0x48] sm:$0xff]
        %v4100 = vld [vmem:[#allocation12 + $0x50] sm:$0xff]
        %v4101 = vld [vmem:[#allocation12 + $0x58] sm:$0xff]
        %v4102 = vld [vmem:[#allocation12 + $0x60] sm:$0xff]
        %v4103 = vld [vmem:[#allocation12 + $0x68] sm:$0xff]
        %v4104 = vld [vmem:[#allocation12 + $0x70] sm:$0xff]
        %v4105 = vld [vmem:[#allocation12 + $0x78] sm:$0xff]
        %v4106 = vld [vmem:[#allocation12 + $0x80] sm:$0xff]
        %v4107 = vld [vmem:[#allocation12 + $0x88] sm:$0xff]
        %vm4108 = vcmask 261120
        %v4110 = vsel %vm4108, %v4090, 0
        %v4113 = vsel %vm4108, %v4091, 0
        %v4116 = vsel %vm4108, %v4092, 0
        %v4119 = vsel %vm4108, %v4093, 0
        %v4122 = vsel %vm4108, %v4094, 0
        %v4125 = vsel %vm4108, %v4095, 0
        %v4128 = vsel %vm4108, %v4096, 0
        %v4131 = vsel %vm4108, %v4097, 0
        %v4134 = vsel %vm4108, %v4098, 0
        %v4137 = vsel %vm4108, %v4099, 0
        %v4140 = vsel %vm4108, %v4100, 0
        %v4143 = vsel %vm4108, %v4101, 0
        %v4146 = vsel %vm4108, %v4102, 0
        %v4149 = vsel %vm4108, %v4103, 0
        %v4152 = vsel %vm4108, %v4104, 0
        %v4155 = vsel %vm4108, %v4105, 0
        %v4158 = vsel %vm4108, %v4106, 0
        %v4161 = vsel %vm4108, %v4107, 0
        %4163 = vmatpush.msra.mxu0 0.0
        %4164 = vmatpush.msra.mxu0 0.0
        %4165 = vmatpush.msra.mxu0 0.0
        %4166 = vmatpush.msra.mxu0 0.0
        %4167 = vmatpush.msra.mxu0 0.0
        %4168 = vmatpush.msra.mxu0 0.0
        %4169 = vmatpush.msra.mxu0 0.0
        %4170 = vmatpush.msra.mxu0 0.0
        %4171 = vmatpush.msra.mxu0 0.0
        %4172 = vmatpush.msra.mxu0 0.0
        %4173 = vmatpush.msra.mxu0 0.0
        %4174 = vmatpush.msra.mxu0 0.0
        %4175 = vmatpush.msra.mxu0 %v4088
        %4176 = vmatpush.msra.mxu0 %v4085
        %4177 = vmatpush.msra.mxu0 %v4082
        %4178 = vmatpush.msra.mxu0 %v4079
        %4179 = vmatmul.f32.gmra.mxu0 %v4110
        %v4180 = vpop.f32.mrf.mxu0
        %v4181 = vadd.f32 0.0, %v4180
        %4182 = vmatmul.f32.gmra.mxu0 %v4113
        %v4183 = vpop.f32.mrf.mxu0
        %v4184 = vadd.f32 0.0, %v4183
        %4185 = vmatmul.f32.gmra.mxu0 %v4116
        %v4186 = vpop.f32.mrf.mxu0
        %v4187 = vadd.f32 0.0, %v4186
        %4188 = vmatmul.f32.gmra.mxu0 %v4119
        %v4189 = vpop.f32.mrf.mxu0
        %v4190 = vadd.f32 0.0, %v4189
        %4191 = vmatmul.f32.gmra.mxu0 %v4122
        %v4192 = vpop.f32.mrf.mxu0
        %v4193 = vadd.f32 0.0, %v4192
        %4194 = vmatmul.f32.gmra.mxu0 %v4125
        %v4195 = vpop.f32.mrf.mxu0
        %v4196 = vadd.f32 0.0, %v4195
        %4197 = vmatmul.f32.gmra.mxu0 %v4128
        %v4198 = vpop.f32.mrf.mxu0
        %v4199 = vadd.f32 0.0, %v4198
        %4200 = vmatmul.f32.gmra.mxu0 %v4131
        %v4201 = vpop.f32.mrf.mxu0
        %v4202 = vadd.f32 0.0, %v4201
        %4203 = vmatmul.f32.gmra.mxu0 %v4134
        %v4204 = vpop.f32.mrf.mxu0
        %v4205 = vadd.f32 0.0, %v4204
        %4206 = vmatmul.f32.gmra.mxu0 %v4137
        %v4207 = vpop.f32.mrf.mxu0
        %v4208 = vadd.f32 0.0, %v4207
        %4209 = vmatmul.f32.gmra.mxu0 %v4140
        %v4210 = vpop.f32.mrf.mxu0
        %v4211 = vadd.f32 0.0, %v4210
        %4212 = vmatmul.f32.gmra.mxu0 %v4143
        %v4213 = vpop.f32.mrf.mxu0
        %v4214 = vadd.f32 0.0, %v4213
        %4215 = vmatmul.f32.gmra.mxu0 %v4146
        %v4216 = vpop.f32.mrf.mxu0
        %v4217 = vadd.f32 0.0, %v4216
        %4218 = vmatmul.f32.gmra.mxu0 %v4149
        %v4219 = vpop.f32.mrf.mxu0
        %v4220 = vadd.f32 0.0, %v4219
        %4221 = vmatmul.f32.gmra.mxu0 %v4152
        %v4222 = vpop.f32.mrf.mxu0
        %v4223 = vadd.f32 0.0, %v4222
        %4224 = vmatmul.f32.gmra.mxu0 %v4155
        %v4225 = vpop.f32.mrf.mxu0
        %v4226 = vadd.f32 0.0, %v4225
        %4227 = vmatmul.f32.gmra.mxu0 %v4158
        %v4228 = vpop.f32.mrf.mxu0
        %v4229 = vadd.f32 0.0, %v4228
        %4230 = vmatmul.f32.gmra.mxu0 %v4161
        %v4231 = vpop.f32.mrf.mxu0
        %v4232 = vadd.f32 0.0, %v4231
        %4233 = vdwg.mxu0
        %4236 = vrot.lane.b32.xlu0 %v4187, 64
        %v4237 = vpop.permute.xlu0 %4236
        %4238 = vrot.lane.b32.xlu0 %v4190, 64
        %v4239 = vpop.permute.xlu0 %4238
        %4244 = vrot.lane.b32.xlu0 %v4199, 64
        %v4245 = vpop.permute.xlu0 %4244
        %4246 = vrot.lane.b32.xlu0 %v4202, 64
        %v4247 = vpop.permute.xlu0 %4246
        %4252 = vrot.lane.b32.xlu0 %v4211, 64
        %v4253 = vpop.permute.xlu0 %4252
        %4254 = vrot.lane.b32.xlu0 %v4214, 64
        %v4255 = vpop.permute.xlu0 %4254
        %4260 = vrot.lane.b32.xlu0 %v4223, 64
        %v4261 = vpop.permute.xlu0 %4260
        %4262 = vrot.lane.b32.xlu0 %v4226, 64
        %v4263 = vpop.permute.xlu0 %4262
        %v4266 = vsel %vm3094, %v4181, %v4237
        %v4267 = vsel %vm3094, %v4184, %v4239
        %v4268 = vsel %vm3094, %v4193, %v4245
        %v4269 = vsel %vm3094, %v4196, %v4247
        %v4270 = vsel %vm3094, %v4205, %v4253
        %v4271 = vsel %vm3094, %v4208, %v4255
        %v4272 = vsel %vm3094, %v4217, %v4261
        %v4273 = vsel %vm3094, %v4220, %v4263
        %v4274 = vld [vmem:[#allocation7] sm:$0xff]
        %v4275 = vld [vmem:[#allocation7 + $0x8] sm:$0xff]
        %v4276 = vld [vmem:[#allocation7 + $0x10] sm:$0xff]
        %v4277 = vld [vmem:[#allocation7 + $0x18] sm:$0xff]
        %v4278 = vld [vmem:[#allocation7 + $0x20] sm:$0xff]
        %v4279 = vld [vmem:[#allocation7 + $0x28] sm:$0xff]
        %v4280 = vld [vmem:[#allocation7 + $0x30] sm:$0xff]
        %v4281 = vld [vmem:[#allocation7 + $0x38] sm:$0xff]
        %v4282 = vld [vmem:[#allocation7 + $0x40] sm:$0xff]
        %v4283 = vld [vmem:[#allocation7 + $0x48] sm:$0xff]
        %v4284 = vld [vmem:[#allocation7 + $0x50] sm:$0xff]
        %v4285 = vld [vmem:[#allocation7 + $0x58] sm:$0xff]
        %v4286 = vld [vmem:[#allocation7 + $0x60] sm:$0xff]
        %v4287 = vld [vmem:[#allocation7 + $0x68] sm:$0xff]
        %v4288 = vld [vmem:[#allocation7 + $0x70] sm:$0xff]
        %v4289 = vld [vmem:[#allocation7 + $0x78] sm:$0xff]
        %v4290 = vld [vmem:[#allocation7 + $0x80] sm:$0xff]
        %v4291 = vld [vmem:[#allocation7 + $0x88] sm:$0xff]
        %v4292 = vld [vmem:[#allocation7 + $0x90] sm:$0xff]
        %v4293 = vld [vmem:[#allocation7 + $0x98] sm:$0xff]
        %v4294 = vld [vmem:[#allocation7 + $0xa0] sm:$0xff]
        %v4295 = vld [vmem:[#allocation7 + $0xa8] sm:$0xff]
        %v4296 = vld [vmem:[#allocation7 + $0xb0] sm:$0xff]
        %v4297 = vld [vmem:[#allocation7 + $0xb8] sm:$0xff]
        %v4298 = vld [vmem:[#allocation7 + $0xc0] sm:$0xff]
        %v4299 = vld [vmem:[#allocation7 + $0xc8] sm:$0xff]
        %v4300 = vld [vmem:[#allocation7 + $0xd0] sm:$0xff]
        %v4301 = vld [vmem:[#allocation7 + $0xd8] sm:$0xff]
        %v4302 = vld [vmem:[#allocation7 + $0xe0] sm:$0xff]
        %v4303 = vld [vmem:[#allocation7 + $0xe8] sm:$0xff]
        %v4304 = vld [vmem:[#allocation7 + $0xf0] sm:$0xff]
        %v4305 = vld [vmem:[#allocation7 + $0xf8] sm:$0xff]
        %v4306 = vld [vmem:[#allocation7 + $0x100] sm:$0xff]
        %v4307 = vld [vmem:[#allocation7 + $0x108] sm:$0xff]
        %v4308 = vld [vmem:[#allocation7 + $0x110] sm:$0xff]
        %v4309 = vld [vmem:[#allocation7 + $0x118] sm:$0xff]
        %v4310 = vld [vmem:[#allocation7 + $0x120] sm:$0xff]
        %v4311 = vld [vmem:[#allocation7 + $0x128] sm:$0xff]
        %v4312 = vld [vmem:[#allocation7 + $0x130] sm:$0xff]
        %v4313 = vld [vmem:[#allocation7 + $0x138] sm:$0xff]
        %v4314 = vld [vmem:[#allocation7 + $0x140] sm:$0xff]
        %v4315 = vld [vmem:[#allocation7 + $0x148] sm:$0xff]
        %v4316 = vld [vmem:[#allocation7 + $0x150] sm:$0xff]
        %v4317 = vld [vmem:[#allocation7 + $0x158] sm:$0xff]
        %v4318 = vld [vmem:[#allocation7 + $0x160] sm:$0xff]
        %v4319 = vld [vmem:[#allocation7 + $0x168] sm:$0xff]
        %v4320 = vld [vmem:[#allocation7 + $0x170] sm:$0xff]
        %v4321 = vld [vmem:[#allocation7 + $0x178] sm:$0xff]
        %v4322 = vld [vmem:[#allocation7 + $0x180] sm:$0xff]
        %v4323 = vld [vmem:[#allocation7 + $0x188] sm:$0xff]
        %v4324 = vld [vmem:[#allocation7 + $0x190] sm:$0xff]
        %v4325 = vld [vmem:[#allocation7 + $0x198] sm:$0xff]
        %v4326 = vld [vmem:[#allocation7 + $0x1a0] sm:$0xff]
        %v4327 = vld [vmem:[#allocation7 + $0x1a8] sm:$0xff]
        %v4328 = vld [vmem:[#allocation7 + $0x1b0] sm:$0xff]
        %v4329 = vld [vmem:[#allocation7 + $0x1b8] sm:$0xff]
        %v4330 = vld [vmem:[#allocation7 + $0x1c0] sm:$0xff]
        %v4331 = vld [vmem:[#allocation7 + $0x1c8] sm:$0xff]
        %v4332 = vld [vmem:[#allocation7 + $0x1d0] sm:$0xff]
        %v4333 = vld [vmem:[#allocation7 + $0x1d8] sm:$0xff]
        %v4334 = vld [vmem:[#allocation7 + $0x1e0] sm:$0xff]
        %v4335 = vld [vmem:[#allocation7 + $0x1e8] sm:$0xff]
        %v4336 = vld [vmem:[#allocation7 + $0x1f0] sm:$0xff]
        %v4337 = vld [vmem:[#allocation7 + $0x1f8] sm:$0xff]
        %v4338 = vld [vmem:[#allocation7 + $0x200] sm:$0xff]
        %v4339 = vld [vmem:[#allocation7 + $0x208] sm:$0xff]
        %v4340 = vld [vmem:[#allocation7 + $0x210] sm:$0xff]
        %v4341 = vld [vmem:[#allocation7 + $0x218] sm:$0xff]
        %v4342 = vld [vmem:[#allocation7 + $0x220] sm:$0xff]
        %v4343 = vld [vmem:[#allocation7 + $0x228] sm:$0xff]
        %v4344 = vld [vmem:[#allocation7 + $0x230] sm:$0xff]
        %v4345 = vld [vmem:[#allocation7 + $0x238] sm:$0xff]
        %v4347 = vsel %vm3094, %v4229, 0
        %v4350 = vsel %vm3094, %v4232, 0
        %4352 = vmatpush.msra.mxu0 %v4289
        %4353 = vmatpush.msra.mxu0 %v4288
        %4354 = vmatpush.msra.mxu0 %v4287
        %4355 = vmatpush.msra.mxu0 %v4286
        %4356 = vmatpush.msra.mxu0 %v4285
        %4357 = vmatpush.msra.mxu0 %v4284
        %4358 = vmatpush.msra.mxu0 %v4283
        %4359 = vmatpush.msra.mxu0 %v4282
        %4360 = vmatpush.msra.mxu0 %v4281
        %4361 = vmatpush.msra.mxu0 %v4280
        %4362 = vmatpush.msra.mxu0 %v4279
        %4363 = vmatpush.msra.mxu0 %v4278
        %4364 = vmatpush.msra.mxu0 %v4277
        %4365 = vmatpush.msra.mxu0 %v4276
        %4366 = vmatpush.msra.mxu0 %v4275
        %4367 = vmatpush.msra.mxu0 %v4274
        %4368 = vmatmul.f32.gmra.mxu0 %v4266
        %v4369 = vpop.f32.mrf.mxu0
        %v4370 = vadd.f32 0.0, %v4369
        %4371 = vmatmul.f32.gmra.mxu0 %v4267
        %v4372 = vpop.f32.mrf.mxu0
        %v4373 = vadd.f32 0.0, %v4372
        %4374 = vdwg.mxu0
        %4375 = vmatpush.msra.mxu0 %v4305
        %4376 = vmatpush.msra.mxu0 %v4304
        %4377 = vmatpush.msra.mxu0 %v4303
        %4378 = vmatpush.msra.mxu0 %v4302
        %4379 = vmatpush.msra.mxu0 %v4301
        %4380 = vmatpush.msra.mxu0 %v4300
        %4381 = vmatpush.msra.mxu0 %v4299
        %4382 = vmatpush.msra.mxu0 %v4298
        %4383 = vmatpush.msra.mxu0 %v4297
        %4384 = vmatpush.msra.mxu0 %v4296
        %4385 = vmatpush.msra.mxu0 %v4295
        %4386 = vmatpush.msra.mxu0 %v4294
        %4387 = vmatpush.msra.mxu0 %v4293
        %4388 = vmatpush.msra.mxu0 %v4292
        %4389 = vmatpush.msra.mxu0 %v4291
        %4390 = vmatpush.msra.mxu0 %v4290
        %4391 = vmatmul.f32.gmra.mxu0 %v4268
        %v4392 = vpop.f32.mrf.mxu0
        %v4393 = vadd.f32 %v4370, %v4392
        %4394 = vmatmul.f32.gmra.mxu0 %v4269
        %v4395 = vpop.f32.mrf.mxu0
        %v4396 = vadd.f32 %v4373, %v4395
        %4397 = vdwg.mxu0
        %4398 = vmatpush.msra.mxu0 %v4321
        %4399 = vmatpush.msra.mxu0 %v4320
        %4400 = vmatpush.msra.mxu0 %v4319
        %4401 = vmatpush.msra.mxu0 %v4318
        %4402 = vmatpush.msra.mxu0 %v4317
        %4403 = vmatpush.msra.mxu0 %v4316
        %4404 = vmatpush.msra.mxu0 %v4315
        %4405 = vmatpush.msra.mxu0 %v4314
        %4406 = vmatpush.msra.mxu0 %v4313
        %4407 = vmatpush.msra.mxu0 %v4312
        %4408 = vmatpush.msra.mxu0 %v4311
        %4409 = vmatpush.msra.mxu0 %v4310
        %4410 = vmatpush.msra.mxu0 %v4309
        %4411 = vmatpush.msra.mxu0 %v4308
        %4412 = vmatpush.msra.mxu0 %v4307
        %4413 = vmatpush.msra.mxu0 %v4306
        %4414 = vmatmul.f32.gmra.mxu0 %v4270
        %v4415 = vpop.f32.mrf.mxu0
        %v4416 = vadd.f32 %v4393, %v4415
        %4417 = vmatmul.f32.gmra.mxu0 %v4271
        %v4418 = vpop.f32.mrf.mxu0
        %v4419 = vadd.f32 %v4396, %v4418
        %4420 = vdwg.mxu0
        %4421 = vmatpush.msra.mxu0 %v4337
        %4422 = vmatpush.msra.mxu0 %v4336
        %4423 = vmatpush.msra.mxu0 %v4335
        %4424 = vmatpush.msra.mxu0 %v4334
        %4425 = vmatpush.msra.mxu0 %v4333
        %4426 = vmatpush.msra.mxu0 %v4332
        %4427 = vmatpush.msra.mxu0 %v4331
        %4428 = vmatpush.msra.mxu0 %v4330
        %4429 = vmatpush.msra.mxu0 %v4329
        %4430 = vmatpush.msra.mxu0 %v4328
        %4431 = vmatpush.msra.mxu0 %v4327
        %4432 = vmatpush.msra.mxu0 %v4326
        %4433 = vmatpush.msra.mxu0 %v4325
        %4434 = vmatpush.msra.mxu0 %v4324
        %4435 = vmatpush.msra.mxu0 %v4323
        %4436 = vmatpush.msra.mxu0 %v4322
        %4437 = vmatmul.f32.gmra.mxu0 %v4272
        %v4438 = vpop.f32.mrf.mxu0
        %v4439 = vadd.f32 %v4416, %v4438
        %4440 = vmatmul.f32.gmra.mxu0 %v4273
        %v4441 = vpop.f32.mrf.mxu0
        %v4442 = vadd.f32 %v4419, %v4441
        %4443 = vdwg.mxu0
        %4444 = vmatpush.msra.mxu0 0.0
        %4445 = vmatpush.msra.mxu0 0.0
        %4446 = vmatpush.msra.mxu0 0.0
        %4447 = vmatpush.msra.mxu0 0.0
        %4448 = vmatpush.msra.mxu0 0.0
        %4449 = vmatpush.msra.mxu0 0.0
        %4450 = vmatpush.msra.mxu0 0.0
        %4451 = vmatpush.msra.mxu0 0.0
        %4452 = vmatpush.msra.mxu0 %v4345
        %4453 = vmatpush.msra.mxu0 %v4344
        %4454 = vmatpush.msra.mxu0 %v4343
        %4455 = vmatpush.msra.mxu0 %v4342
        %4456 = vmatpush.msra.mxu0 %v4341
        %4457 = vmatpush.msra.mxu0 %v4340
        %4458 = vmatpush.msra.mxu0 %v4339
        %4459 = vmatpush.msra.mxu0 %v4338
        %4460 = vmatmul.f32.gmra.mxu0 %v4347
        %v4461 = vpop.f32.mrf.mxu0
        %v4462 = vadd.f32 %v4439, %v4461
        %4463 = vmatmul.f32.gmra.mxu0 %v4350
        %v4464 = vpop.f32.mrf.mxu0
        %v4465 = vadd.f32 %v4442, %v4464
        %4466 = vdwg.mxu0
        %4467 = vst.msk [vmem:[%s400] sm:$0xff] %vm3094, %v4462
        %4468 = vst.msk [vmem:[%s400 + $0x8] sm:$0xff] %vm3094, %v4465
        %s4469 = smul.u32 2, %s24
        %p4470 = scmp.lt.s32.totalorder %s4469, 3
        %s4471 = scalar_select %p4470, %s4469, 3
        %s4472 = smul.addr %s4471, 8
        %s4473 = scalar_lea.vmem %s7, %s4472
        // Predicated region
        $region77: #{simplenet_forward.1} parent=47 // pred_check
          %p4474 = pneg %p194
        $region78: #{simplenet_forward.1} parent=47 // pred_check_branch
          %4476 = sbr.rel (%p4474) target = $region80
        $region79: #{simplenet_forward.1} parent=47 // pred_region
          %s4477 = smul.u32 2, %s24
        $region80: #{simplenet_forward.1} parent=47 // pred_fallthru
          _
      $region48: #{simplenet_forward.1} parent=5 // pred_fallthru
        _
      %p4478 = scmp.le.s32.totalorder 2, %s19
      // Predicated region
      $region81: #{simplenet_forward.1} parent=5 // pred_check
        %p4479 = pneg %p4478
      $region82: #{simplenet_forward.1} parent=5 // pred_check_branch
        %4481 = sbr.rel (%p4479) target = $region84
      $region83: #{simplenet_forward.1} parent=5 // pred_region
        %s4482 = ssub.s32 %s19, 2
        // Predicated region
        $region85: #{simplenet_forward.1} parent=83 // pred_check
          %p4483 = pneg %p200
        $region86: #{simplenet_forward.1} parent=83 // pred_check_branch
          %4485 = sbr.rel (%p4483) target = $region88
        $region87: #{simplenet_forward.1} parent=83 // pred_region
          %s4486 = smul.u32 2, %s25
          %p4487 = scmp.lt.s32.totalorder %s4486, 3
          %s4488 = scalar_select %p4487, %s4486, 3
          %s4489 = smul.addr %s4488, 8
          %s4490 = scalar_lea.vmem %s7, %s4489
        $region88: #{simplenet_forward.1} parent=83 // pred_fallthru
          _
      $region84: #{simplenet_forward.1} parent=5 // pred_fallthru
        _
    $region6: #{simplenet_forward.1} parent=1 // loop_footer
      %s23 = sadd.s32 1, %s19
    $region7: #{simplenet_forward.1} parent=1 // loop_footer_branch
      %18 = sbr.rel target = $region3
    $region8: #{simplenet_forward.1} parent=1 // loop_exit
      _
    %4491 = vsyncpa [#allocation3], 1
    %s4492 = scalar_lea.sflag [#allocation3], 1
    %4493 = vsyncpa %s4492, 1
    %4494 = vsyncpa [#allocation5], 1
    %4495 = vsyncpa [#allocation8], 1
    %4496 = vsyncpa [#allocation11], 1

</llo_original>
